<compile_context>
chip_gen: v5e
topology: v5e:2x2
jax: 0.10.0
libtpu: 0.0.40
codegen_flags: <defaults>
</compile_context>

<pallas_src>
import math

import jax
import jax.numpy as jnp
import numpy as np
from jax import lax
from jax.experimental import pallas as pl
from jax.experimental.pallas import tpu as pltpu  # noqa: F401

# ----------------------------- config (small) ------------------------------
DIM = 64            # config.dim
N_HEADS = 4         # config.n_heads  (n_kv_heads = None -> n_heads)
HEAD_DIM = DIM // N_HEADS           # 16
HALF = HEAD_DIM // 2                # 8
N_LAYERS = 2        # config.n_layers
VOCAB = 256         # config.vocab_size
SEQ = 8             # seqlen == config.max_seq_len
BATCH = 2
MULTIPLE_OF = 32    # config.multiple_of
EPS = 1e-6          # config.norm_eps
THETA = 10000.0

_hidden = int(2 * (4 * DIM) / 3)
HIDDEN = MULTIPLE_OF * ((_hidden + MULTIPLE_OF - 1) // MULTIPLE_OF)   # 192
H_PAD = 256         # HIDDEN padded to a 128-lane multiple (zero pad)

BS = BATCH * SEQ    # flattened (batch*seq) rows


# ------------------------------ Pallas kernel -------------------------------
def fused_transformer_kernel(h0_ref, norms_ref, wqkvs_ref, wo_ref, w13_ref,
                             w2_ref, cos2_ref, ssin2_ref, mask_ref,
                             fnorm_ref, wout_ref, out_ref):
    """Whole forward pass in one invocation; layer loop statically unrolled."""
    h = h0_ref[...]                                  # (BS, D), stays in vregs
    cos2 = cos2_ref[...]                             # (BS, 2D)
    ssin2 = ssin2_ref[...]                           # (BS, 2D)
    neg_mask = mask_ref[...]                         # (SEQ, SEQ) causal -inf

    for layer in range(N_LAYERS):                    # static unroll (weights resident)
        norms = norms_ref[layer]                     # (2, D)
        anw = norms[0:1, :]
        fnw = norms[1:2, :]

        # ---- attention RMSNorm ----
        xn = h * lax.rsqrt(jnp.mean(h * h, axis=-1, keepdims=True) + EPS) * anw

        # ---- fused [q|k | qs|ks | v|pad] projection, 128-lane aligned slots ----
        proj = jnp.dot(xn, wqkvs_ref[layer],
                       preferred_element_type=jnp.float32)       # (BS, 6D)
        qk = proj[:, 0:2 * DIM]                                  # (BS, 128)
        qsks = proj[:, 2 * DIM:4 * DIM]                          # (BS, 128)
        v = proj[:, 4 * DIM:5 * DIM]                             # (BS, 64)

        # ---- RoPE: one FMA pair over the 128-wide [q|k] tile ----
        qk_rot = qk * cos2 + qsks * ssin2

        # ---- per-(batch, head) attention; outputs placed into one (BS,D) tile ----
        batch_rows = []
        for b in range(BATCH):                                   # static
            r0 = b * SEQ
            heads = []
            for hh in range(N_HEADS):                            # static
                cq = hh * HEAD_DIM
                ck = DIM + hh * HEAD_DIM
                qb = qk_rot[r0:r0 + SEQ, cq:cq + HEAD_DIM]       # (S, HD)
                kb = qk_rot[r0:r0 + SEQ, ck:ck + HEAD_DIM]       # (S, HD)
                vb = v[r0:r0 + SEQ, cq:cq + HEAD_DIM]            # (S, HD)
                # q . k^T without materializing the transpose
                sc = lax.dot_general(qb, kb, (((1,), (1,)), ((), ())),
                                     preferred_element_type=jnp.float32)
                sc = sc + neg_mask
                sc = sc - jnp.max(sc, axis=-1, keepdims=True)
                p = jnp.exp(sc)
                d = jnp.sum(p, axis=-1, keepdims=True)
                r = pl.reciprocal(d, approx=True)
                r = r * (2.0 - d * r)            # one Newton-Raphson step
                p = p * r
                heads.append(jnp.dot(p, vb,
                                     preferred_element_type=jnp.float32))
            batch_rows.append(jnp.concatenate(heads, axis=1))    # (S, D)
        attn = jnp.concatenate(batch_rows, axis=0)               # (BS, D)

        # single full-width output projection for all heads
        h = h + jnp.dot(attn, wo_ref[layer],
                        preferred_element_type=jnp.float32)

        # ---- FFN RMSNorm + SwiGLU (w1/w3 fused, each half padded to 256) ----
        hn = h * lax.rsqrt(jnp.mean(h * h, axis=-1, keepdims=True) + EPS) * fnw
        g13 = jnp.dot(hn, w13_ref[layer],
                      preferred_element_type=jnp.float32)        # (BS, 2*H_PAD)
        a = g13[:, :H_PAD]
        b3 = g13[:, H_PAD:]
        h = h + jnp.dot(a * jax.nn.sigmoid(a) * b3, w2_ref[layer],
                        preferred_element_type=jnp.float32)      # (BS, D)

    # ---- final RMSNorm + vocab head (lane-dense (BS, V) output) ----
    xf = (h * lax.rsqrt(jnp.mean(h * h, axis=-1, keepdims=True) + EPS)
          * fnorm_ref[...])
    out_ref[...] = jnp.dot(xf, wout_ref[...],
                           preferred_element_type=jnp.float32)   # (BS, V)


# ------------------------------ wrapper --------------------------------------
@jax.jit
def transformer_forward(tokens, params, cos2, ssin2, neg_mask):
    # Token embedding gather (4 KiB) in the wrapper; h0 fed straight to the kernel.
    h0 = jnp.take(params["emb"], tokens.reshape(-1), axis=0).astype(jnp.float32)

    out = pl.pallas_call(
        fused_transformer_kernel,
        out_shape=jax.ShapeDtypeStruct((BS, VOCAB), jnp.float32),
        # No grid: every input is a full-array VMEM block (total ~1 MiB).
    )(h0, params["norms"], params["wqkvs"], params["wo"], params["w13"],
      params["w2"], cos2, ssin2, neg_mask, params["norm_w"], params["wout_t"])
    return out.reshape(BATCH, SEQ, VOCAB)


# ----------------------- parameter / RoPE-table construction -----------------
def precompute_rope():
    inv = 1.0 / (THETA ** (np.arange(0, HEAD_DIM, 2)[:HALF].astype(np.float32)
                           / HEAD_DIM))
    t = np.arange(SEQ, dtype=np.float32)
    ang = np.outer(t, inv).astype(np.float32)                    # (S, HALF)
    cos_h, sin_h = np.cos(ang), np.sin(ang)
    # per-head block layout [reals | imags]:
    #   cos table = [cos, cos], signed sin table = [-sin, +sin]
    c_head = np.concatenate([cos_h, cos_h], axis=1)              # (S, HEAD_DIM)
    s_head = np.concatenate([-sin_h, sin_h], axis=1)             # (S, HEAD_DIM)
    # tiled over (q heads | k heads) -> 128 lanes, and over batch -> BS rows
    cos2 = np.tile(c_head, (BATCH, 2 * N_HEADS))                 # (BS, 2D)
    ssin2 = np.tile(s_head, (BATCH, 2 * N_HEADS))                # (BS, 2D)
    return (jnp.asarray(cos_h), jnp.asarray(sin_h),
            jnp.asarray(cos2), jnp.asarray(ssin2))


def make_params(key):
    keys = jax.random.split(key, 2 + 7 * N_LAYERS)
    ki = iter(keys)
    scale = 0.02

    # perm: interleaved (torch) -> [reals | imags] within each head block
    # swap: swap the two halves within each head block (on the permuted layout)
    perm, swap = [], []
    for h in range(N_HEADS):
        perm += [h * HEAD_DIM + 2 * j for j in range(HALF)]
        perm += [h * HEAD_DIM + 2 * j + 1 for j in range(HALF)]
        swap += list(range(h * HEAD_DIM + HALF, h * HEAD_DIM + HEAD_DIM))
        swap += list(range(h * HEAD_DIM, h * HEAD_DIM + HALF))
    perm = np.array(perm)
    swap = np.array(swap)
    inv_sqrt_d = 1.0 / math.sqrt(HEAD_DIM)

    emb = jax.random.normal(next(ki), (VOCAB, DIM), jnp.float32) * scale

    norms_l, wqkvs_l, wo_l, w13_l, w2_l = [], [], [], [], []
    layers_ref = []
    zpad_v = jnp.zeros((DIM, DIM), jnp.float32)
    zpad_h = jnp.zeros((DIM, H_PAD - HIDDEN), jnp.float32)
    zpad_w2 = jnp.zeros((H_PAD - HIDDEN, DIM), jnp.float32)
    for _ in range(N_LAYERS):
        wq_t = jax.random.normal(next(ki), (DIM, DIM), jnp.float32) * scale
        wk_t = jax.random.normal(next(ki), (DIM, DIM), jnp.float32) * scale
        wv_t = jax.random.normal(next(ki), (DIM, DIM), jnp.float32) * scale
        wo_t = jax.random.normal(next(ki), (DIM, DIM), jnp.float32) * scale
        w1_t = jax.random.normal(next(ki), (DIM, HIDDEN), jnp.float32) * scale
        w2_t = jax.random.normal(next(ki), (HIDDEN, DIM), jnp.float32) * scale
        w3_t = jax.random.normal(next(ki), (DIM, HIDDEN), jnp.float32) * scale
        anw = jnp.ones((DIM,), jnp.float32)
        fnw = jnp.ones((DIM,), jnp.float32)

        wq_p = wq_t[:, perm] * inv_sqrt_d      # 1/sqrt(head_dim) folded (q only)
        wk_p = wk_t[:, perm]
        # 128-lane-aligned slots: [q|k] [q_swap|k_swap] [v|0]
        wqkvs = jnp.concatenate(
            [wq_p, wk_p, wq_p[:, swap], wk_p[:, swap], wv_t, zpad_v], axis=1)

        norms_l.append(jnp.stack([anw, fnw], axis=0))                   # (2, D)
        wqkvs_l.append(wqkvs)                                           # (D, 6D)
        wo_l.append(wo_t)
        # [w1 | 0pad | w3 | 0pad] -> vreg-aligned 256-wide halves
        w13_l.append(jnp.concatenate([w1_t, zpad_h, w3_t, zpad_h], axis=1))
        w2_l.append(jnp.concatenate([w2_t, zpad_w2], axis=0))           # (H_PAD, D)
        layers_ref.append((anw, wq_t, wk_t, wv_t, wo_t, fnw, w1_t, w2_t, w3_t))

    norm_w = jnp.ones((DIM,), jnp.float32)
    wout_t = jax.random.normal(next(ki), (DIM, VOCAB), jnp.float32) * scale

    params = {
        "emb": emb,                      # (V, D)
        "norms": jnp.stack(norms_l),     # (L, 2, D)
        "wqkvs": jnp.stack(wqkvs_l),     # (L, D, 6D)
        "wo": jnp.stack(wo_l),           # (L, D, D)
        "w13": jnp.stack(w13_l),         # (L, D, 2*H_PAD)
        "w2": jnp.stack(w2_l),           # (L, H_PAD, D)
        "norm_w": norm_w.reshape(1, DIM),
        "wout_t": wout_t,                # (D, V)
    }
    params_ref = {"emb": emb, "layers": layers_ref,
                  "norm_w": norm_w, "wout_t": wout_t}
    return params, params_ref


# ------------------------- pure-JAX reference (interleaved RoPE) -------------
def rmsnorm_ref(x, w):
    return x * lax.rsqrt(jnp.mean(x * x, axis=-1, keepdims=True) + EPS) * w


def reference_forward(tokens, params_ref, cos, sin):
    B, S = tokens.shape
    h = jnp.take(params_ref["emb"], tokens, axis=0).astype(jnp.float32)
    cosb = cos[None, :, None, :]
    sinb = sin[None, :, None, :]
    for (anw, wq_t, wk_t, wv_t, wo_t, fnw, w1_t, w2_t, w3_t) in params_ref["layers"]:
        xn = rmsnorm_ref(h, anw)
        q = (xn @ wq_t).reshape(B, S, N_HEADS, HEAD_DIM)
        k = (xn @ wk_t).reshape(B, S, N_HEADS, HEAD_DIM)
        v = (xn @ wv_t).reshape(B, S, N_HEADS, HEAD_DIM)
        qr, qi = q[..., 0::2], q[..., 1::2]
        kr, ki_ = k[..., 0::2], k[..., 1::2]
        q_rot = jnp.stack([qr * cosb - qi * sinb, qr * sinb + qi * cosb], -1).reshape(q.shape)
        k_rot = jnp.stack([kr * cosb - ki_ * sinb, kr * sinb + ki_ * cosb], -1).reshape(k.shape)
        scores = jnp.einsum("bqhd,bkhd->bhqk", q_rot, k_rot) / math.sqrt(HEAD_DIM)
        mask = jnp.where(np.tril(np.ones((S, S), np.bool_)), 0.0, -jnp.inf).astype(jnp.float32)
        scores = scores + mask[None, None]
        p = jax.nn.softmax(scores, axis=-1)
        o = jnp.einsum("bhqk,bkhd->bqhd", p, v).reshape(B, S, DIM)
        h = h + o @ wo_t
        hn = rmsnorm_ref(h, fnw)
        a = hn @ w1_t
        h = h + ((a * jax.nn.sigmoid(a)) * (hn @ w3_t)) @ w2_t
    hn = rmsnorm_ref(h, params_ref["norm_w"])
    return (hn @ params_ref["wout_t"]).astype(jnp.float32)


# ----------------------------------- main -----------------------------------
if __name__ == "__main__":
    key = jax.random.PRNGKey(0)
    k_tok, k_par = jax.random.split(key)

    tokens = jax.random.randint(k_tok, (BATCH, SEQ), 0, VOCAB, dtype=jnp.int32)
    params, params_ref = make_params(k_par)
    cos_h, sin_h, cos2, ssin2 = precompute_rope()        # start_pos = 0
    neg_mask = jnp.asarray(
        np.triu(np.full((SEQ, SEQ), -np.inf, dtype=np.float32), k=1))

    logits = transformer_forward(tokens, params, cos2, ssin2, neg_mask)
    logits = jax.block_until_ready(logits)

    ref = reference_forward(tokens, params_ref, cos_h, sin_h)
    ref = jax.block_until_ready(ref)

    assert logits.shape == (BATCH, SEQ, VOCAB)
    assert logits.dtype == jnp.float32
    np.testing.assert_allclose(np.asarray(logits), np.asarray(ref),
                               atol=2e-3, rtol=2e-3)

    print("KERNEL_OK")
</pallas_src>

<mosaic_0001>
module attributes {stable_mosaic.version = 11 : i64} {
  func.func @fused_transformer_kernel(%arg0: memref<16x64xf32, #tpu.memory_space<vmem>>, %arg1: memref<2x2x64xf32, #tpu.memory_space<vmem>>, %arg2: memref<2x64x384xf32, #tpu.memory_space<vmem>>, %arg3: memref<2x64x64xf32, #tpu.memory_space<vmem>>, %arg4: memref<2x64x512xf32, #tpu.memory_space<vmem>>, %arg5: memref<2x256x64xf32, #tpu.memory_space<vmem>>, %arg6: memref<16x128xf32, #tpu.memory_space<vmem>>, %arg7: memref<16x128xf32, #tpu.memory_space<vmem>>, %arg8: memref<8x8xf32, #tpu.memory_space<vmem>>, %arg9: memref<1x64xf32, #tpu.memory_space<vmem>>, %arg10: memref<64x256xf32, #tpu.memory_space<vmem>>, %arg11: memref<16x256xf32, #tpu.memory_space<vmem>>) attributes {dimension_semantics = [], scalar_prefetch = 0 : i64, scratch_operands = 0 : i64, tpu.core_type = #tpu.core_type<tc>} {
    %c0 = arith.constant 0 : index
    %c0_0 = arith.constant 0 : index
    %0 = vector.load %arg0[%c0, %c0_0] : memref<16x64xf32, #tpu.memory_space<vmem>>, vector<16x64xf32>
    %c0_1 = arith.constant 0 : index
    %c0_2 = arith.constant 0 : index
    %1 = vector.load %arg6[%c0_1, %c0_2] : memref<16x128xf32, #tpu.memory_space<vmem>>, vector<16x128xf32>
    %c0_3 = arith.constant 0 : index
    %c0_4 = arith.constant 0 : index
    %2 = vector.load %arg7[%c0_3, %c0_4] : memref<16x128xf32, #tpu.memory_space<vmem>>, vector<16x128xf32>
    %c0_5 = arith.constant 0 : index
    %c0_6 = arith.constant 0 : index
    %3 = vector.load %arg8[%c0_5, %c0_6] : memref<8x8xf32, #tpu.memory_space<vmem>>, vector<8x8xf32>
    %c0_7 = arith.constant 0 : index
    %c0_8 = arith.constant 0 : index
    %c0_9 = arith.constant 0 : index
    %4 = vector.load %arg1[%c0_7, %c0_8, %c0_9] : memref<2x2x64xf32, #tpu.memory_space<vmem>>, vector<1x2x64xf32>
    %5 = vector.shape_cast %4 : vector<1x2x64xf32> to vector<2x64xf32>
    %6 = vector.extract_strided_slice %5 {offsets = [0, 0], sizes = [1, 64], strides = [1, 1]} : vector<2x64xf32> to vector<1x64xf32>
    %7 = vector.extract_strided_slice %5 {offsets = [1, 0], sizes = [1, 64], strides = [1, 1]} : vector<2x64xf32> to vector<1x64xf32>
    %8 = arith.mulf %0, %0 : vector<16x64xf32>
    %cst = arith.constant dense<0.000000e+00> : vector<16xf32>
    %9 = vector.multi_reduction <add>, %8, %cst [1] : vector<16x64xf32> to vector<16xf32>
    %10 = vector.shape_cast %9 : vector<16xf32> to vector<16x1xf32>
    %cst_10 = arith.constant 6.400000e+01 : f32
    %11 = vector.broadcast %cst_10 : f32 to vector<16x1xf32>
    %12 = arith.divf %10, %11 : vector<16x1xf32>
    %cst_11 = arith.constant 9.99999997E-7 : f32
    %13 = vector.broadcast %cst_11 : f32 to vector<16x1xf32>
    %14 = arith.addf %12, %13 : vector<16x1xf32>
    %15 = math.rsqrt %14 : vector<16x1xf32>
    %16 = vector.broadcast %15 : vector<16x1xf32> to vector<16x64xf32>
    %17 = arith.mulf %0, %16 : vector<16x64xf32>
    %18 = vector.broadcast %6 : vector<1x64xf32> to vector<16x64xf32>
    %19 = arith.mulf %17, %18 : vector<16x64xf32>
    %c0_12 = arith.constant 0 : index
    %c0_13 = arith.constant 0 : index
    %c0_14 = arith.constant 0 : index
    %20 = vector.load %arg2[%c0_12, %c0_13, %c0_14] : memref<2x64x384xf32, #tpu.memory_space<vmem>>, vector<1x64x384xf32>
    %21 = vector.shape_cast %20 : vector<1x64x384xf32> to vector<64x384xf32>
    %cst_15 = arith.constant dense<0.000000e+00> : vector<16x384xf32>
    %22 = tpu.matmul %19, %21, %cst_15 {dimension_numbers = #tpu.dot_dimension_numbers<[1], [0], [0], [1], [0, 0, 1, 1], [], []>} : vector<16x64xf32>, vector<64x384xf32>, vector<16x384xf32> -> vector<16x384xf32>
    %23 = vector.extract_strided_slice %22 {offsets = [0, 0], sizes = [16, 128], strides = [1, 1]} : vector<16x384xf32> to vector<16x128xf32>
    %24 = vector.extract_strided_slice %22 {offsets = [0, 128], sizes = [16, 128], strides = [1, 1]} : vector<16x384xf32> to vector<16x128xf32>
    %25 = vector.extract_strided_slice %22 {offsets = [0, 256], sizes = [16, 64], strides = [1, 1]} : vector<16x384xf32> to vector<16x64xf32>
    %26 = arith.mulf %23, %1 : vector<16x128xf32>
    %27 = arith.mulf %24, %2 : vector<16x128xf32>
    %28 = arith.addf %26, %27 : vector<16x128xf32>
    %29 = vector.extract_strided_slice %28 {offsets = [0, 0], sizes = [8, 16], strides = [1, 1]} : vector<16x128xf32> to vector<8x16xf32>
    %30 = vector.extract_strided_slice %28 {offsets = [0, 64], sizes = [8, 16], strides = [1, 1]} : vector<16x128xf32> to vector<8x16xf32>
    %31 = vector.extract_strided_slice %25 {offsets = [0, 0], sizes = [8, 16], strides = [1, 1]} : vector<16x64xf32> to vector<8x16xf32>
    %cst_16 = arith.constant dense<0.000000e+00> : vector<8x8xf32>
    %32 = tpu.matmul %29, %30, %cst_16 {dimension_numbers = #tpu.dot_dimension_numbers<[1], [1], [0], [0], [0, 0, 1, 0], [], []>} : vector<8x16xf32>, vector<8x16xf32>, vector<8x8xf32> -> vector<8x8xf32>
    %33 = arith.addf %32, %3 : vector<8x8xf32>
    %cst_17 = arith.constant dense<0xFF800000> : vector<8xf32>
    %34 = vector.multi_reduction <maximumf>, %33, %cst_17 [1] : vector<8x8xf32> to vector<8xf32>
    %35 = vector.shape_cast %34 : vector<8xf32> to vector<8x1xf32>
    %36 = vector.broadcast %35 : vector<8x1xf32> to vector<8x8xf32>
    %37 = arith.subf %33, %36 : vector<8x8xf32>
    %38 = math.exp %37 : vector<8x8xf32>
    %cst_18 = arith.constant dense<0.000000e+00> : vector<8xf32>
    %39 = vector.multi_reduction <add>, %38, %cst_18 [1] : vector<8x8xf32> to vector<8xf32>
    %40 = vector.shape_cast %39 : vector<8xf32> to vector<8x1xf32>
    %41 = tpu.reciprocal %40 {approx = true} : vector<8x1xf32> -> vector<8x1xf32>
    %42 = arith.mulf %40, %41 : vector<8x1xf32>
    %cst_19 = arith.constant 2.000000e+00 : f32
    %43 = vector.broadcast %cst_19 : f32 to vector<8x1xf32>
    %44 = arith.subf %43, %42 : vector<8x1xf32>
    %45 = arith.mulf %41, %44 : vector<8x1xf32>
    %46 = vector.broadcast %45 : vector<8x1xf32> to vector<8x8xf32>
    %47 = arith.mulf %38, %46 : vector<8x8xf32>
    %cst_20 = arith.constant dense<0.000000e+00> : vector<8x16xf32>
    %48 = tpu.matmul %47, %31, %cst_20 {dimension_numbers = #tpu.dot_dimension_numbers<[1], [0], [0], [1], [0, 0, 1, 1], [], []>} : vector<8x8xf32>, vector<8x16xf32>, vector<8x16xf32> -> vector<8x16xf32>
    %49 = vector.extract_strided_slice %28 {offsets = [0, 16], sizes = [8, 16], strides = [1, 1]} : vector<16x128xf32> to vector<8x16xf32>
    %50 = vector.extract_strided_slice %28 {offsets = [0, 80], sizes = [8, 16], strides = [1, 1]} : vector<16x128xf32> to vector<8x16xf32>
    %51 = vector.extract_strided_slice %25 {offsets = [0, 16], sizes = [8, 16], strides = [1, 1]} : vector<16x64xf32> to vector<8x16xf32>
    %cst_21 = arith.constant dense<0.000000e+00> : vector<8x8xf32>
    %52 = tpu.matmul %49, %50, %cst_21 {dimension_numbers = #tpu.dot_dimension_numbers<[1], [1], [0], [0], [0, 0, 1, 0], [], []>} : vector<8x16xf32>, vector<8x16xf32>, vector<8x8xf32> -> vector<8x8xf32>
    %53 = arith.addf %52, %3 : vector<8x8xf32>
    %cst_22 = arith.constant dense<0xFF800000> : vector<8xf32>
    %54 = vector.multi_reduction <maximumf>, %53, %cst_22 [1] : vector<8x8xf32> to vector<8xf32>
    %55 = vector.shape_cast %54 : vector<8xf32> to vector<8x1xf32>
    %56 = vector.broadcast %55 : vector<8x1xf32> to vector<8x8xf32>
    %57 = arith.subf %53, %56 : vector<8x8xf32>
    %58 = math.exp %57 : vector<8x8xf32>
    %cst_23 = arith.constant dense<0.000000e+00> : vector<8xf32>
    %59 = vector.multi_reduction <add>, %58, %cst_23 [1] : vector<8x8xf32> to vector<8xf32>
    %60 = vector.shape_cast %59 : vector<8xf32> to vector<8x1xf32>
    %61 = tpu.reciprocal %60 {approx = true} : vector<8x1xf32> -> vector<8x1xf32>
    %62 = arith.mulf %60, %61 : vector<8x1xf32>
    %cst_24 = arith.constant 2.000000e+00 : f32
    %63 = vector.broadcast %cst_24 : f32 to vector<8x1xf32>
    %64 = arith.subf %63, %62 : vector<8x1xf32>
    %65 = arith.mulf %61, %64 : vector<8x1xf32>
    %66 = vector.broadcast %65 : vector<8x1xf32> to vector<8x8xf32>
    %67 = arith.mulf %58, %66 : vector<8x8xf32>
    %cst_25 = arith.constant dense<0.000000e+00> : vector<8x16xf32>
    %68 = tpu.matmul %67, %51, %cst_25 {dimension_numbers = #tpu.dot_dimension_numbers<[1], [0], [0], [1], [0, 0, 1, 1], [], []>} : vector<8x8xf32>, vector<8x16xf32>, vector<8x16xf32> -> vector<8x16xf32>
    %69 = vector.extract_strided_slice %28 {offsets = [0, 32], sizes = [8, 16], strides = [1, 1]} : vector<16x128xf32> to vector<8x16xf32>
    %70 = vector.extract_strided_slice %28 {offsets = [0, 96], sizes = [8, 16], strides = [1, 1]} : vector<16x128xf32> to vector<8x16xf32>
    %71 = vector.extract_strided_slice %25 {offsets = [0, 32], sizes = [8, 16], strides = [1, 1]} : vector<16x64xf32> to vector<8x16xf32>
    %cst_26 = arith.constant dense<0.000000e+00> : vector<8x8xf32>
    %72 = tpu.matmul %69, %70, %cst_26 {dimension_numbers = #tpu.dot_dimension_numbers<[1], [1], [0], [0], [0, 0, 1, 0], [], []>} : vector<8x16xf32>, vector<8x16xf32>, vector<8x8xf32> -> vector<8x8xf32>
    %73 = arith.addf %72, %3 : vector<8x8xf32>
    %cst_27 = arith.constant dense<0xFF800000> : vector<8xf32>
    %74 = vector.multi_reduction <maximumf>, %73, %cst_27 [1] : vector<8x8xf32> to vector<8xf32>
    %75 = vector.shape_cast %74 : vector<8xf32> to vector<8x1xf32>
    %76 = vector.broadcast %75 : vector<8x1xf32> to vector<8x8xf32>
    %77 = arith.subf %73, %76 : vector<8x8xf32>
    %78 = math.exp %77 : vector<8x8xf32>
    %cst_28 = arith.constant dense<0.000000e+00> : vector<8xf32>
    %79 = vector.multi_reduction <add>, %78, %cst_28 [1] : vector<8x8xf32> to vector<8xf32>
    %80 = vector.shape_cast %79 : vector<8xf32> to vector<8x1xf32>
    %81 = tpu.reciprocal %80 {approx = true} : vector<8x1xf32> -> vector<8x1xf32>
    %82 = arith.mulf %80, %81 : vector<8x1xf32>
    %cst_29 = arith.constant 2.000000e+00 : f32
    %83 = vector.broadcast %cst_29 : f32 to vector<8x1xf32>
    %84 = arith.subf %83, %82 : vector<8x1xf32>
    %85 = arith.mulf %81, %84 : vector<8x1xf32>
    %86 = vector.broadcast %85 : vector<8x1xf32> to vector<8x8xf32>
    %87 = arith.mulf %78, %86 : vector<8x8xf32>
    %cst_30 = arith.constant dense<0.000000e+00> : vector<8x16xf32>
    %88 = tpu.matmul %87, %71, %cst_30 {dimension_numbers = #tpu.dot_dimension_numbers<[1], [0], [0], [1], [0, 0, 1, 1], [], []>} : vector<8x8xf32>, vector<8x16xf32>, vector<8x16xf32> -> vector<8x16xf32>
    %89 = vector.extract_strided_slice %28 {offsets = [0, 48], sizes = [8, 16], strides = [1, 1]} : vector<16x128xf32> to vector<8x16xf32>
    %90 = vector.extract_strided_slice %28 {offsets = [0, 112], sizes = [8, 16], strides = [1, 1]} : vector<16x128xf32> to vector<8x16xf32>
    %91 = vector.extract_strided_slice %25 {offsets = [0, 48], sizes = [8, 16], strides = [1, 1]} : vector<16x64xf32> to vector<8x16xf32>
    %cst_31 = arith.constant dense<0.000000e+00> : vector<8x8xf32>
    %92 = tpu.matmul %89, %90, %cst_31 {dimension_numbers = #tpu.dot_dimension_numbers<[1], [1], [0], [0], [0, 0, 1, 0], [], []>} : vector<8x16xf32>, vector<8x16xf32>, vector<8x8xf32> -> vector<8x8xf32>
    %93 = arith.addf %92, %3 : vector<8x8xf32>
    %cst_32 = arith.constant dense<0xFF800000> : vector<8xf32>
    %94 = vector.multi_reduction <maximumf>, %93, %cst_32 [1] : vector<8x8xf32> to vector<8xf32>
    %95 = vector.shape_cast %94 : vector<8xf32> to vector<8x1xf32>
    %96 = vector.broadcast %95 : vector<8x1xf32> to vector<8x8xf32>
    %97 = arith.subf %93, %96 : vector<8x8xf32>
    %98 = math.exp %97 : vector<8x8xf32>
    %cst_33 = arith.constant dense<0.000000e+00> : vector<8xf32>
    %99 = vector.multi_reduction <add>, %98, %cst_33 [1] : vector<8x8xf32> to vector<8xf32>
    %100 = vector.shape_cast %99 : vector<8xf32> to vector<8x1xf32>
    %101 = tpu.reciprocal %100 {approx = true} : vector<8x1xf32> -> vector<8x1xf32>
    %102 = arith.mulf %100, %101 : vector<8x1xf32>
    %cst_34 = arith.constant 2.000000e+00 : f32
    %103 = vector.broadcast %cst_34 : f32 to vector<8x1xf32>
    %104 = arith.subf %103, %102 : vector<8x1xf32>
    %105 = arith.mulf %101, %104 : vector<8x1xf32>
    %106 = vector.broadcast %105 : vector<8x1xf32> to vector<8x8xf32>
    %107 = arith.mulf %98, %106 : vector<8x8xf32>
    %cst_35 = arith.constant dense<0.000000e+00> : vector<8x16xf32>
    %108 = tpu.matmul %107, %91, %cst_35 {dimension_numbers = #tpu.dot_dimension_numbers<[1], [0], [0], [1], [0, 0, 1, 1], [], []>} : vector<8x8xf32>, vector<8x16xf32>, vector<8x16xf32> -> vector<8x16xf32>
    %109 = tpu.concatenate %48, %68, %88, %108 in 1 : vector<8x16xf32>, vector<8x16xf32>, vector<8x16xf32>, vector<8x16xf32> -> vector<8x64xf32>
    %110 = vector.extract_strided_slice %28 {offsets = [8, 0], sizes = [8, 16], strides = [1, 1]} : vector<16x128xf32> to vector<8x16xf32>
    %111 = vector.extract_strided_slice %28 {offsets = [8, 64], sizes = [8, 16], strides = [1, 1]} : vector<16x128xf32> to vector<8x16xf32>
    %112 = vector.extract_strided_slice %25 {offsets = [8, 0], sizes = [8, 16], strides = [1, 1]} : vector<16x64xf32> to vector<8x16xf32>
    %cst_36 = arith.constant dense<0.000000e+00> : vector<8x8xf32>
    %113 = tpu.matmul %110, %111, %cst_36 {dimension_numbers = #tpu.dot_dimension_numbers<[1], [1], [0], [0], [0, 0, 1, 0], [], []>} : vector<8x16xf32>, vector<8x16xf32>, vector<8x8xf32> -> vector<8x8xf32>
    %114 = arith.addf %113, %3 : vector<8x8xf32>
    %cst_37 = arith.constant dense<0xFF800000> : vector<8xf32>
    %115 = vector.multi_reduction <maximumf>, %114, %cst_37 [1] : vector<8x8xf32> to vector<8xf32>
    %116 = vector.shape_cast %115 : vector<8xf32> to vector<8x1xf32>
    %117 = vector.broadcast %116 : vector<8x1xf32> to vector<8x8xf32>
    %118 = arith.subf %114, %117 : vector<8x8xf32>
    %119 = math.exp %118 : vector<8x8xf32>
    %cst_38 = arith.constant dense<0.000000e+00> : vector<8xf32>
    %120 = vector.multi_reduction <add>, %119, %cst_38 [1] : vector<8x8xf32> to vector<8xf32>
    %121 = vector.shape_cast %120 : vector<8xf32> to vector<8x1xf32>
    %122 = tpu.reciprocal %121 {approx = true} : vector<8x1xf32> -> vector<8x1xf32>
    %123 = arith.mulf %121, %122 : vector<8x1xf32>
    %cst_39 = arith.constant 2.000000e+00 : f32
    %124 = vector.broadcast %cst_39 : f32 to vector<8x1xf32>
    %125 = arith.subf %124, %123 : vector<8x1xf32>
    %126 = arith.mulf %122, %125 : vector<8x1xf32>
    %127 = vector.broadcast %126 : vector<8x1xf32> to vector<8x8xf32>
    %128 = arith.mulf %119, %127 : vector<8x8xf32>
    %cst_40 = arith.constant dense<0.000000e+00> : vector<8x16xf32>
    %129 = tpu.matmul %128, %112, %cst_40 {dimension_numbers = #tpu.dot_dimension_numbers<[1], [0], [0], [1], [0, 0, 1, 1], [], []>} : vector<8x8xf32>, vector<8x16xf32>, vector<8x16xf32> -> vector<8x16xf32>
    %130 = vector.extract_strided_slice %28 {offsets = [8, 16], sizes = [8, 16], strides = [1, 1]} : vector<16x128xf32> to vector<8x16xf32>
    %131 = vector.extract_strided_slice %28 {offsets = [8, 80], sizes = [8, 16], strides = [1, 1]} : vector<16x128xf32> to vector<8x16xf32>
    %132 = vector.extract_strided_slice %25 {offsets = [8, 16], sizes = [8, 16], strides = [1, 1]} : vector<16x64xf32> to vector<8x16xf32>
    %cst_41 = arith.constant dense<0.000000e+00> : vector<8x8xf32>
    %133 = tpu.matmul %130, %131, %cst_41 {dimension_numbers = #tpu.dot_dimension_numbers<[1], [1], [0], [0], [0, 0, 1, 0], [], []>} : vector<8x16xf32>, vector<8x16xf32>, vector<8x8xf32> -> vector<8x8xf32>
    %134 = arith.addf %133, %3 : vector<8x8xf32>
    %cst_42 = arith.constant dense<0xFF800000> : vector<8xf32>
    %135 = vector.multi_reduction <maximumf>, %134, %cst_42 [1] : vector<8x8xf32> to vector<8xf32>
    %136 = vector.shape_cast %135 : vector<8xf32> to vector<8x1xf32>
    %137 = vector.broadcast %136 : vector<8x1xf32> to vector<8x8xf32>
    %138 = arith.subf %134, %137 : vector<8x8xf32>
    %139 = math.exp %138 : vector<8x8xf32>
    %cst_43 = arith.constant dense<0.000000e+00> : vector<8xf32>
    %140 = vector.multi_reduction <add>, %139, %cst_43 [1] : vector<8x8xf32> to vector<8xf32>
    %141 = vector.shape_cast %140 : vector<8xf32> to vector<8x1xf32>
    %142 = tpu.reciprocal %141 {approx = true} : vector<8x1xf32> -> vector<8x1xf32>
    %143 = arith.mulf %141, %142 : vector<8x1xf32>
    %cst_44 = arith.constant 2.000000e+00 : f32
    %144 = vector.broadcast %cst_44 : f32 to vector<8x1xf32>
    %145 = arith.subf %144, %143 : vector<8x1xf32>
    %146 = arith.mulf %142, %145 : vector<8x1xf32>
    %147 = vector.broadcast %146 : vector<8x1xf32> to vector<8x8xf32>
    %148 = arith.mulf %139, %147 : vector<8x8xf32>
    %cst_45 = arith.constant dense<0.000000e+00> : vector<8x16xf32>
    %149 = tpu.matmul %148, %132, %cst_45 {dimension_numbers = #tpu.dot_dimension_numbers<[1], [0], [0], [1], [0, 0, 1, 1], [], []>} : vector<8x8xf32>, vector<8x16xf32>, vector<8x16xf32> -> vector<8x16xf32>
    %150 = vector.extract_strided_slice %28 {offsets = [8, 32], sizes = [8, 16], strides = [1, 1]} : vector<16x128xf32> to vector<8x16xf32>
    %151 = vector.extract_strided_slice %28 {offsets = [8, 96], sizes = [8, 16], strides = [1, 1]} : vector<16x128xf32> to vector<8x16xf32>
    %152 = vector.extract_strided_slice %25 {offsets = [8, 32], sizes = [8, 16], strides = [1, 1]} : vector<16x64xf32> to vector<8x16xf32>
    %cst_46 = arith.constant dense<0.000000e+00> : vector<8x8xf32>
    %153 = tpu.matmul %150, %151, %cst_46 {dimension_numbers = #tpu.dot_dimension_numbers<[1], [1], [0], [0], [0, 0, 1, 0], [], []>} : vector<8x16xf32>, vector<8x16xf32>, vector<8x8xf32> -> vector<8x8xf32>
    %154 = arith.addf %153, %3 : vector<8x8xf32>
    %cst_47 = arith.constant dense<0xFF800000> : vector<8xf32>
    %155 = vector.multi_reduction <maximumf>, %154, %cst_47 [1] : vector<8x8xf32> to vector<8xf32>
    %156 = vector.shape_cast %155 : vector<8xf32> to vector<8x1xf32>
    %157 = vector.broadcast %156 : vector<8x1xf32> to vector<8x8xf32>
    %158 = arith.subf %154, %157 : vector<8x8xf32>
    %159 = math.exp %158 : vector<8x8xf32>
    %cst_48 = arith.constant dense<0.000000e+00> : vector<8xf32>
    %160 = vector.multi_reduction <add>, %159, %cst_48 [1] : vector<8x8xf32> to vector<8xf32>
    %161 = vector.shape_cast %160 : vector<8xf32> to vector<8x1xf32>
    %162 = tpu.reciprocal %161 {approx = true} : vector<8x1xf32> -> vector<8x1xf32>
    %163 = arith.mulf %161, %162 : vector<8x1xf32>
    %cst_49 = arith.constant 2.000000e+00 : f32
    %164 = vector.broadcast %cst_49 : f32 to vector<8x1xf32>
    %165 = arith.subf %164, %163 : vector<8x1xf32>
    %166 = arith.mulf %162, %165 : vector<8x1xf32>
    %167 = vector.broadcast %166 : vector<8x1xf32> to vector<8x8xf32>
    %168 = arith.mulf %159, %167 : vector<8x8xf32>
    %cst_50 = arith.constant dense<0.000000e+00> : vector<8x16xf32>
    %169 = tpu.matmul %168, %152, %cst_50 {dimension_numbers = #tpu.dot_dimension_numbers<[1], [0], [0], [1], [0, 0, 1, 1], [], []>} : vector<8x8xf32>, vector<8x16xf32>, vector<8x16xf32> -> vector<8x16xf32>
    %170 = vector.extract_strided_slice %28 {offsets = [8, 48], sizes = [8, 16], strides = [1, 1]} : vector<16x128xf32> to vector<8x16xf32>
    %171 = vector.extract_strided_slice %28 {offsets = [8, 112], sizes = [8, 16], strides = [1, 1]} : vector<16x128xf32> to vector<8x16xf32>
    %172 = vector.extract_strided_slice %25 {offsets = [8, 48], sizes = [8, 16], strides = [1, 1]} : vector<16x64xf32> to vector<8x16xf32>
    %cst_51 = arith.constant dense<0.000000e+00> : vector<8x8xf32>
    %173 = tpu.matmul %170, %171, %cst_51 {dimension_numbers = #tpu.dot_dimension_numbers<[1], [1], [0], [0], [0, 0, 1, 0], [], []>} : vector<8x16xf32>, vector<8x16xf32>, vector<8x8xf32> -> vector<8x8xf32>
    %174 = arith.addf %173, %3 : vector<8x8xf32>
    %cst_52 = arith.constant dense<0xFF800000> : vector<8xf32>
    %175 = vector.multi_reduction <maximumf>, %174, %cst_52 [1] : vector<8x8xf32> to vector<8xf32>
    %176 = vector.shape_cast %175 : vector<8xf32> to vector<8x1xf32>
    %177 = vector.broadcast %176 : vector<8x1xf32> to vector<8x8xf32>
    %178 = arith.subf %174, %177 : vector<8x8xf32>
    %179 = math.exp %178 : vector<8x8xf32>
    %cst_53 = arith.constant dense<0.000000e+00> : vector<8xf32>
    %180 = vector.multi_reduction <add>, %179, %cst_53 [1] : vector<8x8xf32> to vector<8xf32>
    %181 = vector.shape_cast %180 : vector<8xf32> to vector<8x1xf32>
    %182 = tpu.reciprocal %181 {approx = true} : vector<8x1xf32> -> vector<8x1xf32>
    %183 = arith.mulf %181, %182 : vector<8x1xf32>
    %cst_54 = arith.constant 2.000000e+00 : f32
    %184 = vector.broadcast %cst_54 : f32 to vector<8x1xf32>
    %185 = arith.subf %184, %183 : vector<8x1xf32>
    %186 = arith.mulf %182, %185 : vector<8x1xf32>
    %187 = vector.broadcast %186 : vector<8x1xf32> to vector<8x8xf32>
    %188 = arith.mulf %179, %187 : vector<8x8xf32>
    %cst_55 = arith.constant dense<0.000000e+00> : vector<8x16xf32>
    %189 = tpu.matmul %188, %172, %cst_55 {dimension_numbers = #tpu.dot_dimension_numbers<[1], [0], [0], [1], [0, 0, 1, 1], [], []>} : vector<8x8xf32>, vector<8x16xf32>, vector<8x16xf32> -> vector<8x16xf32>
    %190 = tpu.concatenate %129, %149, %169, %189 in 1 : vector<8x16xf32>, vector<8x16xf32>, vector<8x16xf32>, vector<8x16xf32> -> vector<8x64xf32>
    %191 = tpu.concatenate %109, %190 in 0 : vector<8x64xf32>, vector<8x64xf32> -> vector<16x64xf32>
    %c0_56 = arith.constant 0 : index
    %c0_57 = arith.constant 0 : index
    %c0_58 = arith.constant 0 : index
    %192 = vector.load %arg3[%c0_56, %c0_57, %c0_58] : memref<2x64x64xf32, #tpu.memory_space<vmem>>, vector<1x64x64xf32>
    %193 = vector.shape_cast %192 : vector<1x64x64xf32> to vector<64x64xf32>
    %cst_59 = arith.constant dense<0.000000e+00> : vector<16x64xf32>
    %194 = tpu.matmul %191, %193, %cst_59 {dimension_numbers = #tpu.dot_dimension_numbers<[1], [0], [0], [1], [0, 0, 1, 1], [], []>} : vector<16x64xf32>, vector<64x64xf32>, vector<16x64xf32> -> vector<16x64xf32>
    %195 = arith.addf %0, %194 : vector<16x64xf32>
    %196 = arith.mulf %195, %195 : vector<16x64xf32>
    %cst_60 = arith.constant dense<0.000000e+00> : vector<16xf32>
    %197 = vector.multi_reduction <add>, %196, %cst_60 [1] : vector<16x64xf32> to vector<16xf32>
    %198 = vector.shape_cast %197 : vector<16xf32> to vector<16x1xf32>
    %cst_61 = arith.constant 6.400000e+01 : f32
    %199 = vector.broadcast %cst_61 : f32 to vector<16x1xf32>
    %200 = arith.divf %198, %199 : vector<16x1xf32>
    %cst_62 = arith.constant 9.99999997E-7 : f32
    %201 = vector.broadcast %cst_62 : f32 to vector<16x1xf32>
    %202 = arith.addf %200, %201 : vector<16x1xf32>
    %203 = math.rsqrt %202 : vector<16x1xf32>
    %204 = vector.broadcast %203 : vector<16x1xf32> to vector<16x64xf32>
    %205 = arith.mulf %195, %204 : vector<16x64xf32>
    %206 = vector.broadcast %7 : vector<1x64xf32> to vector<16x64xf32>
    %207 = arith.mulf %205, %206 : vector<16x64xf32>
    %c0_63 = arith.constant 0 : index
    %c0_64 = arith.constant 0 : index
    %c0_65 = arith.constant 0 : index
    %208 = vector.load %arg4[%c0_63, %c0_64, %c0_65] : memref<2x64x512xf32, #tpu.memory_space<vmem>>, vector<1x64x512xf32>
    %209 = vector.shape_cast %208 : vector<1x64x512xf32> to vector<64x512xf32>
    %cst_66 = arith.constant dense<0.000000e+00> : vector<16x512xf32>
    %210 = tpu.matmul %207, %209, %cst_66 {dimension_numbers = #tpu.dot_dimension_numbers<[1], [0], [0], [1], [0, 0, 1, 1], [], []>} : vector<16x64xf32>, vector<64x512xf32>, vector<16x512xf32> -> vector<16x512xf32>
    %211 = vector.extract_strided_slice %210 {offsets = [0, 0], sizes = [16, 256], strides = [1, 1]} : vector<16x512xf32> to vector<16x256xf32>
    %212 = vector.extract_strided_slice %210 {offsets = [0, 256], sizes = [16, 256], strides = [1, 1]} : vector<16x512xf32> to vector<16x256xf32>
    %213 = arith.negf %211 : vector<16x256xf32>
    %214 = math.exp %213 : vector<16x256xf32>
    %cst_67 = arith.constant 1.000000e+00 : f32
    %215 = vector.broadcast %cst_67 : f32 to vector<16x256xf32>
    %216 = arith.addf %215, %214 : vector<16x256xf32>
    %217 = arith.divf %215, %216 : vector<16x256xf32>
    %218 = arith.mulf %211, %217 : vector<16x256xf32>
    %219 = arith.mulf %218, %212 : vector<16x256xf32>
    %c0_68 = arith.constant 0 : index
    %c0_69 = arith.constant 0 : index
    %c0_70 = arith.constant 0 : index
    %220 = vector.load %arg5[%c0_68, %c0_69, %c0_70] : memref<2x256x64xf32, #tpu.memory_space<vmem>>, vector<1x256x64xf32>
    %221 = vector.shape_cast %220 : vector<1x256x64xf32> to vector<256x64xf32>
    %cst_71 = arith.constant dense<0.000000e+00> : vector<16x64xf32>
    %222 = tpu.matmul %219, %221, %cst_71 {dimension_numbers = #tpu.dot_dimension_numbers<[1], [0], [0], [1], [0, 0, 1, 1], [], []>} : vector<16x256xf32>, vector<256x64xf32>, vector<16x64xf32> -> vector<16x64xf32>
    %223 = arith.addf %195, %222 : vector<16x64xf32>
    %c1 = arith.constant 1 : index
    %c0_72 = arith.constant 0 : index
    %c0_73 = arith.constant 0 : index
    %224 = vector.load %arg1[%c1, %c0_72, %c0_73] : memref<2x2x64xf32, #tpu.memory_space<vmem>>, vector<1x2x64xf32>
    %225 = vector.shape_cast %224 : vector<1x2x64xf32> to vector<2x64xf32>
    %226 = vector.extract_strided_slice %225 {offsets = [0, 0], sizes = [1, 64], strides = [1, 1]} : vector<2x64xf32> to vector<1x64xf32>
    %227 = vector.extract_strided_slice %225 {offsets = [1, 0], sizes = [1, 64], strides = [1, 1]} : vector<2x64xf32> to vector<1x64xf32>
    %228 = arith.mulf %223, %223 : vector<16x64xf32>
    %cst_74 = arith.constant dense<0.000000e+00> : vector<16xf32>
    %229 = vector.multi_reduction <add>, %228, %cst_74 [1] : vector<16x64xf32> to vector<16xf32>
    %230 = vector.shape_cast %229 : vector<16xf32> to vector<16x1xf32>
    %cst_75 = arith.constant 6.400000e+01 : f32
    %231 = vector.broadcast %cst_75 : f32 to vector<16x1xf32>
    %232 = arith.divf %230, %231 : vector<16x1xf32>
    %cst_76 = arith.constant 9.99999997E-7 : f32
    %233 = vector.broadcast %cst_76 : f32 to vector<16x1xf32>
    %234 = arith.addf %232, %233 : vector<16x1xf32>
    %235 = math.rsqrt %234 : vector<16x1xf32>
    %236 = vector.broadcast %235 : vector<16x1xf32> to vector<16x64xf32>
    %237 = arith.mulf %223, %236 : vector<16x64xf32>
    %238 = vector.broadcast %226 : vector<1x64xf32> to vector<16x64xf32>
    %239 = arith.mulf %237, %238 : vector<16x64xf32>
    %c1_77 = arith.constant 1 : index
    %c0_78 = arith.constant 0 : index
    %c0_79 = arith.constant 0 : index
    %240 = vector.load %arg2[%c1_77, %c0_78, %c0_79] : memref<2x64x384xf32, #tpu.memory_space<vmem>>, vector<1x64x384xf32>
    %241 = vector.shape_cast %240 : vector<1x64x384xf32> to vector<64x384xf32>
    %cst_80 = arith.constant dense<0.000000e+00> : vector<16x384xf32>
    %242 = tpu.matmul %239, %241, %cst_80 {dimension_numbers = #tpu.dot_dimension_numbers<[1], [0], [0], [1], [0, 0, 1, 1], [], []>} : vector<16x64xf32>, vector<64x384xf32>, vector<16x384xf32> -> vector<16x384xf32>
    %243 = vector.extract_strided_slice %242 {offsets = [0, 0], sizes = [16, 128], strides = [1, 1]} : vector<16x384xf32> to vector<16x128xf32>
    %244 = vector.extract_strided_slice %242 {offsets = [0, 128], sizes = [16, 128], strides = [1, 1]} : vector<16x384xf32> to vector<16x128xf32>
    %245 = vector.extract_strided_slice %242 {offsets = [0, 256], sizes = [16, 64], strides = [1, 1]} : vector<16x384xf32> to vector<16x64xf32>
    %246 = arith.mulf %243, %1 : vector<16x128xf32>
    %247 = arith.mulf %244, %2 : vector<16x128xf32>
    %248 = arith.addf %246, %247 : vector<16x128xf32>
    %249 = vector.extract_strided_slice %248 {offsets = [0, 0], sizes = [8, 16], strides = [1, 1]} : vector<16x128xf32> to vector<8x16xf32>
    %250 = vector.extract_strided_slice %248 {offsets = [0, 64], sizes = [8, 16], strides = [1, 1]} : vector<16x128xf32> to vector<8x16xf32>
    %251 = vector.extract_strided_slice %245 {offsets = [0, 0], sizes = [8, 16], strides = [1, 1]} : vector<16x64xf32> to vector<8x16xf32>
    %cst_81 = arith.constant dense<0.000000e+00> : vector<8x8xf32>
    %252 = tpu.matmul %249, %250, %cst_81 {dimension_numbers = #tpu.dot_dimension_numbers<[1], [1], [0], [0], [0, 0, 1, 0], [], []>} : vector<8x16xf32>, vector<8x16xf32>, vector<8x8xf32> -> vector<8x8xf32>
    %253 = arith.addf %252, %3 : vector<8x8xf32>
    %cst_82 = arith.constant dense<0xFF800000> : vector<8xf32>
    %254 = vector.multi_reduction <maximumf>, %253, %cst_82 [1] : vector<8x8xf32> to vector<8xf32>
    %255 = vector.shape_cast %254 : vector<8xf32> to vector<8x1xf32>
    %256 = vector.broadcast %255 : vector<8x1xf32> to vector<8x8xf32>
    %257 = arith.subf %253, %256 : vector<8x8xf32>
    %258 = math.exp %257 : vector<8x8xf32>
    %cst_83 = arith.constant dense<0.000000e+00> : vector<8xf32>
    %259 = vector.multi_reduction <add>, %258, %cst_83 [1] : vector<8x8xf32> to vector<8xf32>
    %260 = vector.shape_cast %259 : vector<8xf32> to vector<8x1xf32>
    %261 = tpu.reciprocal %260 {approx = true} : vector<8x1xf32> -> vector<8x1xf32>
    %262 = arith.mulf %260, %261 : vector<8x1xf32>
    %cst_84 = arith.constant 2.000000e+00 : f32
    %263 = vector.broadcast %cst_84 : f32 to vector<8x1xf32>
    %264 = arith.subf %263, %262 : vector<8x1xf32>
    %265 = arith.mulf %261, %264 : vector<8x1xf32>
    %266 = vector.broadcast %265 : vector<8x1xf32> to vector<8x8xf32>
    %267 = arith.mulf %258, %266 : vector<8x8xf32>
    %cst_85 = arith.constant dense<0.000000e+00> : vector<8x16xf32>
    %268 = tpu.matmul %267, %251, %cst_85 {dimension_numbers = #tpu.dot_dimension_numbers<[1], [0], [0], [1], [0, 0, 1, 1], [], []>} : vector<8x8xf32>, vector<8x16xf32>, vector<8x16xf32> -> vector<8x16xf32>
    %269 = vector.extract_strided_slice %248 {offsets = [0, 16], sizes = [8, 16], strides = [1, 1]} : vector<16x128xf32> to vector<8x16xf32>
    %270 = vector.extract_strided_slice %248 {offsets = [0, 80], sizes = [8, 16], strides = [1, 1]} : vector<16x128xf32> to vector<8x16xf32>
    %271 = vector.extract_strided_slice %245 {offsets = [0, 16], sizes = [8, 16], strides = [1, 1]} : vector<16x64xf32> to vector<8x16xf32>
    %cst_86 = arith.constant dense<0.000000e+00> : vector<8x8xf32>
    %272 = tpu.matmul %269, %270, %cst_86 {dimension_numbers = #tpu.dot_dimension_numbers<[1], [1], [0], [0], [0, 0, 1, 0], [], []>} : vector<8x16xf32>, vector<8x16xf32>, vector<8x8xf32> -> vector<8x8xf32>
    %273 = arith.addf %272, %3 : vector<8x8xf32>
    %cst_87 = arith.constant dense<0xFF800000> : vector<8xf32>
    %274 = vector.multi_reduction <maximumf>, %273, %cst_87 [1] : vector<8x8xf32> to vector<8xf32>
    %275 = vector.shape_cast %274 : vector<8xf32> to vector<8x1xf32>
    %276 = vector.broadcast %275 : vector<8x1xf32> to vector<8x8xf32>
    %277 = arith.subf %273, %276 : vector<8x8xf32>
    %278 = math.exp %277 : vector<8x8xf32>
    %cst_88 = arith.constant dense<0.000000e+00> : vector<8xf32>
    %279 = vector.multi_reduction <add>, %278, %cst_88 [1] : vector<8x8xf32> to vector<8xf32>
    %280 = vector.shape_cast %279 : vector<8xf32> to vector<8x1xf32>
    %281 = tpu.reciprocal %280 {approx = true} : vector<8x1xf32> -> vector<8x1xf32>
    %282 = arith.mulf %280, %281 : vector<8x1xf32>
    %cst_89 = arith.constant 2.000000e+00 : f32
    %283 = vector.broadcast %cst_89 : f32 to vector<8x1xf32>
    %284 = arith.subf %283, %282 : vector<8x1xf32>
    %285 = arith.mulf %281, %284 : vector<8x1xf32>
    %286 = vector.broadcast %285 : vector<8x1xf32> to vector<8x8xf32>
    %287 = arith.mulf %278, %286 : vector<8x8xf32>
    %cst_90 = arith.constant dense<0.000000e+00> : vector<8x16xf32>
    %288 = tpu.matmul %287, %271, %cst_90 {dimension_numbers = #tpu.dot_dimension_numbers<[1], [0], [0], [1], [0, 0, 1, 1], [], []>} : vector<8x8xf32>, vector<8x16xf32>, vector<8x16xf32> -> vector<8x16xf32>
    %289 = vector.extract_strided_slice %248 {offsets = [0, 32], sizes = [8, 16], strides = [1, 1]} : vector<16x128xf32> to vector<8x16xf32>
    %290 = vector.extract_strided_slice %248 {offsets = [0, 96], sizes = [8, 16], strides = [1, 1]} : vector<16x128xf32> to vector<8x16xf32>
    %291 = vector.extract_strided_slice %245 {offsets = [0, 32], sizes = [8, 16], strides = [1, 1]} : vector<16x64xf32> to vector<8x16xf32>
    %cst_91 = arith.constant dense<0.000000e+00> : vector<8x8xf32>
    %292 = tpu.matmul %289, %290, %cst_91 {dimension_numbers = #tpu.dot_dimension_numbers<[1], [1], [0], [0], [0, 0, 1, 0], [], []>} : vector<8x16xf32>, vector<8x16xf32>, vector<8x8xf32> -> vector<8x8xf32>
    %293 = arith.addf %292, %3 : vector<8x8xf32>
    %cst_92 = arith.constant dense<0xFF800000> : vector<8xf32>
    %294 = vector.multi_reduction <maximumf>, %293, %cst_92 [1] : vector<8x8xf32> to vector<8xf32>
    %295 = vector.shape_cast %294 : vector<8xf32> to vector<8x1xf32>
    %296 = vector.broadcast %295 : vector<8x1xf32> to vector<8x8xf32>
    %297 = arith.subf %293, %296 : vector<8x8xf32>
    %298 = math.exp %297 : vector<8x8xf32>
    %cst_93 = arith.constant dense<0.000000e+00> : vector<8xf32>
    %299 = vector.multi_reduction <add>, %298, %cst_93 [1] : vector<8x8xf32> to vector<8xf32>
    %300 = vector.shape_cast %299 : vector<8xf32> to vector<8x1xf32>
    %301 = tpu.reciprocal %300 {approx = true} : vector<8x1xf32> -> vector<8x1xf32>
    %302 = arith.mulf %300, %301 : vector<8x1xf32>
    %cst_94 = arith.constant 2.000000e+00 : f32
    %303 = vector.broadcast %cst_94 : f32 to vector<8x1xf32>
    %304 = arith.subf %303, %302 : vector<8x1xf32>
    %305 = arith.mulf %301, %304 : vector<8x1xf32>
    %306 = vector.broadcast %305 : vector<8x1xf32> to vector<8x8xf32>
    %307 = arith.mulf %298, %306 : vector<8x8xf32>
    %cst_95 = arith.constant dense<0.000000e+00> : vector<8x16xf32>
    %308 = tpu.matmul %307, %291, %cst_95 {dimension_numbers = #tpu.dot_dimension_numbers<[1], [0], [0], [1], [0, 0, 1, 1], [], []>} : vector<8x8xf32>, vector<8x16xf32>, vector<8x16xf32> -> vector<8x16xf32>
    %309 = vector.extract_strided_slice %248 {offsets = [0, 48], sizes = [8, 16], strides = [1, 1]} : vector<16x128xf32> to vector<8x16xf32>
    %310 = vector.extract_strided_slice %248 {offsets = [0, 112], sizes = [8, 16], strides = [1, 1]} : vector<16x128xf32> to vector<8x16xf32>
    %311 = vector.extract_strided_slice %245 {offsets = [0, 48], sizes = [8, 16], strides = [1, 1]} : vector<16x64xf32> to vector<8x16xf32>
    %cst_96 = arith.constant dense<0.000000e+00> : vector<8x8xf32>
    %312 = tpu.matmul %309, %310, %cst_96 {dimension_numbers = #tpu.dot_dimension_numbers<[1], [1], [0], [0], [0, 0, 1, 0], [], []>} : vector<8x16xf32>, vector<8x16xf32>, vector<8x8xf32> -> vector<8x8xf32>
    %313 = arith.addf %312, %3 : vector<8x8xf32>
    %cst_97 = arith.constant dense<0xFF800000> : vector<8xf32>
    %314 = vector.multi_reduction <maximumf>, %313, %cst_97 [1] : vector<8x8xf32> to vector<8xf32>
    %315 = vector.shape_cast %314 : vector<8xf32> to vector<8x1xf32>
    %316 = vector.broadcast %315 : vector<8x1xf32> to vector<8x8xf32>
    %317 = arith.subf %313, %316 : vector<8x8xf32>
    %318 = math.exp %317 : vector<8x8xf32>
    %cst_98 = arith.constant dense<0.000000e+00> : vector<8xf32>
    %319 = vector.multi_reduction <add>, %318, %cst_98 [1] : vector<8x8xf32> to vector<8xf32>
    %320 = vector.shape_cast %319 : vector<8xf32> to vector<8x1xf32>
    %321 = tpu.reciprocal %320 {approx = true} : vector<8x1xf32> -> vector<8x1xf32>
    %322 = arith.mulf %320, %321 : vector<8x1xf32>
    %cst_99 = arith.constant 2.000000e+00 : f32
    %323 = vector.broadcast %cst_99 : f32 to vector<8x1xf32>
    %324 = arith.subf %323, %322 : vector<8x1xf32>
    %325 = arith.mulf %321, %324 : vector<8x1xf32>
    %326 = vector.broadcast %325 : vector<8x1xf32> to vector<8x8xf32>
    %327 = arith.mulf %318, %326 : vector<8x8xf32>
    %cst_100 = arith.constant dense<0.000000e+00> : vector<8x16xf32>
    %328 = tpu.matmul %327, %311, %cst_100 {dimension_numbers = #tpu.dot_dimension_numbers<[1], [0], [0], [1], [0, 0, 1, 1], [], []>} : vector<8x8xf32>, vector<8x16xf32>, vector<8x16xf32> -> vector<8x16xf32>
    %329 = tpu.concatenate %268, %288, %308, %328 in 1 : vector<8x16xf32>, vector<8x16xf32>, vector<8x16xf32>, vector<8x16xf32> -> vector<8x64xf32>
    %330 = vector.extract_strided_slice %248 {offsets = [8, 0], sizes = [8, 16], strides = [1, 1]} : vector<16x128xf32> to vector<8x16xf32>
    %331 = vector.extract_strided_slice %248 {offsets = [8, 64], sizes = [8, 16], strides = [1, 1]} : vector<16x128xf32> to vector<8x16xf32>
    %332 = vector.extract_strided_slice %245 {offsets = [8, 0], sizes = [8, 16], strides = [1, 1]} : vector<16x64xf32> to vector<8x16xf32>
    %cst_101 = arith.constant dense<0.000000e+00> : vector<8x8xf32>
    %333 = tpu.matmul %330, %331, %cst_101 {dimension_numbers = #tpu.dot_dimension_numbers<[1], [1], [0], [0], [0, 0, 1, 0], [], []>} : vector<8x16xf32>, vector<8x16xf32>, vector<8x8xf32> -> vector<8x8xf32>
    %334 = arith.addf %333, %3 : vector<8x8xf32>
    %cst_102 = arith.constant dense<0xFF800000> : vector<8xf32>
    %335 = vector.multi_reduction <maximumf>, %334, %cst_102 [1] : vector<8x8xf32> to vector<8xf32>
    %336 = vector.shape_cast %335 : vector<8xf32> to vector<8x1xf32>
    %337 = vector.broadcast %336 : vector<8x1xf32> to vector<8x8xf32>
    %338 = arith.subf %334, %337 : vector<8x8xf32>
    %339 = math.exp %338 : vector<8x8xf32>
    %cst_103 = arith.constant dense<0.000000e+00> : vector<8xf32>
    %340 = vector.multi_reduction <add>, %339, %cst_103 [1] : vector<8x8xf32> to vector<8xf32>
    %341 = vector.shape_cast %340 : vector<8xf32> to vector<8x1xf32>
    %342 = tpu.reciprocal %341 {approx = true} : vector<8x1xf32> -> vector<8x1xf32>
    %343 = arith.mulf %341, %342 : vector<8x1xf32>
    %cst_104 = arith.constant 2.000000e+00 : f32
    %344 = vector.broadcast %cst_104 : f32 to vector<8x1xf32>
    %345 = arith.subf %344, %343 : vector<8x1xf32>
    %346 = arith.mulf %342, %345 : vector<8x1xf32>
    %347 = vector.broadcast %346 : vector<8x1xf32> to vector<8x8xf32>
    %348 = arith.mulf %339, %347 : vector<8x8xf32>
    %cst_105 = arith.constant dense<0.000000e+00> : vector<8x16xf32>
    %349 = tpu.matmul %348, %332, %cst_105 {dimension_numbers = #tpu.dot_dimension_numbers<[1], [0], [0], [1], [0, 0, 1, 1], [], []>} : vector<8x8xf32>, vector<8x16xf32>, vector<8x16xf32> -> vector<8x16xf32>
    %350 = vector.extract_strided_slice %248 {offsets = [8, 16], sizes = [8, 16], strides = [1, 1]} : vector<16x128xf32> to vector<8x16xf32>
    %351 = vector.extract_strided_slice %248 {offsets = [8, 80], sizes = [8, 16], strides = [1, 1]} : vector<16x128xf32> to vector<8x16xf32>
    %352 = vector.extract_strided_slice %245 {offsets = [8, 16], sizes = [8, 16], strides = [1, 1]} : vector<16x64xf32> to vector<8x16xf32>
    %cst_106 = arith.constant dense<0.000000e+00> : vector<8x8xf32>
    %353 = tpu.matmul %350, %351, %cst_106 {dimension_numbers = #tpu.dot_dimension_numbers<[1], [1], [0], [0], [0, 0, 1, 0], [], []>} : vector<8x16xf32>, vector<8x16xf32>, vector<8x8xf32> -> vector<8x8xf32>
    %354 = arith.addf %353, %3 : vector<8x8xf32>
    %cst_107 = arith.constant dense<0xFF800000> : vector<8xf32>
    %355 = vector.multi_reduction <maximumf>, %354, %cst_107 [1] : vector<8x8xf32> to vector<8xf32>
    %356 = vector.shape_cast %355 : vector<8xf32> to vector<8x1xf32>
    %357 = vector.broadcast %356 : vector<8x1xf32> to vector<8x8xf32>
    %358 = arith.subf %354, %357 : vector<8x8xf32>
    %359 = math.exp %358 : vector<8x8xf32>
    %cst_108 = arith.constant dense<0.000000e+00> : vector<8xf32>
    %360 = vector.multi_reduction <add>, %359, %cst_108 [1] : vector<8x8xf32> to vector<8xf32>
    %361 = vector.shape_cast %360 : vector<8xf32> to vector<8x1xf32>
    %362 = tpu.reciprocal %361 {approx = true} : vector<8x1xf32> -> vector<8x1xf32>
    %363 = arith.mulf %361, %362 : vector<8x1xf32>
    %cst_109 = arith.constant 2.000000e+00 : f32
    %364 = vector.broadcast %cst_109 : f32 to vector<8x1xf32>
    %365 = arith.subf %364, %363 : vector<8x1xf32>
    %366 = arith.mulf %362, %365 : vector<8x1xf32>
    %367 = vector.broadcast %366 : vector<8x1xf32> to vector<8x8xf32>
    %368 = arith.mulf %359, %367 : vector<8x8xf32>
    %cst_110 = arith.constant dense<0.000000e+00> : vector<8x16xf32>
    %369 = tpu.matmul %368, %352, %cst_110 {dimension_numbers = #tpu.dot_dimension_numbers<[1], [0], [0], [1], [0, 0, 1, 1], [], []>} : vector<8x8xf32>, vector<8x16xf32>, vector<8x16xf32> -> vector<8x16xf32>
    %370 = vector.extract_strided_slice %248 {offsets = [8, 32], sizes = [8, 16], strides = [1, 1]} : vector<16x128xf32> to vector<8x16xf32>
    %371 = vector.extract_strided_slice %248 {offsets = [8, 96], sizes = [8, 16], strides = [1, 1]} : vector<16x128xf32> to vector<8x16xf32>
    %372 = vector.extract_strided_slice %245 {offsets = [8, 32], sizes = [8, 16], strides = [1, 1]} : vector<16x64xf32> to vector<8x16xf32>
    %cst_111 = arith.constant dense<0.000000e+00> : vector<8x8xf32>
    %373 = tpu.matmul %370, %371, %cst_111 {dimension_numbers = #tpu.dot_dimension_numbers<[1], [1], [0], [0], [0, 0, 1, 0], [], []>} : vector<8x16xf32>, vector<8x16xf32>, vector<8x8xf32> -> vector<8x8xf32>
    %374 = arith.addf %373, %3 : vector<8x8xf32>
    %cst_112 = arith.constant dense<0xFF800000> : vector<8xf32>
    %375 = vector.multi_reduction <maximumf>, %374, %cst_112 [1] : vector<8x8xf32> to vector<8xf32>
    %376 = vector.shape_cast %375 : vector<8xf32> to vector<8x1xf32>
    %377 = vector.broadcast %376 : vector<8x1xf32> to vector<8x8xf32>
    %378 = arith.subf %374, %377 : vector<8x8xf32>
    %379 = math.exp %378 : vector<8x8xf32>
    %cst_113 = arith.constant dense<0.000000e+00> : vector<8xf32>
    %380 = vector.multi_reduction <add>, %379, %cst_113 [1] : vector<8x8xf32> to vector<8xf32>
    %381 = vector.shape_cast %380 : vector<8xf32> to vector<8x1xf32>
    %382 = tpu.reciprocal %381 {approx = true} : vector<8x1xf32> -> vector<8x1xf32>
    %383 = arith.mulf %381, %382 : vector<8x1xf32>
    %cst_114 = arith.constant 2.000000e+00 : f32
    %384 = vector.broadcast %cst_114 : f32 to vector<8x1xf32>
    %385 = arith.subf %384, %383 : vector<8x1xf32>
    %386 = arith.mulf %382, %385 : vector<8x1xf32>
    %387 = vector.broadcast %386 : vector<8x1xf32> to vector<8x8xf32>
    %388 = arith.mulf %379, %387 : vector<8x8xf32>
    %cst_115 = arith.constant dense<0.000000e+00> : vector<8x16xf32>
    %389 = tpu.matmul %388, %372, %cst_115 {dimension_numbers = #tpu.dot_dimension_numbers<[1], [0], [0], [1], [0, 0, 1, 1], [], []>} : vector<8x8xf32>, vector<8x16xf32>, vector<8x16xf32> -> vector<8x16xf32>
    %390 = vector.extract_strided_slice %248 {offsets = [8, 48], sizes = [8, 16], strides = [1, 1]} : vector<16x128xf32> to vector<8x16xf32>
    %391 = vector.extract_strided_slice %248 {offsets = [8, 112], sizes = [8, 16], strides = [1, 1]} : vector<16x128xf32> to vector<8x16xf32>
    %392 = vector.extract_strided_slice %245 {offsets = [8, 48], sizes = [8, 16], strides = [1, 1]} : vector<16x64xf32> to vector<8x16xf32>
    %cst_116 = arith.constant dense<0.000000e+00> : vector<8x8xf32>
    %393 = tpu.matmul %390, %391, %cst_116 {dimension_numbers = #tpu.dot_dimension_numbers<[1], [1], [0], [0], [0, 0, 1, 0], [], []>} : vector<8x16xf32>, vector<8x16xf32>, vector<8x8xf32> -> vector<8x8xf32>
    %394 = arith.addf %393, %3 : vector<8x8xf32>
    %cst_117 = arith.constant dense<0xFF800000> : vector<8xf32>
    %395 = vector.multi_reduction <maximumf>, %394, %cst_117 [1] : vector<8x8xf32> to vector<8xf32>
    %396 = vector.shape_cast %395 : vector<8xf32> to vector<8x1xf32>
    %397 = vector.broadcast %396 : vector<8x1xf32> to vector<8x8xf32>
    %398 = arith.subf %394, %397 : vector<8x8xf32>
    %399 = math.exp %398 : vector<8x8xf32>
    %cst_118 = arith.constant dense<0.000000e+00> : vector<8xf32>
    %400 = vector.multi_reduction <add>, %399, %cst_118 [1] : vector<8x8xf32> to vector<8xf32>
    %401 = vector.shape_cast %400 : vector<8xf32> to vector<8x1xf32>
    %402 = tpu.reciprocal %401 {approx = true} : vector<8x1xf32> -> vector<8x1xf32>
    %403 = arith.mulf %401, %402 : vector<8x1xf32>
    %cst_119 = arith.constant 2.000000e+00 : f32
    %404 = vector.broadcast %cst_119 : f32 to vector<8x1xf32>
    %405 = arith.subf %404, %403 : vector<8x1xf32>
    %406 = arith.mulf %402, %405 : vector<8x1xf32>
    %407 = vector.broadcast %406 : vector<8x1xf32> to vector<8x8xf32>
    %408 = arith.mulf %399, %407 : vector<8x8xf32>
    %cst_120 = arith.constant dense<0.000000e+00> : vector<8x16xf32>
    %409 = tpu.matmul %408, %392, %cst_120 {dimension_numbers = #tpu.dot_dimension_numbers<[1], [0], [0], [1], [0, 0, 1, 1], [], []>} : vector<8x8xf32>, vector<8x16xf32>, vector<8x16xf32> -> vector<8x16xf32>
    %410 = tpu.concatenate %349, %369, %389, %409 in 1 : vector<8x16xf32>, vector<8x16xf32>, vector<8x16xf32>, vector<8x16xf32> -> vector<8x64xf32>
    %411 = tpu.concatenate %329, %410 in 0 : vector<8x64xf32>, vector<8x64xf32> -> vector<16x64xf32>
    %c1_121 = arith.constant 1 : index
    %c0_122 = arith.constant 0 : index
    %c0_123 = arith.constant 0 : index
    %412 = vector.load %arg3[%c1_121, %c0_122, %c0_123] : memref<2x64x64xf32, #tpu.memory_space<vmem>>, vector<1x64x64xf32>
    %413 = vector.shape_cast %412 : vector<1x64x64xf32> to vector<64x64xf32>
    %cst_124 = arith.constant dense<0.000000e+00> : vector<16x64xf32>
    %414 = tpu.matmul %411, %413, %cst_124 {dimension_numbers = #tpu.dot_dimension_numbers<[1], [0], [0], [1], [0, 0, 1, 1], [], []>} : vector<16x64xf32>, vector<64x64xf32>, vector<16x64xf32> -> vector<16x64xf32>
    %415 = arith.addf %223, %414 : vector<16x64xf32>
    %416 = arith.mulf %415, %415 : vector<16x64xf32>
    %cst_125 = arith.constant dense<0.000000e+00> : vector<16xf32>
    %417 = vector.multi_reduction <add>, %416, %cst_125 [1] : vector<16x64xf32> to vector<16xf32>
    %418 = vector.shape_cast %417 : vector<16xf32> to vector<16x1xf32>
    %cst_126 = arith.constant 6.400000e+01 : f32
    %419 = vector.broadcast %cst_126 : f32 to vector<16x1xf32>
    %420 = arith.divf %418, %419 : vector<16x1xf32>
    %cst_127 = arith.constant 9.99999997E-7 : f32
    %421 = vector.broadcast %cst_127 : f32 to vector<16x1xf32>
    %422 = arith.addf %420, %421 : vector<16x1xf32>
    %423 = math.rsqrt %422 : vector<16x1xf32>
    %424 = vector.broadcast %423 : vector<16x1xf32> to vector<16x64xf32>
    %425 = arith.mulf %415, %424 : vector<16x64xf32>
    %426 = vector.broadcast %227 : vector<1x64xf32> to vector<16x64xf32>
    %427 = arith.mulf %425, %426 : vector<16x64xf32>
    %c1_128 = arith.constant 1 : index
    %c0_129 = arith.constant 0 : index
    %c0_130 = arith.constant 0 : index
    %428 = vector.load %arg4[%c1_128, %c0_129, %c0_130] : memref<2x64x512xf32, #tpu.memory_space<vmem>>, vector<1x64x512xf32>
    %429 = vector.shape_cast %428 : vector<1x64x512xf32> to vector<64x512xf32>
    %cst_131 = arith.constant dense<0.000000e+00> : vector<16x512xf32>
    %430 = tpu.matmul %427, %429, %cst_131 {dimension_numbers = #tpu.dot_dimension_numbers<[1], [0], [0], [1], [0, 0, 1, 1], [], []>} : vector<16x64xf32>, vector<64x512xf32>, vector<16x512xf32> -> vector<16x512xf32>
    %431 = vector.extract_strided_slice %430 {offsets = [0, 0], sizes = [16, 256], strides = [1, 1]} : vector<16x512xf32> to vector<16x256xf32>
    %432 = vector.extract_strided_slice %430 {offsets = [0, 256], sizes = [16, 256], strides = [1, 1]} : vector<16x512xf32> to vector<16x256xf32>
    %433 = arith.negf %431 : vector<16x256xf32>
    %434 = math.exp %433 : vector<16x256xf32>
    %cst_132 = arith.constant 1.000000e+00 : f32
    %435 = vector.broadcast %cst_132 : f32 to vector<16x256xf32>
    %436 = arith.addf %435, %434 : vector<16x256xf32>
    %437 = arith.divf %435, %436 : vector<16x256xf32>
    %438 = arith.mulf %431, %437 : vector<16x256xf32>
    %439 = arith.mulf %438, %432 : vector<16x256xf32>
    %c1_133 = arith.constant 1 : index
    %c0_134 = arith.constant 0 : index
    %c0_135 = arith.constant 0 : index
    %440 = vector.load %arg5[%c1_133, %c0_134, %c0_135] : memref<2x256x64xf32, #tpu.memory_space<vmem>>, vector<1x256x64xf32>
    %441 = vector.shape_cast %440 : vector<1x256x64xf32> to vector<256x64xf32>
    %cst_136 = arith.constant dense<0.000000e+00> : vector<16x64xf32>
    %442 = tpu.matmul %439, %441, %cst_136 {dimension_numbers = #tpu.dot_dimension_numbers<[1], [0], [0], [1], [0, 0, 1, 1], [], []>} : vector<16x256xf32>, vector<256x64xf32>, vector<16x64xf32> -> vector<16x64xf32>
    %443 = arith.addf %415, %442 : vector<16x64xf32>
    %444 = arith.mulf %443, %443 : vector<16x64xf32>
    %cst_137 = arith.constant dense<0.000000e+00> : vector<16xf32>
    %445 = vector.multi_reduction <add>, %444, %cst_137 [1] : vector<16x64xf32> to vector<16xf32>
    %446 = vector.shape_cast %445 : vector<16xf32> to vector<16x1xf32>
    %cst_138 = arith.constant 6.400000e+01 : f32
    %447 = vector.broadcast %cst_138 : f32 to vector<16x1xf32>
    %448 = arith.divf %446, %447 : vector<16x1xf32>
    %cst_139 = arith.constant 9.99999997E-7 : f32
    %449 = vector.broadcast %cst_139 : f32 to vector<16x1xf32>
    %450 = arith.addf %448, %449 : vector<16x1xf32>
    %451 = math.rsqrt %450 : vector<16x1xf32>
    %452 = vector.broadcast %451 : vector<16x1xf32> to vector<16x64xf32>
    %453 = arith.mulf %443, %452 : vector<16x64xf32>
    %c0_140 = arith.constant 0 : index
    %c0_141 = arith.constant 0 : index
    %454 = vector.load %arg9[%c0_140, %c0_141] : memref<1x64xf32, #tpu.memory_space<vmem>>, vector<1x64xf32>
    %455 = vector.broadcast %454 : vector<1x64xf32> to vector<16x64xf32>
    %456 = arith.mulf %453, %455 : vector<16x64xf32>
    %c0_142 = arith.constant 0 : index
    %c0_143 = arith.constant 0 : index
    %457 = vector.load %arg10[%c0_142, %c0_143] : memref<64x256xf32, #tpu.memory_space<vmem>>, vector<64x256xf32>
    %cst_144 = arith.constant dense<0.000000e+00> : vector<16x256xf32>
    %458 = tpu.matmul %456, %457, %cst_144 {dimension_numbers = #tpu.dot_dimension_numbers<[1], [0], [0], [1], [0, 0, 1, 1], [], []>} : vector<16x64xf32>, vector<64x256xf32>, vector<16x256xf32> -> vector<16x256xf32>
    %c0_145 = arith.constant 0 : index
    %c0_146 = arith.constant 0 : index
    %459 = vector.load %arg11[%c0_145, %c0_146] : memref<16x256xf32, #tpu.memory_space<vmem>>, vector<16x256xf32>
    tpu.vector_store %arg11[%c0_145, %c0_146], %458 {strides = array<i32>} : memref<16x256xf32, #tpu.memory_space<vmem>>, vector<16x256xf32>,
    return
  }
}

</mosaic_0001>

<llo_original>
// kernel: transformer_forward.1
$region0: #{transformer_forward.1}
  #allocation0 [shape = 'u32[]', space=smem, size = 0x4, offset = 0x4, fixed_abs, tag = 'smem constant byte address 0x4 - core index']
  #allocation1 [shape = 'u32[72,128]{1,0:T(1,128)}', space=vmem, size = 0x9000, scoped, tag = 'internal scratch']
  %s0 = inlined_call_operand.vmem [shape: f32[16,64], index: 0, kind: input, shape index: {}]
  %s1 = inlined_call_operand.vmem [shape: f32[2,2,64], index: 1, kind: input, shape index: {}]
  %s2 = inlined_call_operand.vmem [shape: f32[2,64,384], index: 2, kind: input, shape index: {}]
  %s3 = inlined_call_operand.vmem [shape: f32[2,64,64], index: 3, kind: input, shape index: {}]
  %s4 = inlined_call_operand.vmem [shape: f32[2,64,512], index: 4, kind: input, shape index: {}]
  %s5 = inlined_call_operand.vmem [shape: f32[2,256,64], index: 5, kind: input, shape index: {}]
  %s6 = inlined_call_operand.vmem [shape: f32[16,128], index: 6, kind: input, shape index: {}]
  %s7 = inlined_call_operand.vmem [shape: f32[16,128], index: 7, kind: input, shape index: {}]
  %s8 = inlined_call_operand.vmem [shape: f32[8,8], index: 8, kind: input, shape index: {}]
  %s9 = inlined_call_operand.vmem [shape: f32[1,64], index: 9, kind: input, shape index: {}]
  %s10 = inlined_call_operand.hbm [shape: f32[64,256], index: 10, kind: input, shape index: {}]
  %s11 = inlined_call_operand.hbm [shape: f32[16,256], index: 11, kind: output, shape index: {}]
  %s12 = sld [smem:[#allocation0]]
  $region58: #{transformer_forward.1} parent=0
    _
  %s14 = ssub.s32 1, %s12
  %s15 = scalar_select 0, %s14, %s12
  $region1: #{transformer_forward.1} parent=0
    #allocation2 [shape = 'u8[65536]{0}', space=vmem, size = 0x10000, scoped, tag = 'input window, operand 10, single buffered']
    #allocation3 [shape = 's32[1]{0}', space=sflag, size = 0x4, scoped, tag = 'scoped memory for transformer_forward.1']
    #allocation4 [shape = 's32[1]{0}', space=sflag, size = 0x4, scoped, tag = 'scoped memory for transformer_forward.1']
    #allocation5 [shape = 'u8[16384]{0}', space=vmem, size = 0x4000, scoped, tag = 'output window, operand 0, single buffered']
    %16 = vsyncpa [#allocation3], 0
    %17 = vsyncpa [#allocation4], 0
    // Predicated region
    $region2: #{transformer_forward.1} parent=1 // pred_check
      _
    $region3: #{transformer_forward.1} parent=1 // pred_check_branch
      %19 = sbr.rel (0) target = $region5
    $region4: #{transformer_forward.1} parent=1 // pred_region
      _
    $region5: #{transformer_forward.1} parent=1 // pred_fallthru
      _
    // Predicated region
    $region6: #{transformer_forward.1} parent=1 // pred_check
      _
    $region7: #{transformer_forward.1} parent=1 // pred_check_branch
      %21 = sbr.rel (0) target = $region9
    $region8: #{transformer_forward.1} parent=1 // pred_region
      _
    $region9: #{transformer_forward.1} parent=1 // pred_fallthru
      _
    // Predicated region
    $region10: #{transformer_forward.1} parent=1 // pred_check
      _
    $region11: #{transformer_forward.1} parent=1 // pred_check_branch
      %23 = sbr.rel (0) target = $region13
    $region12: #{transformer_forward.1} parent=1 // pred_region
      _
    $region13: #{transformer_forward.1} parent=1 // pred_fallthru
      _
    // Predicated region
    $region14: #{transformer_forward.1} parent=1 // pred_check
      _
    $region15: #{transformer_forward.1} parent=1 // pred_check_branch
      %25 = sbr.rel (0) target = $region17
    $region16: #{transformer_forward.1} parent=1 // pred_region
      _
    $region17: #{transformer_forward.1} parent=1 // pred_fallthru
      _
    // Predicated region
    $region18: #{transformer_forward.1} parent=1 // pred_check
      _
    $region19: #{transformer_forward.1} parent=1 // pred_check_branch
      %27 = sbr.rel (0) target = $region21
    $region20: #{transformer_forward.1} parent=1 // pred_region
      _
    $region21: #{transformer_forward.1} parent=1 // pred_fallthru
      _
    // Predicated region
    $region22: #{transformer_forward.1} parent=1 // pred_check
      _
    $region23: #{transformer_forward.1} parent=1 // pred_check_branch
      %29 = sbr.rel (0) target = $region25
    $region24: #{transformer_forward.1} parent=1 // pred_region
      _
    $region25: #{transformer_forward.1} parent=1 // pred_fallthru
      _
    // Predicated region
    $region26: #{transformer_forward.1} parent=1 // pred_check
      _
    $region27: #{transformer_forward.1} parent=1 // pred_check_branch
      %31 = sbr.rel (0) target = $region29
    $region28: #{transformer_forward.1} parent=1 // pred_region
      _
    $region29: #{transformer_forward.1} parent=1 // pred_fallthru
      _
    // Predicated region
    $region30: #{transformer_forward.1} parent=1 // pred_check
      _
    $region31: #{transformer_forward.1} parent=1 // pred_check_branch
      %33 = sbr.rel (0) target = $region33
    $region32: #{transformer_forward.1} parent=1 // pred_region
      _
    $region33: #{transformer_forward.1} parent=1 // pred_fallthru
      _
    // Predicated region
    $region34: #{transformer_forward.1} parent=1 // pred_check
      _
    $region35: #{transformer_forward.1} parent=1 // pred_check_branch
      %35 = sbr.rel (0) target = $region37
    $region36: #{transformer_forward.1} parent=1 // pred_region
      _
    $region37: #{transformer_forward.1} parent=1 // pred_fallthru
      _
    // Predicated region
    $region38: #{transformer_forward.1} parent=1 // pred_check
      _
    $region39: #{transformer_forward.1} parent=1 // pred_check_branch
      %37 = sbr.rel (0) target = $region41
    $region40: #{transformer_forward.1} parent=1 // pred_region
      _
    $region41: #{transformer_forward.1} parent=1 // pred_fallthru
      _
    // Predicated region
    $region42: #{transformer_forward.1} parent=1 // pred_check
      _
    $region43: #{transformer_forward.1} parent=1 // pred_check_branch
      %39 = sbr.rel (0) target = $region45
    $region44: #{transformer_forward.1} parent=1 // pred_region
      %41 = vsyncadd [#allocation3], 0
      %s42 = sshll.u32 %s10, 4
      %s43 = int_to_ptr.hbm [resolvable:$true] %s42
      %s44 = sshll.u32 [#allocation2], 4
      %s45 = int_to_ptr.vmem [resolvable:$true] %s44
      %50 = dma.hbm_to_vmem [thread:$0]  %s43, 2048, %s45, [#allocation3], 256, 256, 16
    $region45: #{transformer_forward.1} parent=1 // pred_fallthru
      _
    // Predicated region
    $region46: #{transformer_forward.1} parent=1 // pred_check
      _
    $region47: #{transformer_forward.1} parent=1 // pred_check_branch
      %52 = sbr.rel (0) target = $region49
    $region48: #{transformer_forward.1} parent=1 // pred_region
      %54 = dma.done [#allocation3], 2048
    $region49: #{transformer_forward.1} parent=1 // pred_fallthru
      _
    %v55 = vld [vmem:[%s0] sm:$0xff]
    %v56 = vld [vmem:[%s0 + $0x8] sm:$0xff]
    %v57 = vld [vmem:[%s6] sm:$0xff]
    %v58 = vld [vmem:[%s6 + $0x8] sm:$0xff]
    %v59 = vld [vmem:[%s7] sm:$0xff]
    %v60 = vld [vmem:[%s7 + $0x8] sm:$0xff]
    %v61 = vld [vmem:[%s8] sm:$0xff]
    %v62 = vld [vmem:[%s1] sm:$0x3]
    %v63 = vmul.f32 %v55, %v55
    %v64 = vmul.f32 %v56, %v56
    %vm65 = vcmask 523264
    %v66 = vsel %vm65, %v63, 0.0
    %67 = vadd.xlane.f32.xlu0 %v66
    %v68 = vpop.xlane.xlu0 %67
    %v69 = vsel %vm65, %v64, 0.0
    %70 = vadd.xlane.f32.xlu0 %v69
    %v71 = vpop.xlane.xlu0 %70
    %v72 = vrcp.pop 64.0
    %v73 = vmul.f32 64.0, %v72
    %v74 = vsub.f32 1.0, %v73
    %v75 = vmul.f32 %v72, %v74
    %v76 = vadd.f32 %v72, %v75
    %vm77 = vweird.f32 %v72
    %v78 = vsel %vm77, %v72, %v76
    %v79 = vmul.f32 %v68, %v78
    %v80 = vmul.f32 %v71, %v78
    %v81 = vadd.f32 %v79, 1e-06
    %v82 = vadd.f32 %v80, 1e-06
    %v83 = vrsqrt.pop %v81
    %v84 = vmul.f32 %v83, %v81
    %v85 = vmul.f32 %v84, %v83
    %v86 = vmul.f32 0.5, %v85
    %v87 = vsub.f32 1.5, %v86
    %v88 = vmul.f32 %v83, %v87
    %vm89 = vweird.f32 %v81
    %vm90 = vweird.f32 %v83
    %vm91 = vmor %vm89, %vm90
    %v92 = vsel %vm91, %v83, %v88
    %v93 = vrsqrt.pop %v82
    %v94 = vmul.f32 %v93, %v82
    %v95 = vmul.f32 %v94, %v93
    %v96 = vmul.f32 0.5, %v95
    %v97 = vsub.f32 1.5, %v96
    %v98 = vmul.f32 %v93, %v97
    %vm99 = vweird.f32 %v82
    %vm100 = vweird.f32 %v93
    %vm101 = vmor %vm99, %vm100
    %v102 = vsel %vm101, %v93, %v98
    %v103 = vmul.f32 %v55, %v92
    %v104 = vmul.f32 %v56, %v102
    %v105 = vperm.slane %v62, 0
    %v106 = vmul.f32 %v103, %v105
    %v107 = vmul.f32 %v104, %v105
    %v108 = vld [vmem:[%s2] sm:$0xff]
    %v109 = vld [vmem:[%s2 + $0x8] sm:$0xff]
    %v110 = vld [vmem:[%s2 + $0x10] sm:$0xff]
    %v111 = vld [vmem:[%s2 + $0x18] sm:$0xff]
    %v112 = vld [vmem:[%s2 + $0x20] sm:$0xff]
    %v113 = vld [vmem:[%s2 + $0x28] sm:$0xff]
    %v114 = vld [vmem:[%s2 + $0x30] sm:$0xff]
    %v115 = vld [vmem:[%s2 + $0x38] sm:$0xff]
    %v116 = vld [vmem:[%s2 + $0x40] sm:$0xff]
    %v117 = vld [vmem:[%s2 + $0x48] sm:$0xff]
    %v118 = vld [vmem:[%s2 + $0x50] sm:$0xff]
    %v119 = vld [vmem:[%s2 + $0x58] sm:$0xff]
    %v120 = vld [vmem:[%s2 + $0x60] sm:$0xff]
    %v121 = vld [vmem:[%s2 + $0x68] sm:$0xff]
    %v122 = vld [vmem:[%s2 + $0x70] sm:$0xff]
    %v123 = vld [vmem:[%s2 + $0x78] sm:$0xff]
    %v124 = vld [vmem:[%s2 + $0x80] sm:$0xff]
    %v125 = vld [vmem:[%s2 + $0x88] sm:$0xff]
    %v126 = vld [vmem:[%s2 + $0x90] sm:$0xff]
    %v127 = vld [vmem:[%s2 + $0x98] sm:$0xff]
    %v128 = vld [vmem:[%s2 + $0xa0] sm:$0xff]
    %v129 = vld [vmem:[%s2 + $0xa8] sm:$0xff]
    %v130 = vld [vmem:[%s2 + $0xb0] sm:$0xff]
    %v131 = vld [vmem:[%s2 + $0xb8] sm:$0xff]
    %v133 = vsel %vm65, %v106, 0
    %v136 = vsel %vm65, %v107, 0
    %138 = vmatpush.msra.mxu0 0.0
    %139 = vmatpush.msra.mxu0 0.0
    %140 = vmatpush.msra.mxu0 0.0
    %141 = vmatpush.msra.mxu0 0.0
    %142 = vmatpush.msra.mxu0 0.0
    %143 = vmatpush.msra.mxu0 0.0
    %144 = vmatpush.msra.mxu0 0.0
    %145 = vmatpush.msra.mxu0 0.0
    %146 = vmatpush.msra.mxu0 %v129
    %147 = vmatpush.msra.mxu0 %v126
    %148 = vmatpush.msra.mxu0 %v123
    %149 = vmatpush.msra.mxu0 %v120
    %150 = vmatpush.msra.mxu0 %v117
    %151 = vmatpush.msra.mxu0 %v114
    %152 = vmatpush.msra.mxu0 %v111
    %153 = vmatpush.msra.mxu0 %v108
    %154 = vmatmul.f32.gmra.mxu0 %v133
    %v155 = vpop.f32.mrf.mxu0
    %v156 = vadd.f32 0.0, %v155
    %157 = vmatmul.f32.gmra.mxu0 %v136
    %v158 = vpop.f32.mrf.mxu0
    %v159 = vadd.f32 0.0, %v158
    %160 = vdwg.mxu0
    %161 = vmatpush.msra.mxu0 0.0
    %162 = vmatpush.msra.mxu0 0.0
    %163 = vmatpush.msra.mxu0 0.0
    %164 = vmatpush.msra.mxu0 0.0
    %165 = vmatpush.msra.mxu0 0.0
    %166 = vmatpush.msra.mxu0 0.0
    %167 = vmatpush.msra.mxu0 0.0
    %168 = vmatpush.msra.mxu0 0.0
    %169 = vmatpush.msra.mxu0 %v130
    %170 = vmatpush.msra.mxu0 %v127
    %171 = vmatpush.msra.mxu0 %v124
    %172 = vmatpush.msra.mxu0 %v121
    %173 = vmatpush.msra.mxu0 %v118
    %174 = vmatpush.msra.mxu0 %v115
    %175 = vmatpush.msra.mxu0 %v112
    %176 = vmatpush.msra.mxu0 %v109
    %177 = vmatmul.f32.gmra.mxu0 %v133
    %v178 = vpop.f32.mrf.mxu0
    %v179 = vadd.f32 0.0, %v178
    %180 = vmatmul.f32.gmra.mxu0 %v136
    %v181 = vpop.f32.mrf.mxu0
    %v182 = vadd.f32 0.0, %v181
    %183 = vdwg.mxu0
    %184 = vmatpush.msra.mxu0 0.0
    %185 = vmatpush.msra.mxu0 0.0
    %186 = vmatpush.msra.mxu0 0.0
    %187 = vmatpush.msra.mxu0 0.0
    %188 = vmatpush.msra.mxu0 0.0
    %189 = vmatpush.msra.mxu0 0.0
    %190 = vmatpush.msra.mxu0 0.0
    %191 = vmatpush.msra.mxu0 0.0
    %192 = vmatpush.msra.mxu0 %v131
    %193 = vmatpush.msra.mxu0 %v128
    %194 = vmatpush.msra.mxu0 %v125
    %195 = vmatpush.msra.mxu0 %v122
    %196 = vmatpush.msra.mxu0 %v119
    %197 = vmatpush.msra.mxu0 %v116
    %198 = vmatpush.msra.mxu0 %v113
    %199 = vmatpush.msra.mxu0 %v110
    %200 = vmatmul.f32.gmra.mxu0 %v133
    %v201 = vpop.f32.mrf.mxu0
    %v202 = vadd.f32 0.0, %v201
    %203 = vmatmul.f32.gmra.mxu0 %v136
    %v204 = vpop.f32.mrf.mxu0
    %v205 = vadd.f32 0.0, %v204
    %206 = vdwg.mxu0
    %v207 = vmul.f32 %v156, %v57
    %v208 = vmul.f32 %v159, %v58
    %v209 = vmul.f32 %v179, %v59
    %v210 = vmul.f32 %v182, %v60
    %v211 = vadd.f32 %v207, %v209
    %v212 = vadd.f32 %v208, %v210
    %214 = vrot.lane.b32.xlu0 %v211, 64
    %v215 = vpop.permute.xlu0 %214
    %vm216 = vcmask 130048
    %v217 = vsel %vm216, %v211, 0
    %v219 = vsel %vm216, %v215, 0
    %221 = vmatpush.xpose.msra.mxu0 0.0
    %222 = vmatpush.xpose.msra.mxu0 0.0
    %223 = vmatpush.xpose.msra.mxu0 0.0
    %224 = vmatpush.xpose.msra.mxu0 0.0
    %225 = vmatpush.xpose.msra.mxu0 0.0
    %226 = vmatpush.xpose.msra.mxu0 0.0
    %227 = vmatpush.xpose.msra.mxu0 0.0
    %228 = vmatpush.xpose.msra.mxu0 0.0
    %229 = vmatpush.xpose.msra.mxu0 0.0
    %230 = vmatpush.xpose.msra.mxu0 0.0
    %231 = vmatpush.xpose.msra.mxu0 0.0
    %232 = vmatpush.xpose.msra.mxu0 0.0
    %233 = vmatpush.xpose.msra.mxu0 0.0
    %234 = vmatpush.xpose.msra.mxu0 0.0
    %235 = vmatpush.xpose.msra.mxu0 0.0
    %236 = vmatpush.xpose.msra.mxu0 %v219
    %237 = vmatmul.f32.gmra.mxu0 %v217
    %v238 = vpop.f32.mrf.mxu0
    %v239 = vadd.f32 %v61, %v238
    %240 = vdwg.mxu0
    %vm241 = vcmask 64512
    %v242 = vsel %vm241, %v239, -inf
    %243 = vmax.xlane.f32.xlu0 %v242
    %v244 = vpop.xlane.xlu0 %243
    %v245 = vsub.f32 %v239, %v244
    %v246 = vmul.f32 %v245, 1.442695
    %v247 = vpow.pop %v246
    %v248 = vsel %vm241, %v247, 0.0
    %249 = vadd.xlane.f32.xlu0 %v248
    %v250 = vpop.xlane.xlu0 %249
    %v251 = vrcp.pop %v250
    %v252 = vmul.f32 %v250, %v251
    %v253 = vsub.f32 2.0, %v252
    %v254 = vmul.f32 %v251, %v253
    %v255 = vmul.f32 %v247, %v254
    %v257 = vsel %vm241, %v255, 0
    %259 = vmatpush.msra.mxu0 0.0
    %260 = vmatpush.msra.mxu0 0.0
    %261 = vmatpush.msra.mxu0 0.0
    %262 = vmatpush.msra.mxu0 0.0
    %263 = vmatpush.msra.mxu0 0.0
    %264 = vmatpush.msra.mxu0 0.0
    %265 = vmatpush.msra.mxu0 0.0
    %266 = vmatpush.msra.mxu0 0.0
    %267 = vmatpush.msra.mxu0 0.0
    %268 = vmatpush.msra.mxu0 0.0
    %269 = vmatpush.msra.mxu0 0.0
    %270 = vmatpush.msra.mxu0 0.0
    %271 = vmatpush.msra.mxu0 0.0
    %272 = vmatpush.msra.mxu0 0.0
    %273 = vmatpush.msra.mxu0 0.0
    %274 = vmatpush.msra.mxu0 %v202
    %275 = vmatmul.f32.gmra.mxu0 %v257
    %v276 = vpop.f32.mrf.mxu0
    %v277 = vadd.f32 0.0, %v276
    %278 = vdwg.mxu0
    %279 = vrot.lane.b32.xlu0 %v211, 112
    %v280 = vpop.permute.xlu0 %279
    %281 = vrot.lane.b32.xlu0 %v211, 48
    %v282 = vpop.permute.xlu0 %281
    %v283 = vsel %vm216, %v280, 0
    %v285 = vsel %vm216, %v282, 0
    %287 = vmatpush.xpose.msra.mxu0 0.0
    %288 = vmatpush.xpose.msra.mxu0 0.0
    %289 = vmatpush.xpose.msra.mxu0 0.0
    %290 = vmatpush.xpose.msra.mxu0 0.0
    %291 = vmatpush.xpose.msra.mxu0 0.0
    %292 = vmatpush.xpose.msra.mxu0 0.0
    %293 = vmatpush.xpose.msra.mxu0 0.0
    %294 = vmatpush.xpose.msra.mxu0 0.0
    %295 = vmatpush.xpose.msra.mxu0 0.0
    %296 = vmatpush.xpose.msra.mxu0 0.0
    %297 = vmatpush.xpose.msra.mxu0 0.0
    %298 = vmatpush.xpose.msra.mxu0 0.0
    %299 = vmatpush.xpose.msra.mxu0 0.0
    %300 = vmatpush.xpose.msra.mxu0 0.0
    %301 = vmatpush.xpose.msra.mxu0 0.0
    %302 = vmatpush.xpose.msra.mxu0 %v285
    %303 = vmatmul.f32.gmra.mxu0 %v283
    %v304 = vpop.f32.mrf.mxu0
    %v305 = vadd.f32 %v61, %v304
    %306 = vdwg.mxu0
    %v307 = vsel %vm241, %v305, -inf
    %308 = vmax.xlane.f32.xlu0 %v307
    %v309 = vpop.xlane.xlu0 %308
    %v310 = vsub.f32 %v305, %v309
    %v311 = vmul.f32 %v310, 1.442695
    %v312 = vpow.pop %v311
    %v313 = vsel %vm241, %v312, 0.0
    %314 = vadd.xlane.f32.xlu0 %v313
    %v315 = vpop.xlane.xlu0 %314
    %v316 = vrcp.pop %v315
    %v317 = vmul.f32 %v315, %v316
    %v318 = vsub.f32 2.0, %v317
    %v319 = vmul.f32 %v316, %v318
    %v320 = vmul.f32 %v312, %v319
    %322 = vrot.lane.b32.xlu0 %v202, 112
    %v323 = vpop.permute.xlu0 %322
    %v326 = vsel %vm241, %v320, 0
    %328 = vmatpush.msra.mxu0 0.0
    %329 = vmatpush.msra.mxu0 0.0
    %330 = vmatpush.msra.mxu0 0.0
    %331 = vmatpush.msra.mxu0 0.0
    %332 = vmatpush.msra.mxu0 0.0
    %333 = vmatpush.msra.mxu0 0.0
    %334 = vmatpush.msra.mxu0 0.0
    %335 = vmatpush.msra.mxu0 0.0
    %336 = vmatpush.msra.mxu0 0.0
    %337 = vmatpush.msra.mxu0 0.0
    %338 = vmatpush.msra.mxu0 0.0
    %339 = vmatpush.msra.mxu0 0.0
    %340 = vmatpush.msra.mxu0 0.0
    %341 = vmatpush.msra.mxu0 0.0
    %342 = vmatpush.msra.mxu0 0.0
    %343 = vmatpush.msra.mxu0 %v323
    %344 = vmatmul.f32.gmra.mxu0 %v326
    %v345 = vpop.f32.mrf.mxu0
    %v346 = vadd.f32 0.0, %v345
    %347 = vdwg.mxu0
    %348 = vrot.lane.b32.xlu0 %v211, 96
    %v349 = vpop.permute.xlu0 %348
    %350 = vrot.lane.b32.xlu0 %v211, 32
    %v351 = vpop.permute.xlu0 %350
    %v352 = vsel %vm216, %v349, 0
    %v354 = vsel %vm216, %v351, 0
    %356 = vmatpush.xpose.msra.mxu0 0.0
    %357 = vmatpush.xpose.msra.mxu0 0.0
    %358 = vmatpush.xpose.msra.mxu0 0.0
    %359 = vmatpush.xpose.msra.mxu0 0.0
    %360 = vmatpush.xpose.msra.mxu0 0.0
    %361 = vmatpush.xpose.msra.mxu0 0.0
    %362 = vmatpush.xpose.msra.mxu0 0.0
    %363 = vmatpush.xpose.msra.mxu0 0.0
    %364 = vmatpush.xpose.msra.mxu0 0.0
    %365 = vmatpush.xpose.msra.mxu0 0.0
    %366 = vmatpush.xpose.msra.mxu0 0.0
    %367 = vmatpush.xpose.msra.mxu0 0.0
    %368 = vmatpush.xpose.msra.mxu0 0.0
    %369 = vmatpush.xpose.msra.mxu0 0.0
    %370 = vmatpush.xpose.msra.mxu0 0.0
    %371 = vmatpush.xpose.msra.mxu0 %v354
    %372 = vmatmul.f32.gmra.mxu0 %v352
    %v373 = vpop.f32.mrf.mxu0
    %v374 = vadd.f32 %v61, %v373
    %375 = vdwg.mxu0
    %v376 = vsel %vm241, %v374, -inf
    %377 = vmax.xlane.f32.xlu0 %v376
    %v378 = vpop.xlane.xlu0 %377
    %v379 = vsub.f32 %v374, %v378
    %v380 = vmul.f32 %v379, 1.442695
    %v381 = vpow.pop %v380
    %v382 = vsel %vm241, %v381, 0.0
    %383 = vadd.xlane.f32.xlu0 %v382
    %v384 = vpop.xlane.xlu0 %383
    %v385 = vrcp.pop %v384
    %v386 = vmul.f32 %v384, %v385
    %v387 = vsub.f32 2.0, %v386
    %v388 = vmul.f32 %v385, %v387
    %v389 = vmul.f32 %v381, %v388
    %390 = vrot.lane.b32.xlu0 %v202, 96
    %v391 = vpop.permute.xlu0 %390
    %v394 = vsel %vm241, %v389, 0
    %396 = vmatpush.msra.mxu0 0.0
    %397 = vmatpush.msra.mxu0 0.0
    %398 = vmatpush.msra.mxu0 0.0
    %399 = vmatpush.msra.mxu0 0.0
    %400 = vmatpush.msra.mxu0 0.0
    %401 = vmatpush.msra.mxu0 0.0
    %402 = vmatpush.msra.mxu0 0.0
    %403 = vmatpush.msra.mxu0 0.0
    %404 = vmatpush.msra.mxu0 0.0
    %405 = vmatpush.msra.mxu0 0.0
    %406 = vmatpush.msra.mxu0 0.0
    %407 = vmatpush.msra.mxu0 0.0
    %408 = vmatpush.msra.mxu0 0.0
    %409 = vmatpush.msra.mxu0 0.0
    %410 = vmatpush.msra.mxu0 0.0
    %411 = vmatpush.msra.mxu0 %v391
    %412 = vmatmul.f32.gmra.mxu0 %v394
    %v413 = vpop.f32.mrf.mxu0
    %v414 = vadd.f32 0.0, %v413
    %415 = vdwg.mxu0
    %416 = vrot.lane.b32.xlu0 %v211, 80
    %v417 = vpop.permute.xlu0 %416
    %418 = vrot.lane.b32.xlu0 %v211, 16
    %v419 = vpop.permute.xlu0 %418
    %v420 = vsel %vm216, %v417, 0
    %v422 = vsel %vm216, %v419, 0
    %424 = vmatpush.xpose.msra.mxu0 0.0
    %425 = vmatpush.xpose.msra.mxu0 0.0
    %426 = vmatpush.xpose.msra.mxu0 0.0
    %427 = vmatpush.xpose.msra.mxu0 0.0
    %428 = vmatpush.xpose.msra.mxu0 0.0
    %429 = vmatpush.xpose.msra.mxu0 0.0
    %430 = vmatpush.xpose.msra.mxu0 0.0
    %431 = vmatpush.xpose.msra.mxu0 0.0
    %432 = vmatpush.xpose.msra.mxu0 0.0
    %433 = vmatpush.xpose.msra.mxu0 0.0
    %434 = vmatpush.xpose.msra.mxu0 0.0
    %435 = vmatpush.xpose.msra.mxu0 0.0
    %436 = vmatpush.xpose.msra.mxu0 0.0
    %437 = vmatpush.xpose.msra.mxu0 0.0
    %438 = vmatpush.xpose.msra.mxu0 0.0
    %439 = vmatpush.xpose.msra.mxu0 %v422
    %440 = vmatmul.f32.gmra.mxu0 %v420
    %v441 = vpop.f32.mrf.mxu0
    %v442 = vadd.f32 %v61, %v441
    %443 = vdwg.mxu0
    %v444 = vsel %vm241, %v442, -inf
    %445 = vmax.xlane.f32.xlu0 %v444
    %v446 = vpop.xlane.xlu0 %445
    %v447 = vsub.f32 %v442, %v446
    %v448 = vmul.f32 %v447, 1.442695
    %v449 = vpow.pop %v448
    %v450 = vsel %vm241, %v449, 0.0
    %451 = vadd.xlane.f32.xlu0 %v450
    %v452 = vpop.xlane.xlu0 %451
    %v453 = vrcp.pop %v452
    %v454 = vmul.f32 %v452, %v453
    %v455 = vsub.f32 2.0, %v454
    %v456 = vmul.f32 %v453, %v455
    %v457 = vmul.f32 %v449, %v456
    %458 = vrot.lane.b32.xlu0 %v202, 80
    %v459 = vpop.permute.xlu0 %458
    %v462 = vsel %vm241, %v457, 0
    %464 = vmatpush.msra.mxu0 0.0
    %465 = vmatpush.msra.mxu0 0.0
    %466 = vmatpush.msra.mxu0 0.0
    %467 = vmatpush.msra.mxu0 0.0
    %468 = vmatpush.msra.mxu0 0.0
    %469 = vmatpush.msra.mxu0 0.0
    %470 = vmatpush.msra.mxu0 0.0
    %471 = vmatpush.msra.mxu0 0.0
    %472 = vmatpush.msra.mxu0 0.0
    %473 = vmatpush.msra.mxu0 0.0
    %474 = vmatpush.msra.mxu0 0.0
    %475 = vmatpush.msra.mxu0 0.0
    %476 = vmatpush.msra.mxu0 0.0
    %477 = vmatpush.msra.mxu0 0.0
    %478 = vmatpush.msra.mxu0 0.0
    %479 = vmatpush.msra.mxu0 %v459
    %480 = vmatmul.f32.gmra.mxu0 %v462
    %v481 = vpop.f32.mrf.mxu0
    %v482 = vadd.f32 0.0, %v481
    %483 = vdwg.mxu0
    %485 = vrot.lane.b32.xlu0 %v346, 16
    %v486 = vpop.permute.xlu0 %485
    %489 = vrot.lane.b32.xlu0 %v414, 32
    %v490 = vpop.permute.xlu0 %489
    %493 = vrot.lane.b32.xlu0 %v482, 48
    %v494 = vpop.permute.xlu0 %493
    %v496 = vsel %vm216, %v277, %v486
    %vm497 = vcmask 261120
    %v498 = vsel %vm497, %v496, %v490
    %vm499 = vcmask 392192
    %v500 = vsel %vm499, %v498, %v494
    %502 = vrot.lane.b32.xlu0 %v212, 64
    %v503 = vpop.permute.xlu0 %502
    %v504 = vsel %vm216, %v212, 0
    %v506 = vsel %vm216, %v503, 0
    %508 = vmatpush.xpose.msra.mxu0 0.0
    %509 = vmatpush.xpose.msra.mxu0 0.0
    %510 = vmatpush.xpose.msra.mxu0 0.0
    %511 = vmatpush.xpose.msra.mxu0 0.0
    %512 = vmatpush.xpose.msra.mxu0 0.0
    %513 = vmatpush.xpose.msra.mxu0 0.0
    %514 = vmatpush.xpose.msra.mxu0 0.0
    %515 = vmatpush.xpose.msra.mxu0 0.0
    %516 = vmatpush.xpose.msra.mxu0 0.0
    %517 = vmatpush.xpose.msra.mxu0 0.0
    %518 = vmatpush.xpose.msra.mxu0 0.0
    %519 = vmatpush.xpose.msra.mxu0 0.0
    %520 = vmatpush.xpose.msra.mxu0 0.0
    %521 = vmatpush.xpose.msra.mxu0 0.0
    %522 = vmatpush.xpose.msra.mxu0 0.0
    %523 = vmatpush.xpose.msra.mxu0 %v506
    %524 = vmatmul.f32.gmra.mxu0 %v504
    %v525 = vpop.f32.mrf.mxu0
    %v526 = vadd.f32 %v61, %v525
    %527 = vdwg.mxu0
    %v528 = vsel %vm241, %v526, -inf
    %529 = vmax.xlane.f32.xlu0 %v528
    %v530 = vpop.xlane.xlu0 %529
    %v531 = vsub.f32 %v526, %v530
    %v532 = vmul.f32 %v531, 1.442695
    %v533 = vpow.pop %v532
    %v534 = vsel %vm241, %v533, 0.0
    %535 = vadd.xlane.f32.xlu0 %v534
    %v536 = vpop.xlane.xlu0 %535
    %v537 = vrcp.pop %v536
    %v538 = vmul.f32 %v536, %v537
    %v539 = vsub.f32 2.0, %v538
    %v540 = vmul.f32 %v537, %v539
    %v541 = vmul.f32 %v533, %v540
    %v543 = vsel %vm241, %v541, 0
    %545 = vmatpush.msra.mxu0 0.0
    %546 = vmatpush.msra.mxu0 0.0
    %547 = vmatpush.msra.mxu0 0.0
    %548 = vmatpush.msra.mxu0 0.0
    %549 = vmatpush.msra.mxu0 0.0
    %550 = vmatpush.msra.mxu0 0.0
    %551 = vmatpush.msra.mxu0 0.0
    %552 = vmatpush.msra.mxu0 0.0
    %553 = vmatpush.msra.mxu0 0.0
    %554 = vmatpush.msra.mxu0 0.0
    %555 = vmatpush.msra.mxu0 0.0
    %556 = vmatpush.msra.mxu0 0.0
    %557 = vmatpush.msra.mxu0 0.0
    %558 = vmatpush.msra.mxu0 0.0
    %559 = vmatpush.msra.mxu0 0.0
    %560 = vmatpush.msra.mxu0 %v205
    %561 = vmatmul.f32.gmra.mxu0 %v543
    %v562 = vpop.f32.mrf.mxu0
    %v563 = vadd.f32 0.0, %v562
    %564 = vdwg.mxu0
    %565 = vrot.lane.b32.xlu0 %v212, 112
    %v566 = vpop.permute.xlu0 %565
    %567 = vrot.lane.b32.xlu0 %v212, 48
    %v568 = vpop.permute.xlu0 %567
    %v569 = vsel %vm216, %v566, 0
    %v571 = vsel %vm216, %v568, 0
    %573 = vmatpush.xpose.msra.mxu0 0.0
    %574 = vmatpush.xpose.msra.mxu0 0.0
    %575 = vmatpush.xpose.msra.mxu0 0.0
    %576 = vmatpush.xpose.msra.mxu0 0.0
    %577 = vmatpush.xpose.msra.mxu0 0.0
    %578 = vmatpush.xpose.msra.mxu0 0.0
    %579 = vmatpush.xpose.msra.mxu0 0.0
    %580 = vmatpush.xpose.msra.mxu0 0.0
    %581 = vmatpush.xpose.msra.mxu0 0.0
    %582 = vmatpush.xpose.msra.mxu0 0.0
    %583 = vmatpush.xpose.msra.mxu0 0.0
    %584 = vmatpush.xpose.msra.mxu0 0.0
    %585 = vmatpush.xpose.msra.mxu0 0.0
    %586 = vmatpush.xpose.msra.mxu0 0.0
    %587 = vmatpush.xpose.msra.mxu0 0.0
    %588 = vmatpush.xpose.msra.mxu0 %v571
    %589 = vmatmul.f32.gmra.mxu0 %v569
    %v590 = vpop.f32.mrf.mxu0
    %v591 = vadd.f32 %v61, %v590
    %592 = vdwg.mxu0
    %v593 = vsel %vm241, %v591, -inf
    %594 = vmax.xlane.f32.xlu0 %v593
    %v595 = vpop.xlane.xlu0 %594
    %v596 = vsub.f32 %v591, %v595
    %v597 = vmul.f32 %v596, 1.442695
    %v598 = vpow.pop %v597
    %v599 = vsel %vm241, %v598, 0.0
    %600 = vadd.xlane.f32.xlu0 %v599
    %v601 = vpop.xlane.xlu0 %600
    %v602 = vrcp.pop %v601
    %v603 = vmul.f32 %v601, %v602
    %v604 = vsub.f32 2.0, %v603
    %v605 = vmul.f32 %v602, %v604
    %v606 = vmul.f32 %v598, %v605
    %608 = vrot.lane.b32.xlu0 %v205, 112
    %v609 = vpop.permute.xlu0 %608
    %v612 = vsel %vm241, %v606, 0
    %614 = vmatpush.msra.mxu0 0.0
    %615 = vmatpush.msra.mxu0 0.0
    %616 = vmatpush.msra.mxu0 0.0
    %617 = vmatpush.msra.mxu0 0.0
    %618 = vmatpush.msra.mxu0 0.0
    %619 = vmatpush.msra.mxu0 0.0
    %620 = vmatpush.msra.mxu0 0.0
    %621 = vmatpush.msra.mxu0 0.0
    %622 = vmatpush.msra.mxu0 0.0
    %623 = vmatpush.msra.mxu0 0.0
    %624 = vmatpush.msra.mxu0 0.0
    %625 = vmatpush.msra.mxu0 0.0
    %626 = vmatpush.msra.mxu0 0.0
    %627 = vmatpush.msra.mxu0 0.0
    %628 = vmatpush.msra.mxu0 0.0
    %629 = vmatpush.msra.mxu0 %v609
    %630 = vmatmul.f32.gmra.mxu0 %v612
    %v631 = vpop.f32.mrf.mxu0
    %v632 = vadd.f32 0.0, %v631
    %633 = vdwg.mxu0
    %634 = vrot.lane.b32.xlu0 %v212, 96
    %v635 = vpop.permute.xlu0 %634
    %636 = vrot.lane.b32.xlu0 %v212, 32
    %v637 = vpop.permute.xlu0 %636
    %v638 = vsel %vm216, %v635, 0
    %v640 = vsel %vm216, %v637, 0
    %642 = vmatpush.xpose.msra.mxu0 0.0
    %643 = vmatpush.xpose.msra.mxu0 0.0
    %644 = vmatpush.xpose.msra.mxu0 0.0
    %645 = vmatpush.xpose.msra.mxu0 0.0
    %646 = vmatpush.xpose.msra.mxu0 0.0
    %647 = vmatpush.xpose.msra.mxu0 0.0
    %648 = vmatpush.xpose.msra.mxu0 0.0
    %649 = vmatpush.xpose.msra.mxu0 0.0
    %650 = vmatpush.xpose.msra.mxu0 0.0
    %651 = vmatpush.xpose.msra.mxu0 0.0
    %652 = vmatpush.xpose.msra.mxu0 0.0
    %653 = vmatpush.xpose.msra.mxu0 0.0
    %654 = vmatpush.xpose.msra.mxu0 0.0
    %655 = vmatpush.xpose.msra.mxu0 0.0
    %656 = vmatpush.xpose.msra.mxu0 0.0
    %657 = vmatpush.xpose.msra.mxu0 %v640
    %658 = vmatmul.f32.gmra.mxu0 %v638
    %v659 = vpop.f32.mrf.mxu0
    %v660 = vadd.f32 %v61, %v659
    %661 = vdwg.mxu0
    %v662 = vsel %vm241, %v660, -inf
    %663 = vmax.xlane.f32.xlu0 %v662
    %v664 = vpop.xlane.xlu0 %663
    %v665 = vsub.f32 %v660, %v664
    %v666 = vmul.f32 %v665, 1.442695
    %v667 = vpow.pop %v666
    %v668 = vsel %vm241, %v667, 0.0
    %669 = vadd.xlane.f32.xlu0 %v668
    %v670 = vpop.xlane.xlu0 %669
    %v671 = vrcp.pop %v670
    %v672 = vmul.f32 %v670, %v671
    %v673 = vsub.f32 2.0, %v672
    %v674 = vmul.f32 %v671, %v673
    %v675 = vmul.f32 %v667, %v674
    %676 = vrot.lane.b32.xlu0 %v205, 96
    %v677 = vpop.permute.xlu0 %676
    %v680 = vsel %vm241, %v675, 0
    %682 = vmatpush.msra.mxu0 0.0
    %683 = vmatpush.msra.mxu0 0.0
    %684 = vmatpush.msra.mxu0 0.0
    %685 = vmatpush.msra.mxu0 0.0
    %686 = vmatpush.msra.mxu0 0.0
    %687 = vmatpush.msra.mxu0 0.0
    %688 = vmatpush.msra.mxu0 0.0
    %689 = vmatpush.msra.mxu0 0.0
    %690 = vmatpush.msra.mxu0 0.0
    %691 = vmatpush.msra.mxu0 0.0
    %692 = vmatpush.msra.mxu0 0.0
    %693 = vmatpush.msra.mxu0 0.0
    %694 = vmatpush.msra.mxu0 0.0
    %695 = vmatpush.msra.mxu0 0.0
    %696 = vmatpush.msra.mxu0 0.0
    %697 = vmatpush.msra.mxu0 %v677
    %698 = vmatmul.f32.gmra.mxu0 %v680
    %v699 = vpop.f32.mrf.mxu0
    %v700 = vadd.f32 0.0, %v699
    %701 = vdwg.mxu0
    %702 = vrot.lane.b32.xlu0 %v212, 80
    %v703 = vpop.permute.xlu0 %702
    %704 = vrot.lane.b32.xlu0 %v212, 16
    %v705 = vpop.permute.xlu0 %704
    %v706 = vsel %vm216, %v703, 0
    %v708 = vsel %vm216, %v705, 0
    %710 = vmatpush.xpose.msra.mxu0 0.0
    %711 = vmatpush.xpose.msra.mxu0 0.0
    %712 = vmatpush.xpose.msra.mxu0 0.0
    %713 = vmatpush.xpose.msra.mxu0 0.0
    %714 = vmatpush.xpose.msra.mxu0 0.0
    %715 = vmatpush.xpose.msra.mxu0 0.0
    %716 = vmatpush.xpose.msra.mxu0 0.0
    %717 = vmatpush.xpose.msra.mxu0 0.0
    %718 = vmatpush.xpose.msra.mxu0 0.0
    %719 = vmatpush.xpose.msra.mxu0 0.0
    %720 = vmatpush.xpose.msra.mxu0 0.0
    %721 = vmatpush.xpose.msra.mxu0 0.0
    %722 = vmatpush.xpose.msra.mxu0 0.0
    %723 = vmatpush.xpose.msra.mxu0 0.0
    %724 = vmatpush.xpose.msra.mxu0 0.0
    %725 = vmatpush.xpose.msra.mxu0 %v708
    %726 = vmatmul.f32.gmra.mxu0 %v706
    %v727 = vpop.f32.mrf.mxu0
    %v728 = vadd.f32 %v61, %v727
    %729 = vdwg.mxu0
    %v730 = vsel %vm241, %v728, -inf
    %731 = vmax.xlane.f32.xlu0 %v730
    %v732 = vpop.xlane.xlu0 %731
    %v733 = vsub.f32 %v728, %v732
    %v734 = vmul.f32 %v733, 1.442695
    %v735 = vpow.pop %v734
    %v736 = vsel %vm241, %v735, 0.0
    %737 = vadd.xlane.f32.xlu0 %v736
    %v738 = vpop.xlane.xlu0 %737
    %v739 = vrcp.pop %v738
    %v740 = vmul.f32 %v738, %v739
    %v741 = vsub.f32 2.0, %v740
    %v742 = vmul.f32 %v739, %v741
    %v743 = vmul.f32 %v735, %v742
    %744 = vrot.lane.b32.xlu0 %v205, 80
    %v745 = vpop.permute.xlu0 %744
    %v748 = vsel %vm241, %v743, 0
    %750 = vmatpush.msra.mxu0 0.0
    %751 = vmatpush.msra.mxu0 0.0
    %752 = vmatpush.msra.mxu0 0.0
    %753 = vmatpush.msra.mxu0 0.0
    %754 = vmatpush.msra.mxu0 0.0
    %755 = vmatpush.msra.mxu0 0.0
    %756 = vmatpush.msra.mxu0 0.0
    %757 = vmatpush.msra.mxu0 0.0
    %758 = vmatpush.msra.mxu0 0.0
    %759 = vmatpush.msra.mxu0 0.0
    %760 = vmatpush.msra.mxu0 0.0
    %761 = vmatpush.msra.mxu0 0.0
    %762 = vmatpush.msra.mxu0 0.0
    %763 = vmatpush.msra.mxu0 0.0
    %764 = vmatpush.msra.mxu0 0.0
    %765 = vmatpush.msra.mxu0 %v745
    %766 = vmatmul.f32.gmra.mxu0 %v748
    %v767 = vpop.f32.mrf.mxu0
    %v768 = vadd.f32 0.0, %v767
    %769 = vdwg.mxu0
    %771 = vrot.lane.b32.xlu0 %v632, 16
    %v772 = vpop.permute.xlu0 %771
    %775 = vrot.lane.b32.xlu0 %v700, 32
    %v776 = vpop.permute.xlu0 %775
    %779 = vrot.lane.b32.xlu0 %v768, 48
    %v780 = vpop.permute.xlu0 %779
    %v782 = vsel %vm216, %v563, %v772
    %v783 = vsel %vm497, %v782, %v776
    %v784 = vsel %vm499, %v783, %v780
    %v785 = vld [vmem:[%s3] sm:$0xff]
    %v786 = vld [vmem:[%s3 + $0x8] sm:$0xff]
    %v787 = vld [vmem:[%s3 + $0x10] sm:$0xff]
    %v788 = vld [vmem:[%s3 + $0x18] sm:$0xff]
    %v789 = vld [vmem:[%s3 + $0x20] sm:$0xff]
    %v790 = vld [vmem:[%s3 + $0x28] sm:$0xff]
    %v791 = vld [vmem:[%s3 + $0x30] sm:$0xff]
    %v792 = vld [vmem:[%s3 + $0x38] sm:$0xff]
    %v794 = vsel %vm65, %v500, 0
    %v797 = vsel %vm65, %v784, 0
    %799 = vmatpush.msra.mxu0 0.0
    %800 = vmatpush.msra.mxu0 0.0
    %801 = vmatpush.msra.mxu0 0.0
    %802 = vmatpush.msra.mxu0 0.0
    %803 = vmatpush.msra.mxu0 0.0
    %804 = vmatpush.msra.mxu0 0.0
    %805 = vmatpush.msra.mxu0 0.0
    %806 = vmatpush.msra.mxu0 0.0
    %807 = vmatpush.msra.mxu0 %v792
    %808 = vmatpush.msra.mxu0 %v791
    %809 = vmatpush.msra.mxu0 %v790
    %810 = vmatpush.msra.mxu0 %v789
    %811 = vmatpush.msra.mxu0 %v788
    %812 = vmatpush.msra.mxu0 %v787
    %813 = vmatpush.msra.mxu0 %v786
    %814 = vmatpush.msra.mxu0 %v785
    %815 = vmatmul.f32.gmra.mxu0 %v794
    %v816 = vpop.f32.mrf.mxu0
    %v817 = vadd.f32 0.0, %v816
    %818 = vmatmul.f32.gmra.mxu0 %v797
    %v819 = vpop.f32.mrf.mxu0
    %v820 = vadd.f32 0.0, %v819
    %821 = vdwg.mxu0
    %v822 = vadd.f32 %v55, %v817
    %v823 = vadd.f32 %v56, %v820
    %v824 = vmul.f32 %v822, %v822
    %v825 = vmul.f32 %v823, %v823
    %v826 = vsel %vm65, %v824, 0.0
    %827 = vadd.xlane.f32.xlu0 %v826
    %v828 = vpop.xlane.xlu0 %827
    %v829 = vsel %vm65, %v825, 0.0
    %830 = vadd.xlane.f32.xlu0 %v829
    %v831 = vpop.xlane.xlu0 %830
    %v832 = vmul.f32 %v828, %v78
    %v833 = vmul.f32 %v831, %v78
    %v834 = vadd.f32 %v832, 1e-06
    %v835 = vadd.f32 %v833, 1e-06
    %v836 = vrsqrt.pop %v834
    %v837 = vmul.f32 %v836, %v834
    %v838 = vmul.f32 %v837, %v836
    %v839 = vmul.f32 0.5, %v838
    %v840 = vsub.f32 1.5, %v839
    %v841 = vmul.f32 %v836, %v840
    %vm842 = vweird.f32 %v834
    %vm843 = vweird.f32 %v836
    %vm844 = vmor %vm842, %vm843
    %v845 = vsel %vm844, %v836, %v841
    %v846 = vrsqrt.pop %v835
    %v847 = vmul.f32 %v846, %v835
    %v848 = vmul.f32 %v847, %v846
    %v849 = vmul.f32 0.5, %v848
    %v850 = vsub.f32 1.5, %v849
    %v851 = vmul.f32 %v846, %v850
    %vm852 = vweird.f32 %v835
    %vm853 = vweird.f32 %v846
    %vm854 = vmor %vm852, %vm853
    %v855 = vsel %vm854, %v846, %v851
    %v856 = vmul.f32 %v822, %v845
    %v857 = vmul.f32 %v823, %v855
    %v858 = vperm.slane %v62, 1
    %v859 = vmul.f32 %v856, %v858
    %v860 = vmul.f32 %v857, %v858
    %v861 = vld [vmem:[%s4] sm:$0xff]
    %v862 = vld [vmem:[%s4 + $0x8] sm:$0xff]
    %v863 = vld [vmem:[%s4 + $0x10] sm:$0xff]
    %v864 = vld [vmem:[%s4 + $0x18] sm:$0xff]
    %v865 = vld [vmem:[%s4 + $0x20] sm:$0xff]
    %v866 = vld [vmem:[%s4 + $0x28] sm:$0xff]
    %v867 = vld [vmem:[%s4 + $0x30] sm:$0xff]
    %v868 = vld [vmem:[%s4 + $0x38] sm:$0xff]
    %v869 = vld [vmem:[%s4 + $0x40] sm:$0xff]
    %v870 = vld [vmem:[%s4 + $0x48] sm:$0xff]
    %v871 = vld [vmem:[%s4 + $0x50] sm:$0xff]
    %v872 = vld [vmem:[%s4 + $0x58] sm:$0xff]
    %v873 = vld [vmem:[%s4 + $0x60] sm:$0xff]
    %v874 = vld [vmem:[%s4 + $0x68] sm:$0xff]
    %v875 = vld [vmem:[%s4 + $0x70] sm:$0xff]
    %v876 = vld [vmem:[%s4 + $0x78] sm:$0xff]
    %v877 = vld [vmem:[%s4 + $0x80] sm:$0xff]
    %v878 = vld [vmem:[%s4 + $0x88] sm:$0xff]
    %v879 = vld [vmem:[%s4 + $0x90] sm:$0xff]
    %v880 = vld [vmem:[%s4 + $0x98] sm:$0xff]
    %v881 = vld [vmem:[%s4 + $0xa0] sm:$0xff]
    %v882 = vld [vmem:[%s4 + $0xa8] sm:$0xff]
    %v883 = vld [vmem:[%s4 + $0xb0] sm:$0xff]
    %v884 = vld [vmem:[%s4 + $0xb8] sm:$0xff]
    %v885 = vld [vmem:[%s4 + $0xc0] sm:$0xff]
    %v886 = vld [vmem:[%s4 + $0xc8] sm:$0xff]
    %v887 = vld [vmem:[%s4 + $0xd0] sm:$0xff]
    %v888 = vld [vmem:[%s4 + $0xd8] sm:$0xff]
    %v889 = vld [vmem:[%s4 + $0xe0] sm:$0xff]
    %v890 = vld [vmem:[%s4 + $0xe8] sm:$0xff]
    %v891 = vld [vmem:[%s4 + $0xf0] sm:$0xff]
    %v892 = vld [vmem:[%s4 + $0xf8] sm:$0xff]
    %v894 = vsel %vm65, %v859, 0
    %v897 = vsel %vm65, %v860, 0
    %899 = vmatpush.msra.mxu0 0.0
    %900 = vmatpush.msra.mxu0 0.0
    %901 = vmatpush.msra.mxu0 0.0
    %902 = vmatpush.msra.mxu0 0.0
    %903 = vmatpush.msra.mxu0 0.0
    %904 = vmatpush.msra.mxu0 0.0
    %905 = vmatpush.msra.mxu0 0.0
    %906 = vmatpush.msra.mxu0 0.0
    %907 = vmatpush.msra.mxu0 %v889
    %908 = vmatpush.msra.mxu0 %v885
    %909 = vmatpush.msra.mxu0 %v881
    %910 = vmatpush.msra.mxu0 %v877
    %911 = vmatpush.msra.mxu0 %v873
    %912 = vmatpush.msra.mxu0 %v869
    %913 = vmatpush.msra.mxu0 %v865
    %914 = vmatpush.msra.mxu0 %v861
    %915 = vmatmul.f32.gmra.mxu0 %v894
    %v916 = vpop.f32.mrf.mxu0
    %v917 = vadd.f32 0.0, %v916
    %918 = vmatmul.f32.gmra.mxu0 %v897
    %v919 = vpop.f32.mrf.mxu0
    %v920 = vadd.f32 0.0, %v919
    %921 = vdwg.mxu0
    %922 = vmatpush.msra.mxu0 0.0
    %923 = vmatpush.msra.mxu0 0.0
    %924 = vmatpush.msra.mxu0 0.0
    %925 = vmatpush.msra.mxu0 0.0
    %926 = vmatpush.msra.mxu0 0.0
    %927 = vmatpush.msra.mxu0 0.0
    %928 = vmatpush.msra.mxu0 0.0
    %929 = vmatpush.msra.mxu0 0.0
    %930 = vmatpush.msra.mxu0 %v890
    %931 = vmatpush.msra.mxu0 %v886
    %932 = vmatpush.msra.mxu0 %v882
    %933 = vmatpush.msra.mxu0 %v878
    %934 = vmatpush.msra.mxu0 %v874
    %935 = vmatpush.msra.mxu0 %v870
    %936 = vmatpush.msra.mxu0 %v866
    %937 = vmatpush.msra.mxu0 %v862
    %938 = vmatmul.f32.gmra.mxu0 %v894
    %v939 = vpop.f32.mrf.mxu0
    %v940 = vadd.f32 0.0, %v939
    %941 = vmatmul.f32.gmra.mxu0 %v897
    %v942 = vpop.f32.mrf.mxu0
    %v943 = vadd.f32 0.0, %v942
    %944 = vdwg.mxu0
    %945 = vmatpush.msra.mxu0 0.0
    %946 = vmatpush.msra.mxu0 0.0
    %947 = vmatpush.msra.mxu0 0.0
    %948 = vmatpush.msra.mxu0 0.0
    %949 = vmatpush.msra.mxu0 0.0
    %950 = vmatpush.msra.mxu0 0.0
    %951 = vmatpush.msra.mxu0 0.0
    %952 = vmatpush.msra.mxu0 0.0
    %953 = vmatpush.msra.mxu0 %v891
    %954 = vmatpush.msra.mxu0 %v887
    %955 = vmatpush.msra.mxu0 %v883
    %956 = vmatpush.msra.mxu0 %v879
    %957 = vmatpush.msra.mxu0 %v875
    %958 = vmatpush.msra.mxu0 %v871
    %959 = vmatpush.msra.mxu0 %v867
    %960 = vmatpush.msra.mxu0 %v863
    %961 = vmatmul.f32.gmra.mxu0 %v894
    %v962 = vpop.f32.mrf.mxu0
    %v963 = vadd.f32 0.0, %v962
    %964 = vmatmul.f32.gmra.mxu0 %v897
    %v965 = vpop.f32.mrf.mxu0
    %v966 = vadd.f32 0.0, %v965
    %967 = vdwg.mxu0
    %968 = vmatpush.msra.mxu0 0.0
    %969 = vmatpush.msra.mxu0 0.0
    %970 = vmatpush.msra.mxu0 0.0
    %971 = vmatpush.msra.mxu0 0.0
    %972 = vmatpush.msra.mxu0 0.0
    %973 = vmatpush.msra.mxu0 0.0
    %974 = vmatpush.msra.mxu0 0.0
    %975 = vmatpush.msra.mxu0 0.0
    %976 = vmatpush.msra.mxu0 %v892
    %977 = vmatpush.msra.mxu0 %v888
    %978 = vmatpush.msra.mxu0 %v884
    %979 = vmatpush.msra.mxu0 %v880
    %980 = vmatpush.msra.mxu0 %v876
    %981 = vmatpush.msra.mxu0 %v872
    %982 = vmatpush.msra.mxu0 %v868
    %983 = vmatpush.msra.mxu0 %v864
    %984 = vmatmul.f32.gmra.mxu0 %v894
    %v985 = vpop.f32.mrf.mxu0
    %v986 = vadd.f32 0.0, %v985
    %987 = vmatmul.f32.gmra.mxu0 %v897
    %v988 = vpop.f32.mrf.mxu0
    %v989 = vadd.f32 0.0, %v988
    %990 = vdwg.mxu0
    %v991 = vxor.u32 %v917, 2147483648
    %v992 = vxor.u32 %v940, 2147483648
    %v993 = vxor.u32 %v920, 2147483648
    %v994 = vxor.u32 %v943, 2147483648
    %v995 = vmul.f32 %v991, 1.442695
    %v996 = vpow.pop %v995
    %v997 = vmul.f32 %v992, 1.442695
    %v998 = vpow.pop %v997
    %v999 = vmul.f32 %v993, 1.442695
    %v1000 = vpow.pop %v999
    %v1001 = vmul.f32 %v994, 1.442695
    %v1002 = vpow.pop %v1001
    %v1003 = vadd.f32 %v996, 1.0
    %v1004 = vadd.f32 %v998, 1.0
    %v1005 = vadd.f32 %v1000, 1.0
    %v1006 = vadd.f32 %v1002, 1.0
    %v1007 = vrcp.pop %v1003
    %v1008 = vmul.f32 %v1003, %v1007
    %v1009 = vsub.f32 1.0, %v1008
    %v1010 = vmul.f32 %v1007, %v1009
    %v1011 = vadd.f32 %v1007, %v1010
    %vm1012 = vweird.f32 %v1003
    %vm1013 = vweird.f32 %v1007
    %vm1014 = vmor %vm1012, %vm1013
    %v1015 = vsel %vm1014, %v1007, %v1011
    %v1016 = vand.u32 2147483647, %v1003
    %vm1017 = vcmp.eq.f32.partialorder %v1016, 8.507059e+37
    %v1018 = vand.u32 %v1003, 2147483648
    %v1019 = vor.u32 1.1754944e-38, %v1018
    %v1020 = vsel %vm1017, %v1019, %v1015
    %v1021 = vmul.f32 1.0, %v1020
    %v1022 = vrcp.pop %v1004
    %v1023 = vmul.f32 %v1004, %v1022
    %v1024 = vsub.f32 1.0, %v1023
    %v1025 = vmul.f32 %v1022, %v1024
    %v1026 = vadd.f32 %v1022, %v1025
    %vm1027 = vweird.f32 %v1004
    %vm1028 = vweird.f32 %v1022
    %vm1029 = vmor %vm1027, %vm1028
    %v1030 = vsel %vm1029, %v1022, %v1026
    %v1031 = vand.u32 2147483647, %v1004
    %vm1032 = vcmp.eq.f32.partialorder %v1031, 8.507059e+37
    %v1033 = vand.u32 %v1004, 2147483648
    %v1034 = vor.u32 1.1754944e-38, %v1033
    %v1035 = vsel %vm1032, %v1034, %v1030
    %v1036 = vmul.f32 1.0, %v1035
    %v1037 = vrcp.pop %v1005
    %v1038 = vmul.f32 %v1005, %v1037
    %v1039 = vsub.f32 1.0, %v1038
    %v1040 = vmul.f32 %v1037, %v1039
    %v1041 = vadd.f32 %v1037, %v1040
    %vm1042 = vweird.f32 %v1005
    %vm1043 = vweird.f32 %v1037
    %vm1044 = vmor %vm1042, %vm1043
    %v1045 = vsel %vm1044, %v1037, %v1041
    %v1046 = vand.u32 2147483647, %v1005
    %vm1047 = vcmp.eq.f32.partialorder %v1046, 8.507059e+37
    %v1048 = vand.u32 %v1005, 2147483648
    %v1049 = vor.u32 1.1754944e-38, %v1048
    %v1050 = vsel %vm1047, %v1049, %v1045
    %v1051 = vmul.f32 1.0, %v1050
    %v1052 = vrcp.pop %v1006
    %v1053 = vmul.f32 %v1006, %v1052
    %v1054 = vsub.f32 1.0, %v1053
    %v1055 = vmul.f32 %v1052, %v1054
    %v1056 = vadd.f32 %v1052, %v1055
    %vm1057 = vweird.f32 %v1006
    %vm1058 = vweird.f32 %v1052
    %vm1059 = vmor %vm1057, %vm1058
    %v1060 = vsel %vm1059, %v1052, %v1056
    %v1061 = vand.u32 2147483647, %v1006
    %vm1062 = vcmp.eq.f32.partialorder %v1061, 8.507059e+37
    %v1063 = vand.u32 %v1006, 2147483648
    %v1064 = vor.u32 1.1754944e-38, %v1063
    %v1065 = vsel %vm1062, %v1064, %v1060
    %v1066 = vmul.f32 1.0, %v1065
    %v1067 = vmul.f32 %v917, %v1021
    %v1068 = vmul.f32 %v940, %v1036
    %v1069 = vmul.f32 %v920, %v1051
    %v1070 = vmul.f32 %v943, %v1066
    %v1071 = vmul.f32 %v1067, %v963
    %v1072 = vmul.f32 %v1068, %v986
    %v1073 = vmul.f32 %v1069, %v966
    %v1074 = vmul.f32 %v1070, %v989
    %v1075 = vld [vmem:[%s5] sm:$0xff]
    %v1076 = vld [vmem:[%s5 + $0x8] sm:$0xff]
    %v1077 = vld [vmem:[%s5 + $0x10] sm:$0xff]
    %v1078 = vld [vmem:[%s5 + $0x18] sm:$0xff]
    %v1079 = vld [vmem:[%s5 + $0x20] sm:$0xff]
    %v1080 = vld [vmem:[%s5 + $0x28] sm:$0xff]
    %v1081 = vld [vmem:[%s5 + $0x30] sm:$0xff]
    %v1082 = vld [vmem:[%s5 + $0x38] sm:$0xff]
    %v1083 = vld [vmem:[%s5 + $0x40] sm:$0xff]
    %v1084 = vld [vmem:[%s5 + $0x48] sm:$0xff]
    %v1085 = vld [vmem:[%s5 + $0x50] sm:$0xff]
    %v1086 = vld [vmem:[%s5 + $0x58] sm:$0xff]
    %v1087 = vld [vmem:[%s5 + $0x60] sm:$0xff]
    %v1088 = vld [vmem:[%s5 + $0x68] sm:$0xff]
    %v1089 = vld [vmem:[%s5 + $0x70] sm:$0xff]
    %v1090 = vld [vmem:[%s5 + $0x78] sm:$0xff]
    %v1091 = vld [vmem:[%s5 + $0x80] sm:$0xff]
    %v1092 = vld [vmem:[%s5 + $0x88] sm:$0xff]
    %v1093 = vld [vmem:[%s5 + $0x90] sm:$0xff]
    %v1094 = vld [vmem:[%s5 + $0x98] sm:$0xff]
    %v1095 = vld [vmem:[%s5 + $0xa0] sm:$0xff]
    %v1096 = vld [vmem:[%s5 + $0xa8] sm:$0xff]
    %v1097 = vld [vmem:[%s5 + $0xb0] sm:$0xff]
    %v1098 = vld [vmem:[%s5 + $0xb8] sm:$0xff]
    %v1099 = vld [vmem:[%s5 + $0xc0] sm:$0xff]
    %v1100 = vld [vmem:[%s5 + $0xc8] sm:$0xff]
    %v1101 = vld [vmem:[%s5 + $0xd0] sm:$0xff]
    %v1102 = vld [vmem:[%s5 + $0xd8] sm:$0xff]
    %v1103 = vld [vmem:[%s5 + $0xe0] sm:$0xff]
    %v1104 = vld [vmem:[%s5 + $0xe8] sm:$0xff]
    %v1105 = vld [vmem:[%s5 + $0xf0] sm:$0xff]
    %v1106 = vld [vmem:[%s5 + $0xf8] sm:$0xff]
    %1107 = vmatpush.msra.mxu0 %v1090
    %1108 = vmatpush.msra.mxu0 %v1089
    %1109 = vmatpush.msra.mxu0 %v1088
    %1110 = vmatpush.msra.mxu0 %v1087
    %1111 = vmatpush.msra.mxu0 %v1086
    %1112 = vmatpush.msra.mxu0 %v1085
    %1113 = vmatpush.msra.mxu0 %v1084
    %1114 = vmatpush.msra.mxu0 %v1083
    %1115 = vmatpush.msra.mxu0 %v1082
    %1116 = vmatpush.msra.mxu0 %v1081
    %1117 = vmatpush.msra.mxu0 %v1080
    %1118 = vmatpush.msra.mxu0 %v1079
    %1119 = vmatpush.msra.mxu0 %v1078
    %1120 = vmatpush.msra.mxu0 %v1077
    %1121 = vmatpush.msra.mxu0 %v1076
    %1122 = vmatpush.msra.mxu0 %v1075
    %1123 = vmatmul.f32.gmra.mxu0 %v1071
    %v1124 = vpop.f32.mrf.mxu0
    %v1125 = vadd.f32 0.0, %v1124
    %1126 = vmatmul.f32.gmra.mxu0 %v1073
    %v1127 = vpop.f32.mrf.mxu0
    %v1128 = vadd.f32 0.0, %v1127
    %1129 = vdwg.mxu0
    %1130 = vmatpush.msra.mxu0 %v1106
    %1131 = vmatpush.msra.mxu0 %v1105
    %1132 = vmatpush.msra.mxu0 %v1104
    %1133 = vmatpush.msra.mxu0 %v1103
    %1134 = vmatpush.msra.mxu0 %v1102
    %1135 = vmatpush.msra.mxu0 %v1101
    %1136 = vmatpush.msra.mxu0 %v1100
    %1137 = vmatpush.msra.mxu0 %v1099
    %1138 = vmatpush.msra.mxu0 %v1098
    %1139 = vmatpush.msra.mxu0 %v1097
    %1140 = vmatpush.msra.mxu0 %v1096
    %1141 = vmatpush.msra.mxu0 %v1095
    %1142 = vmatpush.msra.mxu0 %v1094
    %1143 = vmatpush.msra.mxu0 %v1093
    %1144 = vmatpush.msra.mxu0 %v1092
    %1145 = vmatpush.msra.mxu0 %v1091
    %1146 = vmatmul.f32.gmra.mxu0 %v1072
    %v1147 = vpop.f32.mrf.mxu0
    %v1148 = vadd.f32 %v1125, %v1147
    %1149 = vmatmul.f32.gmra.mxu0 %v1074
    %v1150 = vpop.f32.mrf.mxu0
    %v1151 = vadd.f32 %v1128, %v1150
    %1152 = vdwg.mxu0
    %v1153 = vadd.f32 %v822, %v1148
    %v1154 = vadd.f32 %v823, %v1151
    %s1155 = scalar_lea.vmem %s1, 2
    %v1156 = vld [vmem:[%s1155] sm:$0x3]
    %v1157 = vmul.f32 %v1153, %v1153
    %v1158 = vmul.f32 %v1154, %v1154
    %v1159 = vsel %vm65, %v1157, 0.0
    %1160 = vadd.xlane.f32.xlu0 %v1159
    %v1161 = vpop.xlane.xlu0 %1160
    %v1162 = vsel %vm65, %v1158, 0.0
    %1163 = vadd.xlane.f32.xlu0 %v1162
    %v1164 = vpop.xlane.xlu0 %1163
    %v1165 = vmul.f32 %v1161, %v78
    %v1166 = vmul.f32 %v1164, %v78
    %v1167 = vadd.f32 %v1165, 1e-06
    %v1168 = vadd.f32 %v1166, 1e-06
    %v1169 = vrsqrt.pop %v1167
    %v1170 = vmul.f32 %v1169, %v1167
    %v1171 = vmul.f32 %v1170, %v1169
    %v1172 = vmul.f32 0.5, %v1171
    %v1173 = vsub.f32 1.5, %v1172
    %v1174 = vmul.f32 %v1169, %v1173
    %vm1175 = vweird.f32 %v1167
    %vm1176 = vweird.f32 %v1169
    %vm1177 = vmor %vm1175, %vm1176
    %v1178 = vsel %vm1177, %v1169, %v1174
    %v1179 = vrsqrt.pop %v1168
    %v1180 = vmul.f32 %v1179, %v1168
    %v1181 = vmul.f32 %v1180, %v1179
    %v1182 = vmul.f32 0.5, %v1181
    %v1183 = vsub.f32 1.5, %v1182
    %v1184 = vmul.f32 %v1179, %v1183
    %vm1185 = vweird.f32 %v1168
    %vm1186 = vweird.f32 %v1179
    %vm1187 = vmor %vm1185, %vm1186
    %v1188 = vsel %vm1187, %v1179, %v1184
    %v1189 = vmul.f32 %v1153, %v1178
    %v1190 = vmul.f32 %v1154, %v1188
    %v1191 = vperm.slane %v1156, 0
    %v1192 = vmul.f32 %v1189, %v1191
    %v1193 = vmul.f32 %v1190, %v1191
    %s1194 = scalar_lea.vmem %s2, 192
    %v1195 = vld [vmem:[%s1194] sm:$0xff]
    %v1196 = vld [vmem:[%s1194 + $0x8] sm:$0xff]
    %v1197 = vld [vmem:[%s1194 + $0x10] sm:$0xff]
    %v1198 = vld [vmem:[%s1194 + $0x18] sm:$0xff]
    %v1199 = vld [vmem:[%s1194 + $0x20] sm:$0xff]
    %v1200 = vld [vmem:[%s1194 + $0x28] sm:$0xff]
    %v1201 = vld [vmem:[%s1194 + $0x30] sm:$0xff]
    %v1202 = vld [vmem:[%s1194 + $0x38] sm:$0xff]
    %v1203 = vld [vmem:[%s1194 + $0x40] sm:$0xff]
    %v1204 = vld [vmem:[%s1194 + $0x48] sm:$0xff]
    %v1205 = vld [vmem:[%s1194 + $0x50] sm:$0xff]
    %v1206 = vld [vmem:[%s1194 + $0x58] sm:$0xff]
    %v1207 = vld [vmem:[%s1194 + $0x60] sm:$0xff]
    %v1208 = vld [vmem:[%s1194 + $0x68] sm:$0xff]
    %v1209 = vld [vmem:[%s1194 + $0x70] sm:$0xff]
    %v1210 = vld [vmem:[%s1194 + $0x78] sm:$0xff]
    %v1211 = vld [vmem:[%s1194 + $0x80] sm:$0xff]
    %v1212 = vld [vmem:[%s1194 + $0x88] sm:$0xff]
    %v1213 = vld [vmem:[%s1194 + $0x90] sm:$0xff]
    %v1214 = vld [vmem:[%s1194 + $0x98] sm:$0xff]
    %v1215 = vld [vmem:[%s1194 + $0xa0] sm:$0xff]
    %v1216 = vld [vmem:[%s1194 + $0xa8] sm:$0xff]
    %v1217 = vld [vmem:[%s1194 + $0xb0] sm:$0xff]
    %v1218 = vld [vmem:[%s1194 + $0xb8] sm:$0xff]
    %v1220 = vsel %vm65, %v1192, 0
    %v1223 = vsel %vm65, %v1193, 0
    %1225 = vmatpush.msra.mxu0 0.0
    %1226 = vmatpush.msra.mxu0 0.0
    %1227 = vmatpush.msra.mxu0 0.0
    %1228 = vmatpush.msra.mxu0 0.0
    %1229 = vmatpush.msra.mxu0 0.0
    %1230 = vmatpush.msra.mxu0 0.0
    %1231 = vmatpush.msra.mxu0 0.0
    %1232 = vmatpush.msra.mxu0 0.0
    %1233 = vmatpush.msra.mxu0 %v1216
    %1234 = vmatpush.msra.mxu0 %v1213
    %1235 = vmatpush.msra.mxu0 %v1210
    %1236 = vmatpush.msra.mxu0 %v1207
    %1237 = vmatpush.msra.mxu0 %v1204
    %1238 = vmatpush.msra.mxu0 %v1201
    %1239 = vmatpush.msra.mxu0 %v1198
    %1240 = vmatpush.msra.mxu0 %v1195
    %1241 = vmatmul.f32.gmra.mxu0 %v1220
    %v1242 = vpop.f32.mrf.mxu0
    %v1243 = vadd.f32 0.0, %v1242
    %1244 = vmatmul.f32.gmra.mxu0 %v1223
    %v1245 = vpop.f32.mrf.mxu0
    %v1246 = vadd.f32 0.0, %v1245
    %1247 = vdwg.mxu0
    %1248 = vmatpush.msra.mxu0 0.0
    %1249 = vmatpush.msra.mxu0 0.0
    %1250 = vmatpush.msra.mxu0 0.0
    %1251 = vmatpush.msra.mxu0 0.0
    %1252 = vmatpush.msra.mxu0 0.0
    %1253 = vmatpush.msra.mxu0 0.0
    %1254 = vmatpush.msra.mxu0 0.0
    %1255 = vmatpush.msra.mxu0 0.0
    %1256 = vmatpush.msra.mxu0 %v1217
    %1257 = vmatpush.msra.mxu0 %v1214
    %1258 = vmatpush.msra.mxu0 %v1211
    %1259 = vmatpush.msra.mxu0 %v1208
    %1260 = vmatpush.msra.mxu0 %v1205
    %1261 = vmatpush.msra.mxu0 %v1202
    %1262 = vmatpush.msra.mxu0 %v1199
    %1263 = vmatpush.msra.mxu0 %v1196
    %1264 = vmatmul.f32.gmra.mxu0 %v1220
    %v1265 = vpop.f32.mrf.mxu0
    %v1266 = vadd.f32 0.0, %v1265
    %1267 = vmatmul.f32.gmra.mxu0 %v1223
    %v1268 = vpop.f32.mrf.mxu0
    %v1269 = vadd.f32 0.0, %v1268
    %1270 = vdwg.mxu0
    %1271 = vmatpush.msra.mxu0 0.0
    %1272 = vmatpush.msra.mxu0 0.0
    %1273 = vmatpush.msra.mxu0 0.0
    %1274 = vmatpush.msra.mxu0 0.0
    %1275 = vmatpush.msra.mxu0 0.0
    %1276 = vmatpush.msra.mxu0 0.0
    %1277 = vmatpush.msra.mxu0 0.0
    %1278 = vmatpush.msra.mxu0 0.0
    %1279 = vmatpush.msra.mxu0 %v1218
    %1280 = vmatpush.msra.mxu0 %v1215
    %1281 = vmatpush.msra.mxu0 %v1212
    %1282 = vmatpush.msra.mxu0 %v1209
    %1283 = vmatpush.msra.mxu0 %v1206
    %1284 = vmatpush.msra.mxu0 %v1203
    %1285 = vmatpush.msra.mxu0 %v1200
    %1286 = vmatpush.msra.mxu0 %v1197
    %1287 = vmatmul.f32.gmra.mxu0 %v1220
    %v1288 = vpop.f32.mrf.mxu0
    %v1289 = vadd.f32 0.0, %v1288
    %1290 = vmatmul.f32.gmra.mxu0 %v1223
    %v1291 = vpop.f32.mrf.mxu0
    %v1292 = vadd.f32 0.0, %v1291
    %1293 = vdwg.mxu0
    %v1294 = vmul.f32 %v1243, %v57
    %v1295 = vmul.f32 %v1246, %v58
    %v1296 = vmul.f32 %v1266, %v59
    %v1297 = vmul.f32 %v1269, %v60
    %v1298 = vadd.f32 %v1294, %v1296
    %v1299 = vadd.f32 %v1295, %v1297
    %1301 = vrot.lane.b32.xlu0 %v1298, 64
    %v1302 = vpop.permute.xlu0 %1301
    %v1303 = vsel %vm216, %v1298, 0
    %v1305 = vsel %vm216, %v1302, 0
    %1307 = vmatpush.xpose.msra.mxu0 0.0
    %1308 = vmatpush.xpose.msra.mxu0 0.0
    %1309 = vmatpush.xpose.msra.mxu0 0.0
    %1310 = vmatpush.xpose.msra.mxu0 0.0
    %1311 = vmatpush.xpose.msra.mxu0 0.0
    %1312 = vmatpush.xpose.msra.mxu0 0.0
    %1313 = vmatpush.xpose.msra.mxu0 0.0
    %1314 = vmatpush.xpose.msra.mxu0 0.0
    %1315 = vmatpush.xpose.msra.mxu0 0.0
    %1316 = vmatpush.xpose.msra.mxu0 0.0
    %1317 = vmatpush.xpose.msra.mxu0 0.0
    %1318 = vmatpush.xpose.msra.mxu0 0.0
    %1319 = vmatpush.xpose.msra.mxu0 0.0
    %1320 = vmatpush.xpose.msra.mxu0 0.0
    %1321 = vmatpush.xpose.msra.mxu0 0.0
    %1322 = vmatpush.xpose.msra.mxu0 %v1305
    %1323 = vmatmul.f32.gmra.mxu0 %v1303
    %v1324 = vpop.f32.mrf.mxu0
    %v1325 = vadd.f32 %v61, %v1324
    %1326 = vdwg.mxu0
    %v1327 = vsel %vm241, %v1325, -inf
    %1328 = vmax.xlane.f32.xlu0 %v1327
    %v1329 = vpop.xlane.xlu0 %1328
    %v1330 = vsub.f32 %v1325, %v1329
    %v1331 = vmul.f32 %v1330, 1.442695
    %v1332 = vpow.pop %v1331
    %v1333 = vsel %vm241, %v1332, 0.0
    %1334 = vadd.xlane.f32.xlu0 %v1333
    %v1335 = vpop.xlane.xlu0 %1334
    %v1336 = vrcp.pop %v1335
    %v1337 = vmul.f32 %v1335, %v1336
    %v1338 = vsub.f32 2.0, %v1337
    %v1339 = vmul.f32 %v1336, %v1338
    %v1340 = vmul.f32 %v1332, %v1339
    %v1342 = vsel %vm241, %v1340, 0
    %1344 = vmatpush.msra.mxu0 0.0
    %1345 = vmatpush.msra.mxu0 0.0
    %1346 = vmatpush.msra.mxu0 0.0
    %1347 = vmatpush.msra.mxu0 0.0
    %1348 = vmatpush.msra.mxu0 0.0
    %1349 = vmatpush.msra.mxu0 0.0
    %1350 = vmatpush.msra.mxu0 0.0
    %1351 = vmatpush.msra.mxu0 0.0
    %1352 = vmatpush.msra.mxu0 0.0
    %1353 = vmatpush.msra.mxu0 0.0
    %1354 = vmatpush.msra.mxu0 0.0
    %1355 = vmatpush.msra.mxu0 0.0
    %1356 = vmatpush.msra.mxu0 0.0
    %1357 = vmatpush.msra.mxu0 0.0
    %1358 = vmatpush.msra.mxu0 0.0
    %1359 = vmatpush.msra.mxu0 %v1289
    %1360 = vmatmul.f32.gmra.mxu0 %v1342
    %v1361 = vpop.f32.mrf.mxu0
    %v1362 = vadd.f32 0.0, %v1361
    %1363 = vdwg.mxu0
    %1364 = vrot.lane.b32.xlu0 %v1298, 112
    %v1365 = vpop.permute.xlu0 %1364
    %1366 = vrot.lane.b32.xlu0 %v1298, 48
    %v1367 = vpop.permute.xlu0 %1366
    %v1368 = vsel %vm216, %v1365, 0
    %v1370 = vsel %vm216, %v1367, 0
    %1372 = vmatpush.xpose.msra.mxu0 0.0
    %1373 = vmatpush.xpose.msra.mxu0 0.0
    %1374 = vmatpush.xpose.msra.mxu0 0.0
    %1375 = vmatpush.xpose.msra.mxu0 0.0
    %1376 = vmatpush.xpose.msra.mxu0 0.0
    %1377 = vmatpush.xpose.msra.mxu0 0.0
    %1378 = vmatpush.xpose.msra.mxu0 0.0
    %1379 = vmatpush.xpose.msra.mxu0 0.0
    %1380 = vmatpush.xpose.msra.mxu0 0.0
    %1381 = vmatpush.xpose.msra.mxu0 0.0
    %1382 = vmatpush.xpose.msra.mxu0 0.0
    %1383 = vmatpush.xpose.msra.mxu0 0.0
    %1384 = vmatpush.xpose.msra.mxu0 0.0
    %1385 = vmatpush.xpose.msra.mxu0 0.0
    %1386 = vmatpush.xpose.msra.mxu0 0.0
    %1387 = vmatpush.xpose.msra.mxu0 %v1370
    %1388 = vmatmul.f32.gmra.mxu0 %v1368
    %v1389 = vpop.f32.mrf.mxu0
    %v1390 = vadd.f32 %v61, %v1389
    %1391 = vdwg.mxu0
    %v1392 = vsel %vm241, %v1390, -inf
    %1393 = vmax.xlane.f32.xlu0 %v1392
    %v1394 = vpop.xlane.xlu0 %1393
    %v1395 = vsub.f32 %v1390, %v1394
    %v1396 = vmul.f32 %v1395, 1.442695
    %v1397 = vpow.pop %v1396
    %v1398 = vsel %vm241, %v1397, 0.0
    %1399 = vadd.xlane.f32.xlu0 %v1398
    %v1400 = vpop.xlane.xlu0 %1399
    %v1401 = vrcp.pop %v1400
    %v1402 = vmul.f32 %v1400, %v1401
    %v1403 = vsub.f32 2.0, %v1402
    %v1404 = vmul.f32 %v1401, %v1403
    %v1405 = vmul.f32 %v1397, %v1404
    %1407 = vrot.lane.b32.xlu0 %v1289, 112
    %v1408 = vpop.permute.xlu0 %1407
    %v1411 = vsel %vm241, %v1405, 0
    %1413 = vmatpush.msra.mxu0 0.0
    %1414 = vmatpush.msra.mxu0 0.0
    %1415 = vmatpush.msra.mxu0 0.0
    %1416 = vmatpush.msra.mxu0 0.0
    %1417 = vmatpush.msra.mxu0 0.0
    %1418 = vmatpush.msra.mxu0 0.0
    %1419 = vmatpush.msra.mxu0 0.0
    %1420 = vmatpush.msra.mxu0 0.0
    %1421 = vmatpush.msra.mxu0 0.0
    %1422 = vmatpush.msra.mxu0 0.0
    %1423 = vmatpush.msra.mxu0 0.0
    %1424 = vmatpush.msra.mxu0 0.0
    %1425 = vmatpush.msra.mxu0 0.0
    %1426 = vmatpush.msra.mxu0 0.0
    %1427 = vmatpush.msra.mxu0 0.0
    %1428 = vmatpush.msra.mxu0 %v1408
    %1429 = vmatmul.f32.gmra.mxu0 %v1411
    %v1430 = vpop.f32.mrf.mxu0
    %v1431 = vadd.f32 0.0, %v1430
    %1432 = vdwg.mxu0
    %1433 = vrot.lane.b32.xlu0 %v1298, 96
    %v1434 = vpop.permute.xlu0 %1433
    %1435 = vrot.lane.b32.xlu0 %v1298, 32
    %v1436 = vpop.permute.xlu0 %1435
    %v1437 = vsel %vm216, %v1434, 0
    %v1439 = vsel %vm216, %v1436, 0
    %1441 = vmatpush.xpose.msra.mxu0 0.0
    %1442 = vmatpush.xpose.msra.mxu0 0.0
    %1443 = vmatpush.xpose.msra.mxu0 0.0
    %1444 = vmatpush.xpose.msra.mxu0 0.0
    %1445 = vmatpush.xpose.msra.mxu0 0.0
    %1446 = vmatpush.xpose.msra.mxu0 0.0
    %1447 = vmatpush.xpose.msra.mxu0 0.0
    %1448 = vmatpush.xpose.msra.mxu0 0.0
    %1449 = vmatpush.xpose.msra.mxu0 0.0
    %1450 = vmatpush.xpose.msra.mxu0 0.0
    %1451 = vmatpush.xpose.msra.mxu0 0.0
    %1452 = vmatpush.xpose.msra.mxu0 0.0
    %1453 = vmatpush.xpose.msra.mxu0 0.0
    %1454 = vmatpush.xpose.msra.mxu0 0.0
    %1455 = vmatpush.xpose.msra.mxu0 0.0
    %1456 = vmatpush.xpose.msra.mxu0 %v1439
    %1457 = vmatmul.f32.gmra.mxu0 %v1437
    %v1458 = vpop.f32.mrf.mxu0
    %v1459 = vadd.f32 %v61, %v1458
    %1460 = vdwg.mxu0
    %v1461 = vsel %vm241, %v1459, -inf
    %1462 = vmax.xlane.f32.xlu0 %v1461
    %v1463 = vpop.xlane.xlu0 %1462
    %v1464 = vsub.f32 %v1459, %v1463
    %v1465 = vmul.f32 %v1464, 1.442695
    %v1466 = vpow.pop %v1465
    %v1467 = vsel %vm241, %v1466, 0.0
    %1468 = vadd.xlane.f32.xlu0 %v1467
    %v1469 = vpop.xlane.xlu0 %1468
    %v1470 = vrcp.pop %v1469
    %v1471 = vmul.f32 %v1469, %v1470
    %v1472 = vsub.f32 2.0, %v1471
    %v1473 = vmul.f32 %v1470, %v1472
    %v1474 = vmul.f32 %v1466, %v1473
    %1475 = vrot.lane.b32.xlu0 %v1289, 96
    %v1476 = vpop.permute.xlu0 %1475
    %v1479 = vsel %vm241, %v1474, 0
    %1481 = vmatpush.msra.mxu0 0.0
    %1482 = vmatpush.msra.mxu0 0.0
    %1483 = vmatpush.msra.mxu0 0.0
    %1484 = vmatpush.msra.mxu0 0.0
    %1485 = vmatpush.msra.mxu0 0.0
    %1486 = vmatpush.msra.mxu0 0.0
    %1487 = vmatpush.msra.mxu0 0.0
    %1488 = vmatpush.msra.mxu0 0.0
    %1489 = vmatpush.msra.mxu0 0.0
    %1490 = vmatpush.msra.mxu0 0.0
    %1491 = vmatpush.msra.mxu0 0.0
    %1492 = vmatpush.msra.mxu0 0.0
    %1493 = vmatpush.msra.mxu0 0.0
    %1494 = vmatpush.msra.mxu0 0.0
    %1495 = vmatpush.msra.mxu0 0.0
    %1496 = vmatpush.msra.mxu0 %v1476
    %1497 = vmatmul.f32.gmra.mxu0 %v1479
    %v1498 = vpop.f32.mrf.mxu0
    %v1499 = vadd.f32 0.0, %v1498
    %1500 = vdwg.mxu0
    %1501 = vrot.lane.b32.xlu0 %v1298, 80
    %v1502 = vpop.permute.xlu0 %1501
    %1503 = vrot.lane.b32.xlu0 %v1298, 16
    %v1504 = vpop.permute.xlu0 %1503
    %v1505 = vsel %vm216, %v1502, 0
    %v1507 = vsel %vm216, %v1504, 0
    %1509 = vmatpush.xpose.msra.mxu0 0.0
    %1510 = vmatpush.xpose.msra.mxu0 0.0
    %1511 = vmatpush.xpose.msra.mxu0 0.0
    %1512 = vmatpush.xpose.msra.mxu0 0.0
    %1513 = vmatpush.xpose.msra.mxu0 0.0
    %1514 = vmatpush.xpose.msra.mxu0 0.0
    %1515 = vmatpush.xpose.msra.mxu0 0.0
    %1516 = vmatpush.xpose.msra.mxu0 0.0
    %1517 = vmatpush.xpose.msra.mxu0 0.0
    %1518 = vmatpush.xpose.msra.mxu0 0.0
    %1519 = vmatpush.xpose.msra.mxu0 0.0
    %1520 = vmatpush.xpose.msra.mxu0 0.0
    %1521 = vmatpush.xpose.msra.mxu0 0.0
    %1522 = vmatpush.xpose.msra.mxu0 0.0
    %1523 = vmatpush.xpose.msra.mxu0 0.0
    %1524 = vmatpush.xpose.msra.mxu0 %v1507
    %1525 = vmatmul.f32.gmra.mxu0 %v1505
    %v1526 = vpop.f32.mrf.mxu0
    %v1527 = vadd.f32 %v61, %v1526
    %1528 = vdwg.mxu0
    %v1529 = vsel %vm241, %v1527, -inf
    %1530 = vmax.xlane.f32.xlu0 %v1529
    %v1531 = vpop.xlane.xlu0 %1530
    %v1532 = vsub.f32 %v1527, %v1531
    %v1533 = vmul.f32 %v1532, 1.442695
    %v1534 = vpow.pop %v1533
    %v1535 = vsel %vm241, %v1534, 0.0
    %1536 = vadd.xlane.f32.xlu0 %v1535
    %v1537 = vpop.xlane.xlu0 %1536
    %v1538 = vrcp.pop %v1537
    %v1539 = vmul.f32 %v1537, %v1538
    %v1540 = vsub.f32 2.0, %v1539
    %v1541 = vmul.f32 %v1538, %v1540
    %v1542 = vmul.f32 %v1534, %v1541
    %1543 = vrot.lane.b32.xlu0 %v1289, 80
    %v1544 = vpop.permute.xlu0 %1543
    %v1547 = vsel %vm241, %v1542, 0
    %1549 = vmatpush.msra.mxu0 0.0
    %1550 = vmatpush.msra.mxu0 0.0
    %1551 = vmatpush.msra.mxu0 0.0
    %1552 = vmatpush.msra.mxu0 0.0
    %1553 = vmatpush.msra.mxu0 0.0
    %1554 = vmatpush.msra.mxu0 0.0
    %1555 = vmatpush.msra.mxu0 0.0
    %1556 = vmatpush.msra.mxu0 0.0
    %1557 = vmatpush.msra.mxu0 0.0
    %1558 = vmatpush.msra.mxu0 0.0
    %1559 = vmatpush.msra.mxu0 0.0
    %1560 = vmatpush.msra.mxu0 0.0
    %1561 = vmatpush.msra.mxu0 0.0
    %1562 = vmatpush.msra.mxu0 0.0
    %1563 = vmatpush.msra.mxu0 0.0
    %1564 = vmatpush.msra.mxu0 %v1544
    %1565 = vmatmul.f32.gmra.mxu0 %v1547
    %v1566 = vpop.f32.mrf.mxu0
    %v1567 = vadd.f32 0.0, %v1566
    %1568 = vdwg.mxu0
    %1570 = vrot.lane.b32.xlu0 %v1431, 16
    %v1571 = vpop.permute.xlu0 %1570
    %1574 = vrot.lane.b32.xlu0 %v1499, 32
    %v1575 = vpop.permute.xlu0 %1574
    %1578 = vrot.lane.b32.xlu0 %v1567, 48
    %v1579 = vpop.permute.xlu0 %1578
    %v1581 = vsel %vm216, %v1362, %v1571
    %v1582 = vsel %vm497, %v1581, %v1575
    %v1583 = vsel %vm499, %v1582, %v1579
    %1585 = vrot.lane.b32.xlu0 %v1299, 64
    %v1586 = vpop.permute.xlu0 %1585
    %v1587 = vsel %vm216, %v1299, 0
    %v1589 = vsel %vm216, %v1586, 0
    %1591 = vmatpush.xpose.msra.mxu0 0.0
    %1592 = vmatpush.xpose.msra.mxu0 0.0
    %1593 = vmatpush.xpose.msra.mxu0 0.0
    %1594 = vmatpush.xpose.msra.mxu0 0.0
    %1595 = vmatpush.xpose.msra.mxu0 0.0
    %1596 = vmatpush.xpose.msra.mxu0 0.0
    %1597 = vmatpush.xpose.msra.mxu0 0.0
    %1598 = vmatpush.xpose.msra.mxu0 0.0
    %1599 = vmatpush.xpose.msra.mxu0 0.0
    %1600 = vmatpush.xpose.msra.mxu0 0.0
    %1601 = vmatpush.xpose.msra.mxu0 0.0
    %1602 = vmatpush.xpose.msra.mxu0 0.0
    %1603 = vmatpush.xpose.msra.mxu0 0.0
    %1604 = vmatpush.xpose.msra.mxu0 0.0
    %1605 = vmatpush.xpose.msra.mxu0 0.0
    %1606 = vmatpush.xpose.msra.mxu0 %v1589
    %1607 = vmatmul.f32.gmra.mxu0 %v1587
    %v1608 = vpop.f32.mrf.mxu0
    %v1609 = vadd.f32 %v61, %v1608
    %1610 = vdwg.mxu0
    %v1611 = vsel %vm241, %v1609, -inf
    %1612 = vmax.xlane.f32.xlu0 %v1611
    %v1613 = vpop.xlane.xlu0 %1612
    %v1614 = vsub.f32 %v1609, %v1613
    %v1615 = vmul.f32 %v1614, 1.442695
    %v1616 = vpow.pop %v1615
    %v1617 = vsel %vm241, %v1616, 0.0
    %1618 = vadd.xlane.f32.xlu0 %v1617
    %v1619 = vpop.xlane.xlu0 %1618
    %v1620 = vrcp.pop %v1619
    %v1621 = vmul.f32 %v1619, %v1620
    %v1622 = vsub.f32 2.0, %v1621
    %v1623 = vmul.f32 %v1620, %v1622
    %v1624 = vmul.f32 %v1616, %v1623
    %v1626 = vsel %vm241, %v1624, 0
    %1628 = vmatpush.msra.mxu0 0.0
    %1629 = vmatpush.msra.mxu0 0.0
    %1630 = vmatpush.msra.mxu0 0.0
    %1631 = vmatpush.msra.mxu0 0.0
    %1632 = vmatpush.msra.mxu0 0.0
    %1633 = vmatpush.msra.mxu0 0.0
    %1634 = vmatpush.msra.mxu0 0.0
    %1635 = vmatpush.msra.mxu0 0.0
    %1636 = vmatpush.msra.mxu0 0.0
    %1637 = vmatpush.msra.mxu0 0.0
    %1638 = vmatpush.msra.mxu0 0.0
    %1639 = vmatpush.msra.mxu0 0.0
    %1640 = vmatpush.msra.mxu0 0.0
    %1641 = vmatpush.msra.mxu0 0.0
    %1642 = vmatpush.msra.mxu0 0.0
    %1643 = vmatpush.msra.mxu0 %v1292
    %1644 = vmatmul.f32.gmra.mxu0 %v1626
    %v1645 = vpop.f32.mrf.mxu0
    %v1646 = vadd.f32 0.0, %v1645
    %1647 = vdwg.mxu0
    %1648 = vrot.lane.b32.xlu0 %v1299, 112
    %v1649 = vpop.permute.xlu0 %1648
    %1650 = vrot.lane.b32.xlu0 %v1299, 48
    %v1651 = vpop.permute.xlu0 %1650
    %v1652 = vsel %vm216, %v1649, 0
    %v1654 = vsel %vm216, %v1651, 0
    %1656 = vmatpush.xpose.msra.mxu0 0.0
    %1657 = vmatpush.xpose.msra.mxu0 0.0
    %1658 = vmatpush.xpose.msra.mxu0 0.0
    %1659 = vmatpush.xpose.msra.mxu0 0.0
    %1660 = vmatpush.xpose.msra.mxu0 0.0
    %1661 = vmatpush.xpose.msra.mxu0 0.0
    %1662 = vmatpush.xpose.msra.mxu0 0.0
    %1663 = vmatpush.xpose.msra.mxu0 0.0
    %1664 = vmatpush.xpose.msra.mxu0 0.0
    %1665 = vmatpush.xpose.msra.mxu0 0.0
    %1666 = vmatpush.xpose.msra.mxu0 0.0
    %1667 = vmatpush.xpose.msra.mxu0 0.0
    %1668 = vmatpush.xpose.msra.mxu0 0.0
    %1669 = vmatpush.xpose.msra.mxu0 0.0
    %1670 = vmatpush.xpose.msra.mxu0 0.0
    %1671 = vmatpush.xpose.msra.mxu0 %v1654
    %1672 = vmatmul.f32.gmra.mxu0 %v1652
    %v1673 = vpop.f32.mrf.mxu0
    %v1674 = vadd.f32 %v61, %v1673
    %1675 = vdwg.mxu0
    %v1676 = vsel %vm241, %v1674, -inf
    %1677 = vmax.xlane.f32.xlu0 %v1676
    %v1678 = vpop.xlane.xlu0 %1677
    %v1679 = vsub.f32 %v1674, %v1678
    %v1680 = vmul.f32 %v1679, 1.442695
    %v1681 = vpow.pop %v1680
    %v1682 = vsel %vm241, %v1681, 0.0
    %1683 = vadd.xlane.f32.xlu0 %v1682
    %v1684 = vpop.xlane.xlu0 %1683
    %v1685 = vrcp.pop %v1684
    %v1686 = vmul.f32 %v1684, %v1685
    %v1687 = vsub.f32 2.0, %v1686
    %v1688 = vmul.f32 %v1685, %v1687
    %v1689 = vmul.f32 %v1681, %v1688
    %1691 = vrot.lane.b32.xlu0 %v1292, 112
    %v1692 = vpop.permute.xlu0 %1691
    %v1695 = vsel %vm241, %v1689, 0
    %1697 = vmatpush.msra.mxu0 0.0
    %1698 = vmatpush.msra.mxu0 0.0
    %1699 = vmatpush.msra.mxu0 0.0
    %1700 = vmatpush.msra.mxu0 0.0
    %1701 = vmatpush.msra.mxu0 0.0
    %1702 = vmatpush.msra.mxu0 0.0
    %1703 = vmatpush.msra.mxu0 0.0
    %1704 = vmatpush.msra.mxu0 0.0
    %1705 = vmatpush.msra.mxu0 0.0
    %1706 = vmatpush.msra.mxu0 0.0
    %1707 = vmatpush.msra.mxu0 0.0
    %1708 = vmatpush.msra.mxu0 0.0
    %1709 = vmatpush.msra.mxu0 0.0
    %1710 = vmatpush.msra.mxu0 0.0
    %1711 = vmatpush.msra.mxu0 0.0
    %1712 = vmatpush.msra.mxu0 %v1692
    %1713 = vmatmul.f32.gmra.mxu0 %v1695
    %v1714 = vpop.f32.mrf.mxu0
    %v1715 = vadd.f32 0.0, %v1714
    %1716 = vdwg.mxu0
    %1717 = vrot.lane.b32.xlu0 %v1299, 96
    %v1718 = vpop.permute.xlu0 %1717
    %1719 = vrot.lane.b32.xlu0 %v1299, 32
    %v1720 = vpop.permute.xlu0 %1719
    %v1721 = vsel %vm216, %v1718, 0
    %v1723 = vsel %vm216, %v1720, 0
    %1725 = vmatpush.xpose.msra.mxu0 0.0
    %1726 = vmatpush.xpose.msra.mxu0 0.0
    %1727 = vmatpush.xpose.msra.mxu0 0.0
    %1728 = vmatpush.xpose.msra.mxu0 0.0
    %1729 = vmatpush.xpose.msra.mxu0 0.0
    %1730 = vmatpush.xpose.msra.mxu0 0.0
    %1731 = vmatpush.xpose.msra.mxu0 0.0
    %1732 = vmatpush.xpose.msra.mxu0 0.0
    %1733 = vmatpush.xpose.msra.mxu0 0.0
    %1734 = vmatpush.xpose.msra.mxu0 0.0
    %1735 = vmatpush.xpose.msra.mxu0 0.0
    %1736 = vmatpush.xpose.msra.mxu0 0.0
    %1737 = vmatpush.xpose.msra.mxu0 0.0
    %1738 = vmatpush.xpose.msra.mxu0 0.0
    %1739 = vmatpush.xpose.msra.mxu0 0.0
    %1740 = vmatpush.xpose.msra.mxu0 %v1723
    %1741 = vmatmul.f32.gmra.mxu0 %v1721
    %v1742 = vpop.f32.mrf.mxu0
    %v1743 = vadd.f32 %v61, %v1742
    %1744 = vdwg.mxu0
    %v1745 = vsel %vm241, %v1743, -inf
    %1746 = vmax.xlane.f32.xlu0 %v1745
    %v1747 = vpop.xlane.xlu0 %1746
    %v1748 = vsub.f32 %v1743, %v1747
    %v1749 = vmul.f32 %v1748, 1.442695
    %v1750 = vpow.pop %v1749
    %v1751 = vsel %vm241, %v1750, 0.0
    %1752 = vadd.xlane.f32.xlu0 %v1751
    %v1753 = vpop.xlane.xlu0 %1752
    %v1754 = vrcp.pop %v1753
    %v1755 = vmul.f32 %v1753, %v1754
    %v1756 = vsub.f32 2.0, %v1755
    %v1757 = vmul.f32 %v1754, %v1756
    %v1758 = vmul.f32 %v1750, %v1757
    %1759 = vrot.lane.b32.xlu0 %v1292, 96
    %v1760 = vpop.permute.xlu0 %1759
    %v1763 = vsel %vm241, %v1758, 0
    %1765 = vmatpush.msra.mxu0 0.0
    %1766 = vmatpush.msra.mxu0 0.0
    %1767 = vmatpush.msra.mxu0 0.0
    %1768 = vmatpush.msra.mxu0 0.0
    %1769 = vmatpush.msra.mxu0 0.0
    %1770 = vmatpush.msra.mxu0 0.0
    %1771 = vmatpush.msra.mxu0 0.0
    %1772 = vmatpush.msra.mxu0 0.0
    %1773 = vmatpush.msra.mxu0 0.0
    %1774 = vmatpush.msra.mxu0 0.0
    %1775 = vmatpush.msra.mxu0 0.0
    %1776 = vmatpush.msra.mxu0 0.0
    %1777 = vmatpush.msra.mxu0 0.0
    %1778 = vmatpush.msra.mxu0 0.0
    %1779 = vmatpush.msra.mxu0 0.0
    %1780 = vmatpush.msra.mxu0 %v1760
    %1781 = vmatmul.f32.gmra.mxu0 %v1763
    %v1782 = vpop.f32.mrf.mxu0
    %v1783 = vadd.f32 0.0, %v1782
    %1784 = vdwg.mxu0
    %1785 = vrot.lane.b32.xlu0 %v1299, 80
    %v1786 = vpop.permute.xlu0 %1785
    %1787 = vrot.lane.b32.xlu0 %v1299, 16
    %v1788 = vpop.permute.xlu0 %1787
    %v1789 = vsel %vm216, %v1786, 0
    %v1791 = vsel %vm216, %v1788, 0
    %1793 = vmatpush.xpose.msra.mxu0 0.0
    %1794 = vmatpush.xpose.msra.mxu0 0.0
    %1795 = vmatpush.xpose.msra.mxu0 0.0
    %1796 = vmatpush.xpose.msra.mxu0 0.0
    %1797 = vmatpush.xpose.msra.mxu0 0.0
    %1798 = vmatpush.xpose.msra.mxu0 0.0
    %1799 = vmatpush.xpose.msra.mxu0 0.0
    %1800 = vmatpush.xpose.msra.mxu0 0.0
    %1801 = vmatpush.xpose.msra.mxu0 0.0
    %1802 = vmatpush.xpose.msra.mxu0 0.0
    %1803 = vmatpush.xpose.msra.mxu0 0.0
    %1804 = vmatpush.xpose.msra.mxu0 0.0
    %1805 = vmatpush.xpose.msra.mxu0 0.0
    %1806 = vmatpush.xpose.msra.mxu0 0.0
    %1807 = vmatpush.xpose.msra.mxu0 0.0
    %1808 = vmatpush.xpose.msra.mxu0 %v1791
    %1809 = vmatmul.f32.gmra.mxu0 %v1789
    %v1810 = vpop.f32.mrf.mxu0
    %v1811 = vadd.f32 %v61, %v1810
    %1812 = vdwg.mxu0
    %v1813 = vsel %vm241, %v1811, -inf
    %1814 = vmax.xlane.f32.xlu0 %v1813
    %v1815 = vpop.xlane.xlu0 %1814
    %v1816 = vsub.f32 %v1811, %v1815
    %v1817 = vmul.f32 %v1816, 1.442695
    %v1818 = vpow.pop %v1817
    %v1819 = vsel %vm241, %v1818, 0.0
    %1820 = vadd.xlane.f32.xlu0 %v1819
    %v1821 = vpop.xlane.xlu0 %1820
    %v1822 = vrcp.pop %v1821
    %v1823 = vmul.f32 %v1821, %v1822
    %v1824 = vsub.f32 2.0, %v1823
    %v1825 = vmul.f32 %v1822, %v1824
    %v1826 = vmul.f32 %v1818, %v1825
    %1827 = vrot.lane.b32.xlu0 %v1292, 80
    %v1828 = vpop.permute.xlu0 %1827
    %v1831 = vsel %vm241, %v1826, 0
    %1833 = vmatpush.msra.mxu0 0.0
    %1834 = vmatpush.msra.mxu0 0.0
    %1835 = vmatpush.msra.mxu0 0.0
    %1836 = vmatpush.msra.mxu0 0.0
    %1837 = vmatpush.msra.mxu0 0.0
    %1838 = vmatpush.msra.mxu0 0.0
    %1839 = vmatpush.msra.mxu0 0.0
    %1840 = vmatpush.msra.mxu0 0.0
    %1841 = vmatpush.msra.mxu0 0.0
    %1842 = vmatpush.msra.mxu0 0.0
    %1843 = vmatpush.msra.mxu0 0.0
    %1844 = vmatpush.msra.mxu0 0.0
    %1845 = vmatpush.msra.mxu0 0.0
    %1846 = vmatpush.msra.mxu0 0.0
    %1847 = vmatpush.msra.mxu0 0.0
    %1848 = vmatpush.msra.mxu0 %v1828
    %1849 = vmatmul.f32.gmra.mxu0 %v1831
    %v1850 = vpop.f32.mrf.mxu0
    %v1851 = vadd.f32 0.0, %v1850
    %1852 = vdwg.mxu0
    %1854 = vrot.lane.b32.xlu0 %v1715, 16
    %v1855 = vpop.permute.xlu0 %1854
    %1858 = vrot.lane.b32.xlu0 %v1783, 32
    %v1859 = vpop.permute.xlu0 %1858
    %1862 = vrot.lane.b32.xlu0 %v1851, 48
    %v1863 = vpop.permute.xlu0 %1862
    %v1865 = vsel %vm216, %v1646, %v1855
    %v1866 = vsel %vm497, %v1865, %v1859
    %v1867 = vsel %vm499, %v1866, %v1863
    %s1868 = scalar_lea.vmem %s3, 64
    %v1869 = vld [vmem:[%s1868] sm:$0xff]
    %v1870 = vld [vmem:[%s1868 + $0x8] sm:$0xff]
    %v1871 = vld [vmem:[%s1868 + $0x10] sm:$0xff]
    %v1872 = vld [vmem:[%s1868 + $0x18] sm:$0xff]
    %v1873 = vld [vmem:[%s1868 + $0x20] sm:$0xff]
    %v1874 = vld [vmem:[%s1868 + $0x28] sm:$0xff]
    %v1875 = vld [vmem:[%s1868 + $0x30] sm:$0xff]
    %v1876 = vld [vmem:[%s1868 + $0x38] sm:$0xff]
    %v1878 = vsel %vm65, %v1583, 0
    %v1881 = vsel %vm65, %v1867, 0
    %1883 = vmatpush.msra.mxu0 0.0
    %1884 = vmatpush.msra.mxu0 0.0
    %1885 = vmatpush.msra.mxu0 0.0
    %1886 = vmatpush.msra.mxu0 0.0
    %1887 = vmatpush.msra.mxu0 0.0
    %1888 = vmatpush.msra.mxu0 0.0
    %1889 = vmatpush.msra.mxu0 0.0
    %1890 = vmatpush.msra.mxu0 0.0
    %1891 = vmatpush.msra.mxu0 %v1876
    %1892 = vmatpush.msra.mxu0 %v1875
    %1893 = vmatpush.msra.mxu0 %v1874
    %1894 = vmatpush.msra.mxu0 %v1873
    %1895 = vmatpush.msra.mxu0 %v1872
    %1896 = vmatpush.msra.mxu0 %v1871
    %1897 = vmatpush.msra.mxu0 %v1870
    %1898 = vmatpush.msra.mxu0 %v1869
    %1899 = vmatmul.f32.gmra.mxu0 %v1878
    %v1900 = vpop.f32.mrf.mxu0
    %v1901 = vadd.f32 0.0, %v1900
    %1902 = vmatmul.f32.gmra.mxu0 %v1881
    %v1903 = vpop.f32.mrf.mxu0
    %v1904 = vadd.f32 0.0, %v1903
    %1905 = vdwg.mxu0
    %v1906 = vadd.f32 %v1153, %v1901
    %v1907 = vadd.f32 %v1154, %v1904
    %v1908 = vmul.f32 %v1906, %v1906
    %v1909 = vmul.f32 %v1907, %v1907
    %v1910 = vsel %vm65, %v1908, 0.0
    %1911 = vadd.xlane.f32.xlu0 %v1910
    %v1912 = vpop.xlane.xlu0 %1911
    %v1913 = vsel %vm65, %v1909, 0.0
    %1914 = vadd.xlane.f32.xlu0 %v1913
    %v1915 = vpop.xlane.xlu0 %1914
    %v1916 = vmul.f32 %v1912, %v78
    %v1917 = vmul.f32 %v1915, %v78
    %v1918 = vadd.f32 %v1916, 1e-06
    %v1919 = vadd.f32 %v1917, 1e-06
    %v1920 = vrsqrt.pop %v1918
    %v1921 = vmul.f32 %v1920, %v1918
    %v1922 = vmul.f32 %v1921, %v1920
    %v1923 = vmul.f32 0.5, %v1922
    %v1924 = vsub.f32 1.5, %v1923
    %v1925 = vmul.f32 %v1920, %v1924
    %vm1926 = vweird.f32 %v1918
    %vm1927 = vweird.f32 %v1920
    %vm1928 = vmor %vm1926, %vm1927
    %v1929 = vsel %vm1928, %v1920, %v1925
    %v1930 = vrsqrt.pop %v1919
    %v1931 = vmul.f32 %v1930, %v1919
    %v1932 = vmul.f32 %v1931, %v1930
    %v1933 = vmul.f32 0.5, %v1932
    %v1934 = vsub.f32 1.5, %v1933
    %v1935 = vmul.f32 %v1930, %v1934
    %vm1936 = vweird.f32 %v1919
    %vm1937 = vweird.f32 %v1930
    %vm1938 = vmor %vm1936, %vm1937
    %v1939 = vsel %vm1938, %v1930, %v1935
    %v1940 = vmul.f32 %v1906, %v1929
    %v1941 = vmul.f32 %v1907, %v1939
    %v1942 = vperm.slane %v1156, 1
    %v1943 = vmul.f32 %v1940, %v1942
    %v1944 = vmul.f32 %v1941, %v1942
    %s1945 = scalar_lea.vmem %s4, 256
    %v1946 = vld [vmem:[%s1945] sm:$0xff]
    %v1947 = vld [vmem:[%s1945 + $0x8] sm:$0xff]
    %v1948 = vld [vmem:[%s1945 + $0x10] sm:$0xff]
    %v1949 = vld [vmem:[%s1945 + $0x18] sm:$0xff]
    %v1950 = vld [vmem:[%s1945 + $0x20] sm:$0xff]
    %v1951 = vld [vmem:[%s1945 + $0x28] sm:$0xff]
    %v1952 = vld [vmem:[%s1945 + $0x30] sm:$0xff]
    %v1953 = vld [vmem:[%s1945 + $0x38] sm:$0xff]
    %v1954 = vld [vmem:[%s1945 + $0x40] sm:$0xff]
    %v1955 = vld [vmem:[%s1945 + $0x48] sm:$0xff]
    %v1956 = vld [vmem:[%s1945 + $0x50] sm:$0xff]
    %v1957 = vld [vmem:[%s1945 + $0x58] sm:$0xff]
    %v1958 = vld [vmem:[%s1945 + $0x60] sm:$0xff]
    %v1959 = vld [vmem:[%s1945 + $0x68] sm:$0xff]
    %v1960 = vld [vmem:[%s1945 + $0x70] sm:$0xff]
    %v1961 = vld [vmem:[%s1945 + $0x78] sm:$0xff]
    %v1962 = vld [vmem:[%s1945 + $0x80] sm:$0xff]
    %v1963 = vld [vmem:[%s1945 + $0x88] sm:$0xff]
    %v1964 = vld [vmem:[%s1945 + $0x90] sm:$0xff]
    %v1965 = vld [vmem:[%s1945 + $0x98] sm:$0xff]
    %v1966 = vld [vmem:[%s1945 + $0xa0] sm:$0xff]
    %v1967 = vld [vmem:[%s1945 + $0xa8] sm:$0xff]
    %v1968 = vld [vmem:[%s1945 + $0xb0] sm:$0xff]
    %v1969 = vld [vmem:[%s1945 + $0xb8] sm:$0xff]
    %v1970 = vld [vmem:[%s1945 + $0xc0] sm:$0xff]
    %v1971 = vld [vmem:[%s1945 + $0xc8] sm:$0xff]
    %v1972 = vld [vmem:[%s1945 + $0xd0] sm:$0xff]
    %v1973 = vld [vmem:[%s1945 + $0xd8] sm:$0xff]
    %v1974 = vld [vmem:[%s1945 + $0xe0] sm:$0xff]
    %v1975 = vld [vmem:[%s1945 + $0xe8] sm:$0xff]
    %v1976 = vld [vmem:[%s1945 + $0xf0] sm:$0xff]
    %v1977 = vld [vmem:[%s1945 + $0xf8] sm:$0xff]
    %v1979 = vsel %vm65, %v1943, 0
    %v1982 = vsel %vm65, %v1944, 0
    %1984 = vmatpush.msra.mxu0 0.0
    %1985 = vmatpush.msra.mxu0 0.0
    %1986 = vmatpush.msra.mxu0 0.0
    %1987 = vmatpush.msra.mxu0 0.0
    %1988 = vmatpush.msra.mxu0 0.0
    %1989 = vmatpush.msra.mxu0 0.0
    %1990 = vmatpush.msra.mxu0 0.0
    %1991 = vmatpush.msra.mxu0 0.0
    %1992 = vmatpush.msra.mxu0 %v1974
    %1993 = vmatpush.msra.mxu0 %v1970
    %1994 = vmatpush.msra.mxu0 %v1966
    %1995 = vmatpush.msra.mxu0 %v1962
    %1996 = vmatpush.msra.mxu0 %v1958
    %1997 = vmatpush.msra.mxu0 %v1954
    %1998 = vmatpush.msra.mxu0 %v1950
    %1999 = vmatpush.msra.mxu0 %v1946
    %2000 = vmatmul.f32.gmra.mxu0 %v1979
    %v2001 = vpop.f32.mrf.mxu0
    %v2002 = vadd.f32 0.0, %v2001
    %2003 = vmatmul.f32.gmra.mxu0 %v1982
    %v2004 = vpop.f32.mrf.mxu0
    %v2005 = vadd.f32 0.0, %v2004
    %2006 = vdwg.mxu0
    %2007 = vmatpush.msra.mxu0 0.0
    %2008 = vmatpush.msra.mxu0 0.0
    %2009 = vmatpush.msra.mxu0 0.0
    %2010 = vmatpush.msra.mxu0 0.0
    %2011 = vmatpush.msra.mxu0 0.0
    %2012 = vmatpush.msra.mxu0 0.0
    %2013 = vmatpush.msra.mxu0 0.0
    %2014 = vmatpush.msra.mxu0 0.0
    %2015 = vmatpush.msra.mxu0 %v1975
    %2016 = vmatpush.msra.mxu0 %v1971
    %2017 = vmatpush.msra.mxu0 %v1967
    %2018 = vmatpush.msra.mxu0 %v1963
    %2019 = vmatpush.msra.mxu0 %v1959
    %2020 = vmatpush.msra.mxu0 %v1955
    %2021 = vmatpush.msra.mxu0 %v1951
    %2022 = vmatpush.msra.mxu0 %v1947
    %2023 = vmatmul.f32.gmra.mxu0 %v1979
    %v2024 = vpop.f32.mrf.mxu0
    %v2025 = vadd.f32 0.0, %v2024
    %2026 = vmatmul.f32.gmra.mxu0 %v1982
    %v2027 = vpop.f32.mrf.mxu0
    %v2028 = vadd.f32 0.0, %v2027
    %2029 = vdwg.mxu0
    %2030 = vmatpush.msra.mxu0 0.0
    %2031 = vmatpush.msra.mxu0 0.0
    %2032 = vmatpush.msra.mxu0 0.0
    %2033 = vmatpush.msra.mxu0 0.0
    %2034 = vmatpush.msra.mxu0 0.0
    %2035 = vmatpush.msra.mxu0 0.0
    %2036 = vmatpush.msra.mxu0 0.0
    %2037 = vmatpush.msra.mxu0 0.0
    %2038 = vmatpush.msra.mxu0 %v1976
    %2039 = vmatpush.msra.mxu0 %v1972
    %2040 = vmatpush.msra.mxu0 %v1968
    %2041 = vmatpush.msra.mxu0 %v1964
    %2042 = vmatpush.msra.mxu0 %v1960
    %2043 = vmatpush.msra.mxu0 %v1956
    %2044 = vmatpush.msra.mxu0 %v1952
    %2045 = vmatpush.msra.mxu0 %v1948
    %2046 = vmatmul.f32.gmra.mxu0 %v1979
    %v2047 = vpop.f32.mrf.mxu0
    %v2048 = vadd.f32 0.0, %v2047
    %2049 = vmatmul.f32.gmra.mxu0 %v1982
    %v2050 = vpop.f32.mrf.mxu0
    %v2051 = vadd.f32 0.0, %v2050
    %2052 = vdwg.mxu0
    %2053 = vmatpush.msra.mxu0 0.0
    %2054 = vmatpush.msra.mxu0 0.0
    %2055 = vmatpush.msra.mxu0 0.0
    %2056 = vmatpush.msra.mxu0 0.0
    %2057 = vmatpush.msra.mxu0 0.0
    %2058 = vmatpush.msra.mxu0 0.0
    %2059 = vmatpush.msra.mxu0 0.0
    %2060 = vmatpush.msra.mxu0 0.0
    %2061 = vmatpush.msra.mxu0 %v1977
    %2062 = vmatpush.msra.mxu0 %v1973
    %2063 = vmatpush.msra.mxu0 %v1969
    %2064 = vmatpush.msra.mxu0 %v1965
    %2065 = vmatpush.msra.mxu0 %v1961
    %2066 = vmatpush.msra.mxu0 %v1957
    %2067 = vmatpush.msra.mxu0 %v1953
    %2068 = vmatpush.msra.mxu0 %v1949
    %2069 = vmatmul.f32.gmra.mxu0 %v1979
    %v2070 = vpop.f32.mrf.mxu0
    %v2071 = vadd.f32 0.0, %v2070
    %2072 = vmatmul.f32.gmra.mxu0 %v1982
    %v2073 = vpop.f32.mrf.mxu0
    %v2074 = vadd.f32 0.0, %v2073
    %2075 = vdwg.mxu0
    %v2076 = vxor.u32 %v2002, 2147483648
    %v2077 = vxor.u32 %v2025, 2147483648
    %v2078 = vxor.u32 %v2005, 2147483648
    %v2079 = vxor.u32 %v2028, 2147483648
    %v2080 = vmul.f32 %v2076, 1.442695
    %v2081 = vpow.pop %v2080
    %v2082 = vmul.f32 %v2077, 1.442695
    %v2083 = vpow.pop %v2082
    %v2084 = vmul.f32 %v2078, 1.442695
    %v2085 = vpow.pop %v2084
    %v2086 = vmul.f32 %v2079, 1.442695
    %v2087 = vpow.pop %v2086
    %v2088 = vadd.f32 %v2081, 1.0
    %v2089 = vadd.f32 %v2083, 1.0
    %v2090 = vadd.f32 %v2085, 1.0
    %v2091 = vadd.f32 %v2087, 1.0
    %v2092 = vrcp.pop %v2088
    %v2093 = vmul.f32 %v2088, %v2092
    %v2094 = vsub.f32 1.0, %v2093
    %v2095 = vmul.f32 %v2092, %v2094
    %v2096 = vadd.f32 %v2092, %v2095
    %vm2097 = vweird.f32 %v2088
    %vm2098 = vweird.f32 %v2092
    %vm2099 = vmor %vm2097, %vm2098
    %v2100 = vsel %vm2099, %v2092, %v2096
    %v2101 = vand.u32 2147483647, %v2088
    %vm2102 = vcmp.eq.f32.partialorder %v2101, 8.507059e+37
    %v2103 = vand.u32 %v2088, 2147483648
    %v2104 = vor.u32 1.1754944e-38, %v2103
    %v2105 = vsel %vm2102, %v2104, %v2100
    %v2106 = vmul.f32 1.0, %v2105
    %v2107 = vrcp.pop %v2089
    %v2108 = vmul.f32 %v2089, %v2107
    %v2109 = vsub.f32 1.0, %v2108
    %v2110 = vmul.f32 %v2107, %v2109
    %v2111 = vadd.f32 %v2107, %v2110
    %vm2112 = vweird.f32 %v2089
    %vm2113 = vweird.f32 %v2107
    %vm2114 = vmor %vm2112, %vm2113
    %v2115 = vsel %vm2114, %v2107, %v2111
    %v2116 = vand.u32 2147483647, %v2089
    %vm2117 = vcmp.eq.f32.partialorder %v2116, 8.507059e+37
    %v2118 = vand.u32 %v2089, 2147483648
    %v2119 = vor.u32 1.1754944e-38, %v2118
    %v2120 = vsel %vm2117, %v2119, %v2115
    %v2121 = vmul.f32 1.0, %v2120
    %v2122 = vrcp.pop %v2090
    %v2123 = vmul.f32 %v2090, %v2122
    %v2124 = vsub.f32 1.0, %v2123
    %v2125 = vmul.f32 %v2122, %v2124
    %v2126 = vadd.f32 %v2122, %v2125
    %vm2127 = vweird.f32 %v2090
    %vm2128 = vweird.f32 %v2122
    %vm2129 = vmor %vm2127, %vm2128
    %v2130 = vsel %vm2129, %v2122, %v2126
    %v2131 = vand.u32 2147483647, %v2090
    %vm2132 = vcmp.eq.f32.partialorder %v2131, 8.507059e+37
    %v2133 = vand.u32 %v2090, 2147483648
    %v2134 = vor.u32 1.1754944e-38, %v2133
    %v2135 = vsel %vm2132, %v2134, %v2130
    %v2136 = vmul.f32 1.0, %v2135
    %v2137 = vrcp.pop %v2091
    %v2138 = vmul.f32 %v2091, %v2137
    %v2139 = vsub.f32 1.0, %v2138
    %v2140 = vmul.f32 %v2137, %v2139
    %v2141 = vadd.f32 %v2137, %v2140
    %vm2142 = vweird.f32 %v2091
    %vm2143 = vweird.f32 %v2137
    %vm2144 = vmor %vm2142, %vm2143
    %v2145 = vsel %vm2144, %v2137, %v2141
    %v2146 = vand.u32 2147483647, %v2091
    %vm2147 = vcmp.eq.f32.partialorder %v2146, 8.507059e+37
    %v2148 = vand.u32 %v2091, 2147483648
    %v2149 = vor.u32 1.1754944e-38, %v2148
    %v2150 = vsel %vm2147, %v2149, %v2145
    %v2151 = vmul.f32 1.0, %v2150
    %v2152 = vmul.f32 %v2002, %v2106
    %v2153 = vmul.f32 %v2025, %v2121
    %v2154 = vmul.f32 %v2005, %v2136
    %v2155 = vmul.f32 %v2028, %v2151
    %v2156 = vmul.f32 %v2152, %v2048
    %v2157 = vmul.f32 %v2153, %v2071
    %v2158 = vmul.f32 %v2154, %v2051
    %v2159 = vmul.f32 %v2155, %v2074
    %s2160 = scalar_lea.vmem %s5, 256
    %v2161 = vld [vmem:[%s2160] sm:$0xff]
    %v2162 = vld [vmem:[%s2160 + $0x8] sm:$0xff]
    %v2163 = vld [vmem:[%s2160 + $0x10] sm:$0xff]
    %v2164 = vld [vmem:[%s2160 + $0x18] sm:$0xff]
    %v2165 = vld [vmem:[%s2160 + $0x20] sm:$0xff]
    %v2166 = vld [vmem:[%s2160 + $0x28] sm:$0xff]
    %v2167 = vld [vmem:[%s2160 + $0x30] sm:$0xff]
    %v2168 = vld [vmem:[%s2160 + $0x38] sm:$0xff]
    %v2169 = vld [vmem:[%s2160 + $0x40] sm:$0xff]
    %v2170 = vld [vmem:[%s2160 + $0x48] sm:$0xff]
    %v2171 = vld [vmem:[%s2160 + $0x50] sm:$0xff]
    %v2172 = vld [vmem:[%s2160 + $0x58] sm:$0xff]
    %v2173 = vld [vmem:[%s2160 + $0x60] sm:$0xff]
    %v2174 = vld [vmem:[%s2160 + $0x68] sm:$0xff]
    %v2175 = vld [vmem:[%s2160 + $0x70] sm:$0xff]
    %v2176 = vld [vmem:[%s2160 + $0x78] sm:$0xff]
    %v2177 = vld [vmem:[%s2160 + $0x80] sm:$0xff]
    %v2178 = vld [vmem:[%s2160 + $0x88] sm:$0xff]
    %v2179 = vld [vmem:[%s2160 + $0x90] sm:$0xff]
    %v2180 = vld [vmem:[%s2160 + $0x98] sm:$0xff]
    %v2181 = vld [vmem:[%s2160 + $0xa0] sm:$0xff]
    %v2182 = vld [vmem:[%s2160 + $0xa8] sm:$0xff]
    %v2183 = vld [vmem:[%s2160 + $0xb0] sm:$0xff]
    %v2184 = vld [vmem:[%s2160 + $0xb8] sm:$0xff]
    %v2185 = vld [vmem:[%s2160 + $0xc0] sm:$0xff]
    %v2186 = vld [vmem:[%s2160 + $0xc8] sm:$0xff]
    %v2187 = vld [vmem:[%s2160 + $0xd0] sm:$0xff]
    %v2188 = vld [vmem:[%s2160 + $0xd8] sm:$0xff]
    %v2189 = vld [vmem:[%s2160 + $0xe0] sm:$0xff]
    %v2190 = vld [vmem:[%s2160 + $0xe8] sm:$0xff]
    %v2191 = vld [vmem:[%s2160 + $0xf0] sm:$0xff]
    %v2192 = vld [vmem:[%s2160 + $0xf8] sm:$0xff]
    %2193 = vmatpush.msra.mxu0 %v2176
    %2194 = vmatpush.msra.mxu0 %v2175
    %2195 = vmatpush.msra.mxu0 %v2174
    %2196 = vmatpush.msra.mxu0 %v2173
    %2197 = vmatpush.msra.mxu0 %v2172
    %2198 = vmatpush.msra.mxu0 %v2171
    %2199 = vmatpush.msra.mxu0 %v2170
    %2200 = vmatpush.msra.mxu0 %v2169
    %2201 = vmatpush.msra.mxu0 %v2168
    %2202 = vmatpush.msra.mxu0 %v2167
    %2203 = vmatpush.msra.mxu0 %v2166
    %2204 = vmatpush.msra.mxu0 %v2165
    %2205 = vmatpush.msra.mxu0 %v2164
    %2206 = vmatpush.msra.mxu0 %v2163
    %2207 = vmatpush.msra.mxu0 %v2162
    %2208 = vmatpush.msra.mxu0 %v2161
    %2209 = vmatmul.f32.gmra.mxu0 %v2156
    %v2210 = vpop.f32.mrf.mxu0
    %v2211 = vadd.f32 0.0, %v2210
    %2212 = vmatmul.f32.gmra.mxu0 %v2158
    %v2213 = vpop.f32.mrf.mxu0
    %v2214 = vadd.f32 0.0, %v2213
    %2215 = vdwg.mxu0
    %2216 = vmatpush.msra.mxu0 %v2192
    %2217 = vmatpush.msra.mxu0 %v2191
    %2218 = vmatpush.msra.mxu0 %v2190
    %2219 = vmatpush.msra.mxu0 %v2189
    %2220 = vmatpush.msra.mxu0 %v2188
    %2221 = vmatpush.msra.mxu0 %v2187
    %2222 = vmatpush.msra.mxu0 %v2186
    %2223 = vmatpush.msra.mxu0 %v2185
    %2224 = vmatpush.msra.mxu0 %v2184
    %2225 = vmatpush.msra.mxu0 %v2183
    %2226 = vmatpush.msra.mxu0 %v2182
    %2227 = vmatpush.msra.mxu0 %v2181
    %2228 = vmatpush.msra.mxu0 %v2180
    %2229 = vmatpush.msra.mxu0 %v2179
    %2230 = vmatpush.msra.mxu0 %v2178
    %2231 = vmatpush.msra.mxu0 %v2177
    %2232 = vmatmul.f32.gmra.mxu0 %v2157
    %v2233 = vpop.f32.mrf.mxu0
    %v2234 = vadd.f32 %v2211, %v2233
    %2235 = vmatmul.f32.gmra.mxu0 %v2159
    %v2236 = vpop.f32.mrf.mxu0
    %v2237 = vadd.f32 %v2214, %v2236
    %2238 = vdwg.mxu0
    %v2239 = vadd.f32 %v1906, %v2234
    %v2240 = vadd.f32 %v1907, %v2237
    %v2241 = vmul.f32 %v2239, %v2239
    %v2242 = vmul.f32 %v2240, %v2240
    %v2243 = vsel %vm65, %v2241, 0.0
    %2244 = vadd.xlane.f32.xlu0 %v2243
    %v2245 = vpop.xlane.xlu0 %2244
    %v2246 = vsel %vm65, %v2242, 0.0
    %2247 = vadd.xlane.f32.xlu0 %v2246
    %v2248 = vpop.xlane.xlu0 %2247
    %v2249 = vmul.f32 %v2245, %v78
    %v2250 = vmul.f32 %v2248, %v78
    %v2251 = vadd.f32 %v2249, 1e-06
    %v2252 = vadd.f32 %v2250, 1e-06
    %v2253 = vrsqrt.pop %v2251
    %v2254 = vmul.f32 %v2253, %v2251
    %v2255 = vmul.f32 %v2254, %v2253
    %v2256 = vmul.f32 0.5, %v2255
    %v2257 = vsub.f32 1.5, %v2256
    %v2258 = vmul.f32 %v2253, %v2257
    %vm2259 = vweird.f32 %v2251
    %vm2260 = vweird.f32 %v2253
    %vm2261 = vmor %vm2259, %vm2260
    %v2262 = vsel %vm2261, %v2253, %v2258
    %v2263 = vrsqrt.pop %v2252
    %v2264 = vmul.f32 %v2263, %v2252
    %v2265 = vmul.f32 %v2264, %v2263
    %v2266 = vmul.f32 0.5, %v2265
    %v2267 = vsub.f32 1.5, %v2266
    %v2268 = vmul.f32 %v2263, %v2267
    %vm2269 = vweird.f32 %v2252
    %vm2270 = vweird.f32 %v2263
    %vm2271 = vmor %vm2269, %vm2270
    %v2272 = vsel %vm2271, %v2263, %v2268
    %v2273 = vmul.f32 %v2239, %v2262
    %v2274 = vmul.f32 %v2240, %v2272
    %v2275 = vld [vmem:[%s9] sm:$0x1]
    %v2277 = vperm.slane %v2275, 0
    %v2279 = vmul.f32 %v2273, %v2277
    %v2280 = vmul.f32 %v2274, %v2277
    %v2281 = vld [vmem:[#allocation2] sm:$0xff]
    %v2282 = vld [vmem:[#allocation2 + $0x8] sm:$0xff]
    %v2283 = vld [vmem:[#allocation2 + $0x10] sm:$0xff]
    %v2284 = vld [vmem:[#allocation2 + $0x18] sm:$0xff]
    %v2285 = vld [vmem:[#allocation2 + $0x20] sm:$0xff]
    %v2286 = vld [vmem:[#allocation2 + $0x28] sm:$0xff]
    %v2287 = vld [vmem:[#allocation2 + $0x30] sm:$0xff]
    %v2288 = vld [vmem:[#allocation2 + $0x38] sm:$0xff]
    %v2289 = vld [vmem:[#allocation2 + $0x40] sm:$0xff]
    %v2290 = vld [vmem:[#allocation2 + $0x48] sm:$0xff]
    %v2291 = vld [vmem:[#allocation2 + $0x50] sm:$0xff]
    %v2292 = vld [vmem:[#allocation2 + $0x58] sm:$0xff]
    %v2293 = vld [vmem:[#allocation2 + $0x60] sm:$0xff]
    %v2294 = vld [vmem:[#allocation2 + $0x68] sm:$0xff]
    %v2295 = vld [vmem:[#allocation2 + $0x70] sm:$0xff]
    %v2296 = vld [vmem:[#allocation2 + $0x78] sm:$0xff]
    %v2298 = vsel %vm65, %v2279, 0
    %v2301 = vsel %vm65, %v2280, 0
    %2303 = vmatpush.msra.mxu0 0.0
    %2304 = vmatpush.msra.mxu0 0.0
    %2305 = vmatpush.msra.mxu0 0.0
    %2306 = vmatpush.msra.mxu0 0.0
    %2307 = vmatpush.msra.mxu0 0.0
    %2308 = vmatpush.msra.mxu0 0.0
    %2309 = vmatpush.msra.mxu0 0.0
    %2310 = vmatpush.msra.mxu0 0.0
    %2311 = vmatpush.msra.mxu0 %v2295
    %2312 = vmatpush.msra.mxu0 %v2293
    %2313 = vmatpush.msra.mxu0 %v2291
    %2314 = vmatpush.msra.mxu0 %v2289
    %2315 = vmatpush.msra.mxu0 %v2287
    %2316 = vmatpush.msra.mxu0 %v2285
    %2317 = vmatpush.msra.mxu0 %v2283
    %2318 = vmatpush.msra.mxu0 %v2281
    %2319 = vmatmul.f32.gmra.mxu0 %v2298
    %v2320 = vpop.f32.mrf.mxu0
    %v2321 = vadd.f32 0.0, %v2320
    %2322 = vmatmul.f32.gmra.mxu0 %v2301
    %v2323 = vpop.f32.mrf.mxu0
    %v2324 = vadd.f32 0.0, %v2323
    %2325 = vdwg.mxu0
    %2326 = vmatpush.msra.mxu0 0.0
    %2327 = vmatpush.msra.mxu0 0.0
    %2328 = vmatpush.msra.mxu0 0.0
    %2329 = vmatpush.msra.mxu0 0.0
    %2330 = vmatpush.msra.mxu0 0.0
    %2331 = vmatpush.msra.mxu0 0.0
    %2332 = vmatpush.msra.mxu0 0.0
    %2333 = vmatpush.msra.mxu0 0.0
    %2334 = vmatpush.msra.mxu0 %v2296
    %2335 = vmatpush.msra.mxu0 %v2294
    %2336 = vmatpush.msra.mxu0 %v2292
    %2337 = vmatpush.msra.mxu0 %v2290
    %2338 = vmatpush.msra.mxu0 %v2288
    %2339 = vmatpush.msra.mxu0 %v2286
    %2340 = vmatpush.msra.mxu0 %v2284
    %2341 = vmatpush.msra.mxu0 %v2282
    %2342 = vmatmul.f32.gmra.mxu0 %v2298
    %v2343 = vpop.f32.mrf.mxu0
    %v2344 = vadd.f32 0.0, %v2343
    %2345 = vmatmul.f32.gmra.mxu0 %v2301
    %v2346 = vpop.f32.mrf.mxu0
    %v2347 = vadd.f32 0.0, %v2346
    %2348 = vdwg.mxu0
    %2349 = vst [vmem:[#allocation5] sm:$0xff] %v2321
    %2350 = vst [vmem:[#allocation5 + $0x8] sm:$0xff] %v2344
    %2351 = vst [vmem:[#allocation5 + $0x10] sm:$0xff] %v2324
    %2352 = vst [vmem:[#allocation5 + $0x18] sm:$0xff] %v2347
    // Predicated region
    $region50: #{transformer_forward.1} parent=1 // pred_check
      _
    $region51: #{transformer_forward.1} parent=1 // pred_check_branch
      %2354 = sbr.rel (0) target = $region53
    $region52: #{transformer_forward.1} parent=1 // pred_region
      %2356 = vsyncadd [#allocation4], 0
      %s2357 = sshll.u32 [#allocation5], 4
      %s2358 = int_to_ptr.vmem [resolvable:$true] %s2357
      %s2359 = sshll.u32 %s11, 4
      %s2360 = int_to_ptr.hbm [resolvable:$true] %s2359
      %2365 = dma.vmem_to_hbm [thread:$0]  %s2358, 512, %s2360, [#allocation4], 256, 256, 16
    $region53: #{transformer_forward.1} parent=1 // pred_fallthru
      _
    // Predicated region
    $region54: #{transformer_forward.1} parent=1 // pred_check
      _
    $region55: #{transformer_forward.1} parent=1 // pred_check_branch
      %2367 = sbr.rel (0) target = $region57
    $region56: #{transformer_forward.1} parent=1 // pred_region
      %2369 = dma.done [#allocation4], 512
    $region57: #{transformer_forward.1} parent=1 // pred_fallthru
      _
    %2370 = vsyncpa [#allocation3], 1
    %2371 = vsyncpa [#allocation4], 1

</llo_original>
